<compile_context>
chip_gen: v6e
topology: v6e:2x2x1
jax: 0.10.0
libtpu: 0.0.40
codegen_flags: <defaults>
</compile_context>

<pallas_src>
import functools
import math
from typing import NamedTuple

import jax
import jax.numpy as jnp
from jax.experimental import pallas as pl
from jax.experimental.pallas import tpu as pltpu


def _round_up(v, m):
    return ((v + m - 1) // m) * m


def _cdiv(a, b):
    return -(-a // b)


# -----------------------------------------------------------------------------
# Octahedral group action on 3D filters (acts on the last three axes).
# -----------------------------------------------------------------------------
def _rotations24(w):
    A = (-3, -2)   # (d, h) plane
    B = (-3, -1)   # (d, w) plane
    C = (-2, -1)   # (h, w) plane

    def rot4(v, axes):
        return [jnp.rot90(v, k, axes=axes) for k in range(4)]

    outs = []
    outs += rot4(w, C)
    outs += rot4(jnp.rot90(w, 2, axes=B), C)
    outs += rot4(jnp.rot90(w, 1, axes=B), A)
    outs += rot4(jnp.rot90(w, -1, axes=B), A)
    outs += rot4(jnp.rot90(w, 1, axes=A), B)
    outs += rot4(jnp.rot90(w, -1, axes=A), B)
    return outs


def octahedral_filter_bank(w, reflection):
    """w: (..., k, k, k) -> list of group_order transformed filters."""
    bank = _rotations24(w)
    if reflection:
        # TODO(synk): the source of `octahedral_transform` is not provided; the
        # improper half of O_h is enumerated as mirror(last axis) followed by
        # the same 24 rotations (one fixed, valid enumeration; the per-element
        # relaxed_weights make the ordering semantically relevant).
        bank += _rotations24(jnp.flip(w, axis=-1))
    return bank


# -----------------------------------------------------------------------------
# Hoisted parameter setup: fused conv weights in MXU-friendly layout.
# -----------------------------------------------------------------------------
class FusedWeightMeta(NamedTuple):
    K: int
    cin: int
    cout_base: int
    group: int
    cout: int
    kdim: int
    kdim_pad: int
    cout_pad: int


def make_fused_weights(kernel, relaxed_weights, reflection,
                       mxu_dtype=jnp.bfloat16):
    """generate_filter_bank + relaxed einsum + pad/cast.

    Pure parameter setup (independent of x): call once per weight update and
    reuse the result for every forward, keeping dozens of rot90/einsum/pad
    XLA ops out of the per-forward hot path.
    """
    nfb, cout_base, cin, K, _, _ = kernel.shape
    group = 48 if reflection else 24
    assert relaxed_weights.shape == (nfb, group)

    w = kernel.reshape(nfb * cout_base, cin, K, K, K)
    bank = jnp.stack(octahedral_filter_bank(w, reflection))   # (g, nfb*o, c, k,k,k)
    bank = jnp.transpose(bank, (1, 0, 2, 3, 4, 5))
    bank = bank.reshape(nfb, cout_base, group, cin, K, K, K)  # (n, o, a, c, k,k,k)
    relaxed = jnp.einsum('na,noacxyz->oacxyz', relaxed_weights, bank)
    cout = cout_base * group
    w_oi = relaxed.reshape(cout, cin, K, K, K)                 # (O, I, kd, kh, kw)

    # (O,I,kd,kh,kw) -> (kd,kh,kw,I,O) -> (K^3*Cin, Cout); zero-pad the
    # contraction depth to 128 and Cout to 128 so loads/stores are unmasked,
    # full-lane vregs.  (cout_pad stays 128 for reflection=False — per review,
    # do not pad to 256 "for the MXU": stores/DMA are the binding slot.)
    kdim = K * K * K * cin
    kdim_pad = _round_up(kdim, 128)
    cout_pad = _round_up(cout, 128)
    w_k = jnp.transpose(w_oi, (2, 3, 4, 1, 0)).reshape(kdim, cout)
    w_k = jnp.pad(w_k, ((0, kdim_pad - kdim), (0, cout_pad - cout)))
    w_k = w_k.astype(mxu_dtype)
    meta = FusedWeightMeta(K=K, cin=cin, cout_base=cout_base, group=group,
                           cout=cout, kdim=kdim, kdim_pad=kdim_pad,
                           cout_pad=cout_pad)
    return w_k, meta


# -----------------------------------------------------------------------------
# Pallas kernel: fused im2col (VMEM scratch) + one MXU matmul + ReLU.
# -----------------------------------------------------------------------------
def _lift_conv_kernel(slab_ref, w_ref, o_ref, patch_ref, *,
                      K, cin, TD, Ho, Wo, activation):
    # slab_ref : (TD+K-1, Ho+K-1, Wo+K-1, cin)  halo'd input slab (auto-DMA'd)
    # w_ref    : (kdim_pad, cout_pad)  bf16     fused weights, grid-invariant
    # o_ref    : (TD*Ho*Wo, cout_pad)  out_dtype  lane-dense output tile
    # patch_ref: (TD, Ho, Wo, kdim_pad)          im2col scratch in VMEM

    # Clear the scratch every step (also zeroes the kdim..kdim_pad pad lanes;
    # doing this unconditionally keeps the kernel megacore-safe — no reliance
    # on program_id(0)==0 ever executing on a given core).
    patch_ref[...] = jnp.zeros_like(patch_ref)

    # 27 static ref slices: tap (kd,kh,kw) writes lanes [t*cin, (t+1)*cin).
    for kd in range(K):
        for kh in range(K):
            for kw in range(K):
                t = (kd * K + kh) * K + kw
                patch_ref[:, :, :, t * cin:(t + 1) * cin] = (
                    slab_ref[kd:kd + TD, kh:kh + Ho, kw:kw + Wo, :])

    kdim_pad = patch_ref.shape[-1]
    # (TD,Ho,Wo,kdim_pad) -> (TR,kdim_pad): minor dim kept, 2nd-minor Wo is a
    # multiple of 8 at the demo shapes -> no-op relayout.  bf16 MXU operands,
    # f32 accumulation.
    pmat = patch_ref[...].reshape(TD * Ho * Wo, kdim_pad).astype(w_ref.dtype)
    acc = jnp.dot(pmat, w_ref[...], preferred_element_type=jnp.float32)
    if activation:
        acc = jnp.maximum(acc, 0.0)
    o_ref[...] = acc.astype(o_ref.dtype)


# -----------------------------------------------------------------------------
# Forward pass.
# -----------------------------------------------------------------------------
def relaxed_octahedral_lift_conv3d(x, w_k, meta, *, activation=True,
                                   out_dtype=jnp.bfloat16, channels_last=False,
                                   max_rows=1024, min_grid=4):
    K, cin = meta.K, meta.cin
    B, c_in, D, H, W = x.shape
    assert c_in == cin
    p = (K - 1) // 2
    Do = D + 2 * p - K + 1
    Ho = H + 2 * p - K + 1
    Wo = W + 2 * p - K + 1
    Hp, Wp = Ho + K - 1, Wo + K - 1

    # Depth tile: largest TR = TD*Ho*Wo <= max_rows, shrunk (when possible) so
    # the "parallel" grid keeps >= min_grid steps for v7x's two TensorCores.
    rows_per_slice = Ho * Wo
    TD = max(1, min(Do, max_rows // max(1, rows_per_slice)))
    while TD > 1 and B * _cdiv(Do, TD) < min_grid:
        TD = max(1, TD // 2)
    num_db = _cdiv(Do, TD)
    Do_pad = num_db * TD
    TDH = TD + K - 1
    TR = TD * Ho * Wo

    # Channels-last, spatially padded input; depth additionally padded so the
    # last slab is full (padded rows read zeros and are sliced away below).
    x_cl = jnp.transpose(x, (0, 2, 3, 4, 1))                       # (B,D,H,W,C)
    x_pad = jnp.pad(x_cl, ((0, 0), (p, p + Do_pad - Do), (p, p), (p, p), (0, 0)))

    # Halo'd depth slabs: the only duplicated input bytes are the K-1 halo
    # slices per block (~(TD+K-1)/TD total input traffic), vs. the 27x of an
    # HBM-materialized im2col.  Keeping them as a plain array keeps the input
    # on the auto-pipelined (double-buffered, megacore-safe) BlockSpec path.
    slabs = [jax.lax.slice_in_dim(x_pad, db * TD, db * TD + TDH, axis=1)
             for db in range(num_db)]
    x_slabs = jnp.stack(slabs, axis=1).reshape(B * num_db, TDH, Hp, Wp, cin)

    kern = functools.partial(_lift_conv_kernel, K=K, cin=cin, TD=TD,
                             Ho=Ho, Wo=Wo, activation=activation)
    grid = (B * num_db,)
    out2d = pl.pallas_call(
        kern,
        out_shape=jax.ShapeDtypeStruct((B * num_db * TR, meta.cout_pad),
                                       out_dtype),
        grid=grid,
        in_specs=[
            # One halo'd slab per grid step (leading dim squeezed).
            pl.BlockSpec((None, TDH, Hp, Wp, cin),
                         lambda i: (i, 0, 0, 0, 0)),
            # Fused weights: grid-invariant, stays resident in VMEM.
            pl.BlockSpec((meta.kdim_pad, meta.cout_pad), lambda i: (0, 0)),
        ],
        out_specs=pl.BlockSpec((TR, meta.cout_pad), lambda i: (i, 0)),
        scratch_shapes=[pltpu.VMEM((TD, Ho, Wo, meta.kdim_pad), x.dtype)],
        compiler_params=pltpu.CompilerParams(
            dimension_semantics=("parallel",),
            # Per-step footprint (slab + patch scratch + weights + double-
            # buffered output) is a few MiB; 32 MiB fits every generation,
            # including v7x's 64 MiB physical / 32 MiB default-scoped VMEM.
            vmem_limit_bytes=32 * 1024 * 1024),
    )(x_slabs, w_k)

    # (B*num_db*TR, cout_pad) -> (B, Do, Ho, Wo, out, group)
    out = out2d.reshape(B, Do_pad, Ho, Wo, meta.cout_pad)
    out = out[:, :Do, :, :, :meta.cout]
    out = out.reshape(B, Do, Ho, Wo, meta.cout_base, meta.group)
    if channels_last:
        # Lane-dense layout; preferred when the consumer can take this form.
        return out
    # PyTorch-module layout (B, out, group, D, H, W).  This transpose puts the
    # small W dim in lanes (lane-sparse); use channels_last=True to skip it.
    return jnp.transpose(out, (0, 4, 5, 1, 2, 3))


# -----------------------------------------------------------------------------
# Pure-JAX reference (mirrors the PyTorch forward with lax.conv, full f32).
# -----------------------------------------------------------------------------
def reference(x, kernel, relaxed_weights, *, reflection=False, activation=True):
    nfb, cout_base, cin, K, _, _ = kernel.shape
    group = 48 if reflection else 24
    w = kernel.reshape(nfb * cout_base, cin, K, K, K)
    bank = jnp.stack(octahedral_filter_bank(w, reflection))
    bank = jnp.transpose(bank, (1, 0, 2, 3, 4, 5))
    bank = bank.reshape(nfb, cout_base, group, cin, K, K, K)
    relaxed = jnp.einsum('na,noacxyz->oacxyz', relaxed_weights, bank)
    w_oi = relaxed.reshape(cout_base * group, cin, K, K, K)
    p = (K - 1) // 2
    y = jax.lax.conv_general_dilated(
        x, w_oi, window_strides=(1, 1, 1), padding=[(p, p)] * 3,
        dimension_numbers=('NCDHW', 'OIDHW', 'NCDHW'))
    B = x.shape[0]
    y = y.reshape(B, cout_base, group, y.shape[-3], y.shape[-2], y.shape[-1])
    if activation:
        y = jnp.maximum(y, 0.0)
    return y


if __name__ == "__main__":
    B, Cin, D, H, W = 2, 4, 8, 8, 8
    out_channels, K, nfb = 4, 3, 2
    reflection = False
    group = 48 if reflection else 24

    key = jax.random.PRNGKey(0)
    k_key, rw_key, x_key = jax.random.split(key, 3)

    # kaiming_uniform_(a=sqrt(5)) on (nfb, out, in, k, k, k):
    # PyTorch fan_in = size(1) * prod(size(2:)) = out*in*k^3, bound = 1/sqrt(fan_in)
    fan_in = out_channels * Cin * K * K * K
    bound = 1.0 / math.sqrt(fan_in)
    kernel = jax.random.uniform(k_key, (nfb, out_channels, Cin, K, K, K),
                                jnp.float32, -bound, bound)
    # Module initializes relaxed_weights to ones; perturb deterministically so
    # the relaxed weighting is non-trivial in this synthetic check.
    relaxed_weights = 1.0 + 0.1 * jax.random.normal(rw_key, (nfb, group),
                                                    jnp.float32)
    x = jax.random.normal(x_key, (B, Cin, D, H, W), jnp.float32)

    # Parameter-only setup, hoisted out of the forward (built once per weight
    # update, reused by every forward call).
    w_k, meta = make_fused_weights(kernel, relaxed_weights, reflection)

    fwd = jax.jit(relaxed_octahedral_lift_conv3d, static_argnums=(2,))
    y = jax.block_until_ready(fwd(x, w_k, meta))

    y_ref = reference(x, kernel, relaxed_weights,
                      reflection=reflection, activation=True)
    assert y.shape == (B, out_channels, group, D, H, W), y.shape
    y32 = y.astype(jnp.float32)
    rel = float(jnp.linalg.norm(y32 - y_ref) / (jnp.linalg.norm(y_ref) + 1e-12))
    max_err = float(jnp.max(jnp.abs(y32 - y_ref)))
    # bf16 MXU operands + bf16 output vs. a full-f32 reference.
    assert rel < 3e-2, (rel, max_err)
    assert max_err < 1.5e-1, (rel, max_err)
    print("KERNEL_OK")
</pallas_src>

<mosaic_0001>
module attributes {stable_mosaic.version = 11 : i64} {
  func.func @_lift_conv_kernel(%arg0: i32, %arg1: memref<1x6x10x10x4xf32, #tpu.memory_space<vmem>>, %arg2: memref<128x128xbf16, #tpu.memory_space<vmem>>, %arg3: memref<256x128xbf16, #tpu.memory_space<vmem>>, %arg4: memref<4x8x8x128xf32, #tpu.memory_space<vmem>>) attributes {dimension_semantics = [#tpu.dimension_semantics<parallel>], iteration_bounds = array<i64: 4>, scalar_prefetch = 0 : i64, scratch_operands = 1 : i64, tpu.core_type = #tpu.core_type<tc>, window_params = [{transform_indices = @transform_0, window_bounds = array<i64: 1, 6, 10, 10, 4>}, {pipeline_mode = #tpu.pipeline_mode<synchronous>, transform_indices = @transform_1, window_bounds = array<i64: 128, 128>}, {transform_indices = @transform_2, window_bounds = array<i64: 256, 128>}]} {
    %cst = arith.constant 0.000000e+00 : f32
    %0 = vector.broadcast %cst : f32 to vector<4x8x8x128xf32>
    %c0 = arith.constant 0 : index
    %c0_0 = arith.constant 0 : index
    %c0_1 = arith.constant 0 : index
    %c0_2 = arith.constant 0 : index
    %1 = vector.load %arg4[%c0, %c0_0, %c0_1, %c0_2] : memref<4x8x8x128xf32, #tpu.memory_space<vmem>>, vector<4x8x8x128xf32>
    tpu.vector_store %arg4[%c0, %c0_0, %c0_1, %c0_2], %0 {strides = array<i32>} : memref<4x8x8x128xf32, #tpu.memory_space<vmem>>, vector<4x8x8x128xf32>,
    %c0_3 = arith.constant 0 : index
    %c0_4 = arith.constant 0 : index
    %c0_5 = arith.constant 0 : index
    %c0_6 = arith.constant 0 : index
    %c0_7 = arith.constant 0 : index
    %2 = vector.load %arg1[%c0_3, %c0_4, %c0_5, %c0_6, %c0_7] : memref<1x6x10x10x4xf32, #tpu.memory_space<vmem>>, vector<1x4x8x8x4xf32>
    %3 = vector.shape_cast %2 : vector<1x4x8x8x4xf32> to vector<4x8x8x4xf32>
    %c0_8 = arith.constant 0 : index
    %c0_9 = arith.constant 0 : index
    %c0_10 = arith.constant 0 : index
    %c0_11 = arith.constant 0 : index
    %4 = vector.load %arg4[%c0_8, %c0_9, %c0_10, %c0_11] : memref<4x8x8x128xf32, #tpu.memory_space<vmem>>, vector<4x8x8x4xf32>
    tpu.vector_store %arg4[%c0_8, %c0_9, %c0_10, %c0_11], %3 {strides = array<i32>} : memref<4x8x8x128xf32, #tpu.memory_space<vmem>>, vector<4x8x8x4xf32>,
    %c0_12 = arith.constant 0 : index
    %c0_13 = arith.constant 0 : index
    %c0_14 = arith.constant 0 : index
    %c1 = arith.constant 1 : index
    %c0_15 = arith.constant 0 : index
    %5 = vector.load %arg1[%c0_12, %c0_13, %c0_14, %c1, %c0_15] : memref<1x6x10x10x4xf32, #tpu.memory_space<vmem>>, vector<1x4x8x8x4xf32>
    %6 = vector.shape_cast %5 : vector<1x4x8x8x4xf32> to vector<4x8x8x4xf32>
    %c0_16 = arith.constant 0 : index
    %c0_17 = arith.constant 0 : index
    %c0_18 = arith.constant 0 : index
    %c4 = arith.constant 4 : index
    %7 = vector.load %arg4[%c0_16, %c0_17, %c0_18, %c4] : memref<4x8x8x128xf32, #tpu.memory_space<vmem>>, vector<4x8x8x4xf32>
    tpu.vector_store %arg4[%c0_16, %c0_17, %c0_18, %c4], %6 {strides = array<i32>} : memref<4x8x8x128xf32, #tpu.memory_space<vmem>>, vector<4x8x8x4xf32>,
    %c0_19 = arith.constant 0 : index
    %c0_20 = arith.constant 0 : index
    %c0_21 = arith.constant 0 : index
    %c2 = arith.constant 2 : index
    %c0_22 = arith.constant 0 : index
    %8 = vector.load %arg1[%c0_19, %c0_20, %c0_21, %c2, %c0_22] : memref<1x6x10x10x4xf32, #tpu.memory_space<vmem>>, vector<1x4x8x8x4xf32>
    %9 = vector.shape_cast %8 : vector<1x4x8x8x4xf32> to vector<4x8x8x4xf32>
    %c0_23 = arith.constant 0 : index
    %c0_24 = arith.constant 0 : index
    %c0_25 = arith.constant 0 : index
    %c8 = arith.constant 8 : index
    %10 = vector.load %arg4[%c0_23, %c0_24, %c0_25, %c8] : memref<4x8x8x128xf32, #tpu.memory_space<vmem>>, vector<4x8x8x4xf32>
    tpu.vector_store %arg4[%c0_23, %c0_24, %c0_25, %c8], %9 {strides = array<i32>} : memref<4x8x8x128xf32, #tpu.memory_space<vmem>>, vector<4x8x8x4xf32>,
    %c0_26 = arith.constant 0 : index
    %c0_27 = arith.constant 0 : index
    %c1_28 = arith.constant 1 : index
    %c0_29 = arith.constant 0 : index
    %c0_30 = arith.constant 0 : index
    %11 = vector.load %arg1[%c0_26, %c0_27, %c1_28, %c0_29, %c0_30] : memref<1x6x10x10x4xf32, #tpu.memory_space<vmem>>, vector<1x4x8x8x4xf32>
    %12 = vector.shape_cast %11 : vector<1x4x8x8x4xf32> to vector<4x8x8x4xf32>
    %c0_31 = arith.constant 0 : index
    %c0_32 = arith.constant 0 : index
    %c0_33 = arith.constant 0 : index
    %c12 = arith.constant 12 : index
    %13 = vector.load %arg4[%c0_31, %c0_32, %c0_33, %c12] : memref<4x8x8x128xf32, #tpu.memory_space<vmem>>, vector<4x8x8x4xf32>
    tpu.vector_store %arg4[%c0_31, %c0_32, %c0_33, %c12], %12 {strides = array<i32>} : memref<4x8x8x128xf32, #tpu.memory_space<vmem>>, vector<4x8x8x4xf32>,
    %c0_34 = arith.constant 0 : index
    %c0_35 = arith.constant 0 : index
    %c1_36 = arith.constant 1 : index
    %c1_37 = arith.constant 1 : index
    %c0_38 = arith.constant 0 : index
    %14 = vector.load %arg1[%c0_34, %c0_35, %c1_36, %c1_37, %c0_38] : memref<1x6x10x10x4xf32, #tpu.memory_space<vmem>>, vector<1x4x8x8x4xf32>
    %15 = vector.shape_cast %14 : vector<1x4x8x8x4xf32> to vector<4x8x8x4xf32>
    %c0_39 = arith.constant 0 : index
    %c0_40 = arith.constant 0 : index
    %c0_41 = arith.constant 0 : index
    %c16 = arith.constant 16 : index
    %16 = vector.load %arg4[%c0_39, %c0_40, %c0_41, %c16] : memref<4x8x8x128xf32, #tpu.memory_space<vmem>>, vector<4x8x8x4xf32>
    tpu.vector_store %arg4[%c0_39, %c0_40, %c0_41, %c16], %15 {strides = array<i32>} : memref<4x8x8x128xf32, #tpu.memory_space<vmem>>, vector<4x8x8x4xf32>,
    %c0_42 = arith.constant 0 : index
    %c0_43 = arith.constant 0 : index
    %c1_44 = arith.constant 1 : index
    %c2_45 = arith.constant 2 : index
    %c0_46 = arith.constant 0 : index
    %17 = vector.load %arg1[%c0_42, %c0_43, %c1_44, %c2_45, %c0_46] : memref<1x6x10x10x4xf32, #tpu.memory_space<vmem>>, vector<1x4x8x8x4xf32>
    %18 = vector.shape_cast %17 : vector<1x4x8x8x4xf32> to vector<4x8x8x4xf32>
    %c0_47 = arith.constant 0 : index
    %c0_48 = arith.constant 0 : index
    %c0_49 = arith.constant 0 : index
    %c20 = arith.constant 20 : index
    %19 = vector.load %arg4[%c0_47, %c0_48, %c0_49, %c20] : memref<4x8x8x128xf32, #tpu.memory_space<vmem>>, vector<4x8x8x4xf32>
    tpu.vector_store %arg4[%c0_47, %c0_48, %c0_49, %c20], %18 {strides = array<i32>} : memref<4x8x8x128xf32, #tpu.memory_space<vmem>>, vector<4x8x8x4xf32>,
    %c0_50 = arith.constant 0 : index
    %c0_51 = arith.constant 0 : index
    %c2_52 = arith.constant 2 : index
    %c0_53 = arith.constant 0 : index
    %c0_54 = arith.constant 0 : index
    %20 = vector.load %arg1[%c0_50, %c0_51, %c2_52, %c0_53, %c0_54] : memref<1x6x10x10x4xf32, #tpu.memory_space<vmem>>, vector<1x4x8x8x4xf32>
    %21 = vector.shape_cast %20 : vector<1x4x8x8x4xf32> to vector<4x8x8x4xf32>
    %c0_55 = arith.constant 0 : index
    %c0_56 = arith.constant 0 : index
    %c0_57 = arith.constant 0 : index
    %c24 = arith.constant 24 : index
    %22 = vector.load %arg4[%c0_55, %c0_56, %c0_57, %c24] : memref<4x8x8x128xf32, #tpu.memory_space<vmem>>, vector<4x8x8x4xf32>
    tpu.vector_store %arg4[%c0_55, %c0_56, %c0_57, %c24], %21 {strides = array<i32>} : memref<4x8x8x128xf32, #tpu.memory_space<vmem>>, vector<4x8x8x4xf32>,
    %c0_58 = arith.constant 0 : index
    %c0_59 = arith.constant 0 : index
    %c2_60 = arith.constant 2 : index
    %c1_61 = arith.constant 1 : index
    %c0_62 = arith.constant 0 : index
    %23 = vector.load %arg1[%c0_58, %c0_59, %c2_60, %c1_61, %c0_62] : memref<1x6x10x10x4xf32, #tpu.memory_space<vmem>>, vector<1x4x8x8x4xf32>
    %24 = vector.shape_cast %23 : vector<1x4x8x8x4xf32> to vector<4x8x8x4xf32>
    %c0_63 = arith.constant 0 : index
    %c0_64 = arith.constant 0 : index
    %c0_65 = arith.constant 0 : index
    %c28 = arith.constant 28 : index
    %25 = vector.load %arg4[%c0_63, %c0_64, %c0_65, %c28] : memref<4x8x8x128xf32, #tpu.memory_space<vmem>>, vector<4x8x8x4xf32>
    tpu.vector_store %arg4[%c0_63, %c0_64, %c0_65, %c28], %24 {strides = array<i32>} : memref<4x8x8x128xf32, #tpu.memory_space<vmem>>, vector<4x8x8x4xf32>,
    %c0_66 = arith.constant 0 : index
    %c0_67 = arith.constant 0 : index
    %c2_68 = arith.constant 2 : index
    %c2_69 = arith.constant 2 : index
    %c0_70 = arith.constant 0 : index
    %26 = vector.load %arg1[%c0_66, %c0_67, %c2_68, %c2_69, %c0_70] : memref<1x6x10x10x4xf32, #tpu.memory_space<vmem>>, vector<1x4x8x8x4xf32>
    %27 = vector.shape_cast %26 : vector<1x4x8x8x4xf32> to vector<4x8x8x4xf32>
    %c0_71 = arith.constant 0 : index
    %c0_72 = arith.constant 0 : index
    %c0_73 = arith.constant 0 : index
    %c32 = arith.constant 32 : index
    %28 = vector.load %arg4[%c0_71, %c0_72, %c0_73, %c32] : memref<4x8x8x128xf32, #tpu.memory_space<vmem>>, vector<4x8x8x4xf32>
    tpu.vector_store %arg4[%c0_71, %c0_72, %c0_73, %c32], %27 {strides = array<i32>} : memref<4x8x8x128xf32, #tpu.memory_space<vmem>>, vector<4x8x8x4xf32>,
    %c0_74 = arith.constant 0 : index
    %c1_75 = arith.constant 1 : index
    %c0_76 = arith.constant 0 : index
    %c0_77 = arith.constant 0 : index
    %c0_78 = arith.constant 0 : index
    %29 = vector.load %arg1[%c0_74, %c1_75, %c0_76, %c0_77, %c0_78] : memref<1x6x10x10x4xf32, #tpu.memory_space<vmem>>, vector<1x4x8x8x4xf32>
    %30 = vector.shape_cast %29 : vector<1x4x8x8x4xf32> to vector<4x8x8x4xf32>
    %c0_79 = arith.constant 0 : index
    %c0_80 = arith.constant 0 : index
    %c0_81 = arith.constant 0 : index
    %c36 = arith.constant 36 : index
    %31 = vector.load %arg4[%c0_79, %c0_80, %c0_81, %c36] : memref<4x8x8x128xf32, #tpu.memory_space<vmem>>, vector<4x8x8x4xf32>
    tpu.vector_store %arg4[%c0_79, %c0_80, %c0_81, %c36], %30 {strides = array<i32>} : memref<4x8x8x128xf32, #tpu.memory_space<vmem>>, vector<4x8x8x4xf32>,
    %c0_82 = arith.constant 0 : index
    %c1_83 = arith.constant 1 : index
    %c0_84 = arith.constant 0 : index
    %c1_85 = arith.constant 1 : index
    %c0_86 = arith.constant 0 : index
    %32 = vector.load %arg1[%c0_82, %c1_83, %c0_84, %c1_85, %c0_86] : memref<1x6x10x10x4xf32, #tpu.memory_space<vmem>>, vector<1x4x8x8x4xf32>
    %33 = vector.shape_cast %32 : vector<1x4x8x8x4xf32> to vector<4x8x8x4xf32>
    %c0_87 = arith.constant 0 : index
    %c0_88 = arith.constant 0 : index
    %c0_89 = arith.constant 0 : index
    %c40 = arith.constant 40 : index
    %34 = vector.load %arg4[%c0_87, %c0_88, %c0_89, %c40] : memref<4x8x8x128xf32, #tpu.memory_space<vmem>>, vector<4x8x8x4xf32>
    tpu.vector_store %arg4[%c0_87, %c0_88, %c0_89, %c40], %33 {strides = array<i32>} : memref<4x8x8x128xf32, #tpu.memory_space<vmem>>, vector<4x8x8x4xf32>,
    %c0_90 = arith.constant 0 : index
    %c1_91 = arith.constant 1 : index
    %c0_92 = arith.constant 0 : index
    %c2_93 = arith.constant 2 : index
    %c0_94 = arith.constant 0 : index
    %35 = vector.load %arg1[%c0_90, %c1_91, %c0_92, %c2_93, %c0_94] : memref<1x6x10x10x4xf32, #tpu.memory_space<vmem>>, vector<1x4x8x8x4xf32>
    %36 = vector.shape_cast %35 : vector<1x4x8x8x4xf32> to vector<4x8x8x4xf32>
    %c0_95 = arith.constant 0 : index
    %c0_96 = arith.constant 0 : index
    %c0_97 = arith.constant 0 : index
    %c44 = arith.constant 44 : index
    %37 = vector.load %arg4[%c0_95, %c0_96, %c0_97, %c44] : memref<4x8x8x128xf32, #tpu.memory_space<vmem>>, vector<4x8x8x4xf32>
    tpu.vector_store %arg4[%c0_95, %c0_96, %c0_97, %c44], %36 {strides = array<i32>} : memref<4x8x8x128xf32, #tpu.memory_space<vmem>>, vector<4x8x8x4xf32>,
    %c0_98 = arith.constant 0 : index
    %c1_99 = arith.constant 1 : index
    %c1_100 = arith.constant 1 : index
    %c0_101 = arith.constant 0 : index
    %c0_102 = arith.constant 0 : index
    %38 = vector.load %arg1[%c0_98, %c1_99, %c1_100, %c0_101, %c0_102] : memref<1x6x10x10x4xf32, #tpu.memory_space<vmem>>, vector<1x4x8x8x4xf32>
    %39 = vector.shape_cast %38 : vector<1x4x8x8x4xf32> to vector<4x8x8x4xf32>
    %c0_103 = arith.constant 0 : index
    %c0_104 = arith.constant 0 : index
    %c0_105 = arith.constant 0 : index
    %c48 = arith.constant 48 : index
    %40 = vector.load %arg4[%c0_103, %c0_104, %c0_105, %c48] : memref<4x8x8x128xf32, #tpu.memory_space<vmem>>, vector<4x8x8x4xf32>
    tpu.vector_store %arg4[%c0_103, %c0_104, %c0_105, %c48], %39 {strides = array<i32>} : memref<4x8x8x128xf32, #tpu.memory_space<vmem>>, vector<4x8x8x4xf32>,
    %c0_106 = arith.constant 0 : index
    %c1_107 = arith.constant 1 : index
    %c1_108 = arith.constant 1 : index
    %c1_109 = arith.constant 1 : index
    %c0_110 = arith.constant 0 : index
    %41 = vector.load %arg1[%c0_106, %c1_107, %c1_108, %c1_109, %c0_110] : memref<1x6x10x10x4xf32, #tpu.memory_space<vmem>>, vector<1x4x8x8x4xf32>
    %42 = vector.shape_cast %41 : vector<1x4x8x8x4xf32> to vector<4x8x8x4xf32>
    %c0_111 = arith.constant 0 : index
    %c0_112 = arith.constant 0 : index
    %c0_113 = arith.constant 0 : index
    %c52 = arith.constant 52 : index
    %43 = vector.load %arg4[%c0_111, %c0_112, %c0_113, %c52] : memref<4x8x8x128xf32, #tpu.memory_space<vmem>>, vector<4x8x8x4xf32>
    tpu.vector_store %arg4[%c0_111, %c0_112, %c0_113, %c52], %42 {strides = array<i32>} : memref<4x8x8x128xf32, #tpu.memory_space<vmem>>, vector<4x8x8x4xf32>,
    %c0_114 = arith.constant 0 : index
    %c1_115 = arith.constant 1 : index
    %c1_116 = arith.constant 1 : index
    %c2_117 = arith.constant 2 : index
    %c0_118 = arith.constant 0 : index
    %44 = vector.load %arg1[%c0_114, %c1_115, %c1_116, %c2_117, %c0_118] : memref<1x6x10x10x4xf32, #tpu.memory_space<vmem>>, vector<1x4x8x8x4xf32>
    %45 = vector.shape_cast %44 : vector<1x4x8x8x4xf32> to vector<4x8x8x4xf32>
    %c0_119 = arith.constant 0 : index
    %c0_120 = arith.constant 0 : index
    %c0_121 = arith.constant 0 : index
    %c56 = arith.constant 56 : index
    %46 = vector.load %arg4[%c0_119, %c0_120, %c0_121, %c56] : memref<4x8x8x128xf32, #tpu.memory_space<vmem>>, vector<4x8x8x4xf32>
    tpu.vector_store %arg4[%c0_119, %c0_120, %c0_121, %c56], %45 {strides = array<i32>} : memref<4x8x8x128xf32, #tpu.memory_space<vmem>>, vector<4x8x8x4xf32>,
    %c0_122 = arith.constant 0 : index
    %c1_123 = arith.constant 1 : index
    %c2_124 = arith.constant 2 : index
    %c0_125 = arith.constant 0 : index
    %c0_126 = arith.constant 0 : index
    %47 = vector.load %arg1[%c0_122, %c1_123, %c2_124, %c0_125, %c0_126] : memref<1x6x10x10x4xf32, #tpu.memory_space<vmem>>, vector<1x4x8x8x4xf32>
    %48 = vector.shape_cast %47 : vector<1x4x8x8x4xf32> to vector<4x8x8x4xf32>
    %c0_127 = arith.constant 0 : index
    %c0_128 = arith.constant 0 : index
    %c0_129 = arith.constant 0 : index
    %c60 = arith.constant 60 : index
    %49 = vector.load %arg4[%c0_127, %c0_128, %c0_129, %c60] : memref<4x8x8x128xf32, #tpu.memory_space<vmem>>, vector<4x8x8x4xf32>
    tpu.vector_store %arg4[%c0_127, %c0_128, %c0_129, %c60], %48 {strides = array<i32>} : memref<4x8x8x128xf32, #tpu.memory_space<vmem>>, vector<4x8x8x4xf32>,
    %c0_130 = arith.constant 0 : index
    %c1_131 = arith.constant 1 : index
    %c2_132 = arith.constant 2 : index
    %c1_133 = arith.constant 1 : index
    %c0_134 = arith.constant 0 : index
    %50 = vector.load %arg1[%c0_130, %c1_131, %c2_132, %c1_133, %c0_134] : memref<1x6x10x10x4xf32, #tpu.memory_space<vmem>>, vector<1x4x8x8x4xf32>
    %51 = vector.shape_cast %50 : vector<1x4x8x8x4xf32> to vector<4x8x8x4xf32>
    %c0_135 = arith.constant 0 : index
    %c0_136 = arith.constant 0 : index
    %c0_137 = arith.constant 0 : index
    %c64 = arith.constant 64 : index
    %52 = vector.load %arg4[%c0_135, %c0_136, %c0_137, %c64] : memref<4x8x8x128xf32, #tpu.memory_space<vmem>>, vector<4x8x8x4xf32>
    tpu.vector_store %arg4[%c0_135, %c0_136, %c0_137, %c64], %51 {strides = array<i32>} : memref<4x8x8x128xf32, #tpu.memory_space<vmem>>, vector<4x8x8x4xf32>,
    %c0_138 = arith.constant 0 : index
    %c1_139 = arith.constant 1 : index
    %c2_140 = arith.constant 2 : index
    %c2_141 = arith.constant 2 : index
    %c0_142 = arith.constant 0 : index
    %53 = vector.load %arg1[%c0_138, %c1_139, %c2_140, %c2_141, %c0_142] : memref<1x6x10x10x4xf32, #tpu.memory_space<vmem>>, vector<1x4x8x8x4xf32>
    %54 = vector.shape_cast %53 : vector<1x4x8x8x4xf32> to vector<4x8x8x4xf32>
    %c0_143 = arith.constant 0 : index
    %c0_144 = arith.constant 0 : index
    %c0_145 = arith.constant 0 : index
    %c68 = arith.constant 68 : index
    %55 = vector.load %arg4[%c0_143, %c0_144, %c0_145, %c68] : memref<4x8x8x128xf32, #tpu.memory_space<vmem>>, vector<4x8x8x4xf32>
    tpu.vector_store %arg4[%c0_143, %c0_144, %c0_145, %c68], %54 {strides = array<i32>} : memref<4x8x8x128xf32, #tpu.memory_space<vmem>>, vector<4x8x8x4xf32>,
    %c0_146 = arith.constant 0 : index
    %c2_147 = arith.constant 2 : index
    %c0_148 = arith.constant 0 : index
    %c0_149 = arith.constant 0 : index
    %c0_150 = arith.constant 0 : index
    %56 = vector.load %arg1[%c0_146, %c2_147, %c0_148, %c0_149, %c0_150] : memref<1x6x10x10x4xf32, #tpu.memory_space<vmem>>, vector<1x4x8x8x4xf32>
    %57 = vector.shape_cast %56 : vector<1x4x8x8x4xf32> to vector<4x8x8x4xf32>
    %c0_151 = arith.constant 0 : index
    %c0_152 = arith.constant 0 : index
    %c0_153 = arith.constant 0 : index
    %c72 = arith.constant 72 : index
    %58 = vector.load %arg4[%c0_151, %c0_152, %c0_153, %c72] : memref<4x8x8x128xf32, #tpu.memory_space<vmem>>, vector<4x8x8x4xf32>
    tpu.vector_store %arg4[%c0_151, %c0_152, %c0_153, %c72], %57 {strides = array<i32>} : memref<4x8x8x128xf32, #tpu.memory_space<vmem>>, vector<4x8x8x4xf32>,
    %c0_154 = arith.constant 0 : index
    %c2_155 = arith.constant 2 : index
    %c0_156 = arith.constant 0 : index
    %c1_157 = arith.constant 1 : index
    %c0_158 = arith.constant 0 : index
    %59 = vector.load %arg1[%c0_154, %c2_155, %c0_156, %c1_157, %c0_158] : memref<1x6x10x10x4xf32, #tpu.memory_space<vmem>>, vector<1x4x8x8x4xf32>
    %60 = vector.shape_cast %59 : vector<1x4x8x8x4xf32> to vector<4x8x8x4xf32>
    %c0_159 = arith.constant 0 : index
    %c0_160 = arith.constant 0 : index
    %c0_161 = arith.constant 0 : index
    %c76 = arith.constant 76 : index
    %61 = vector.load %arg4[%c0_159, %c0_160, %c0_161, %c76] : memref<4x8x8x128xf32, #tpu.memory_space<vmem>>, vector<4x8x8x4xf32>
    tpu.vector_store %arg4[%c0_159, %c0_160, %c0_161, %c76], %60 {strides = array<i32>} : memref<4x8x8x128xf32, #tpu.memory_space<vmem>>, vector<4x8x8x4xf32>,
    %c0_162 = arith.constant 0 : index
    %c2_163 = arith.constant 2 : index
    %c0_164 = arith.constant 0 : index
    %c2_165 = arith.constant 2 : index
    %c0_166 = arith.constant 0 : index
    %62 = vector.load %arg1[%c0_162, %c2_163, %c0_164, %c2_165, %c0_166] : memref<1x6x10x10x4xf32, #tpu.memory_space<vmem>>, vector<1x4x8x8x4xf32>
    %63 = vector.shape_cast %62 : vector<1x4x8x8x4xf32> to vector<4x8x8x4xf32>
    %c0_167 = arith.constant 0 : index
    %c0_168 = arith.constant 0 : index
    %c0_169 = arith.constant 0 : index
    %c80 = arith.constant 80 : index
    %64 = vector.load %arg4[%c0_167, %c0_168, %c0_169, %c80] : memref<4x8x8x128xf32, #tpu.memory_space<vmem>>, vector<4x8x8x4xf32>
    tpu.vector_store %arg4[%c0_167, %c0_168, %c0_169, %c80], %63 {strides = array<i32>} : memref<4x8x8x128xf32, #tpu.memory_space<vmem>>, vector<4x8x8x4xf32>,
    %c0_170 = arith.constant 0 : index
    %c2_171 = arith.constant 2 : index
    %c1_172 = arith.constant 1 : index
    %c0_173 = arith.constant 0 : index
    %c0_174 = arith.constant 0 : index
    %65 = vector.load %arg1[%c0_170, %c2_171, %c1_172, %c0_173, %c0_174] : memref<1x6x10x10x4xf32, #tpu.memory_space<vmem>>, vector<1x4x8x8x4xf32>
    %66 = vector.shape_cast %65 : vector<1x4x8x8x4xf32> to vector<4x8x8x4xf32>
    %c0_175 = arith.constant 0 : index
    %c0_176 = arith.constant 0 : index
    %c0_177 = arith.constant 0 : index
    %c84 = arith.constant 84 : index
    %67 = vector.load %arg4[%c0_175, %c0_176, %c0_177, %c84] : memref<4x8x8x128xf32, #tpu.memory_space<vmem>>, vector<4x8x8x4xf32>
    tpu.vector_store %arg4[%c0_175, %c0_176, %c0_177, %c84], %66 {strides = array<i32>} : memref<4x8x8x128xf32, #tpu.memory_space<vmem>>, vector<4x8x8x4xf32>,
    %c0_178 = arith.constant 0 : index
    %c2_179 = arith.constant 2 : index
    %c1_180 = arith.constant 1 : index
    %c1_181 = arith.constant 1 : index
    %c0_182 = arith.constant 0 : index
    %68 = vector.load %arg1[%c0_178, %c2_179, %c1_180, %c1_181, %c0_182] : memref<1x6x10x10x4xf32, #tpu.memory_space<vmem>>, vector<1x4x8x8x4xf32>
    %69 = vector.shape_cast %68 : vector<1x4x8x8x4xf32> to vector<4x8x8x4xf32>
    %c0_183 = arith.constant 0 : index
    %c0_184 = arith.constant 0 : index
    %c0_185 = arith.constant 0 : index
    %c88 = arith.constant 88 : index
    %70 = vector.load %arg4[%c0_183, %c0_184, %c0_185, %c88] : memref<4x8x8x128xf32, #tpu.memory_space<vmem>>, vector<4x8x8x4xf32>
    tpu.vector_store %arg4[%c0_183, %c0_184, %c0_185, %c88], %69 {strides = array<i32>} : memref<4x8x8x128xf32, #tpu.memory_space<vmem>>, vector<4x8x8x4xf32>,
    %c0_186 = arith.constant 0 : index
    %c2_187 = arith.constant 2 : index
    %c1_188 = arith.constant 1 : index
    %c2_189 = arith.constant 2 : index
    %c0_190 = arith.constant 0 : index
    %71 = vector.load %arg1[%c0_186, %c2_187, %c1_188, %c2_189, %c0_190] : memref<1x6x10x10x4xf32, #tpu.memory_space<vmem>>, vector<1x4x8x8x4xf32>
    %72 = vector.shape_cast %71 : vector<1x4x8x8x4xf32> to vector<4x8x8x4xf32>
    %c0_191 = arith.constant 0 : index
    %c0_192 = arith.constant 0 : index
    %c0_193 = arith.constant 0 : index
    %c92 = arith.constant 92 : index
    %73 = vector.load %arg4[%c0_191, %c0_192, %c0_193, %c92] : memref<4x8x8x128xf32, #tpu.memory_space<vmem>>, vector<4x8x8x4xf32>
    tpu.vector_store %arg4[%c0_191, %c0_192, %c0_193, %c92], %72 {strides = array<i32>} : memref<4x8x8x128xf32, #tpu.memory_space<vmem>>, vector<4x8x8x4xf32>,
    %c0_194 = arith.constant 0 : index
    %c2_195 = arith.constant 2 : index
    %c2_196 = arith.constant 2 : index
    %c0_197 = arith.constant 0 : index
    %c0_198 = arith.constant 0 : index
    %74 = vector.load %arg1[%c0_194, %c2_195, %c2_196, %c0_197, %c0_198] : memref<1x6x10x10x4xf32, #tpu.memory_space<vmem>>, vector<1x4x8x8x4xf32>
    %75 = vector.shape_cast %74 : vector<1x4x8x8x4xf32> to vector<4x8x8x4xf32>
    %c0_199 = arith.constant 0 : index
    %c0_200 = arith.constant 0 : index
    %c0_201 = arith.constant 0 : index
    %c96 = arith.constant 96 : index
    %76 = vector.load %arg4[%c0_199, %c0_200, %c0_201, %c96] : memref<4x8x8x128xf32, #tpu.memory_space<vmem>>, vector<4x8x8x4xf32>
    tpu.vector_store %arg4[%c0_199, %c0_200, %c0_201, %c96], %75 {strides = array<i32>} : memref<4x8x8x128xf32, #tpu.memory_space<vmem>>, vector<4x8x8x4xf32>,
    %c0_202 = arith.constant 0 : index
    %c2_203 = arith.constant 2 : index
    %c2_204 = arith.constant 2 : index
    %c1_205 = arith.constant 1 : index
    %c0_206 = arith.constant 0 : index
    %77 = vector.load %arg1[%c0_202, %c2_203, %c2_204, %c1_205, %c0_206] : memref<1x6x10x10x4xf32, #tpu.memory_space<vmem>>, vector<1x4x8x8x4xf32>
    %78 = vector.shape_cast %77 : vector<1x4x8x8x4xf32> to vector<4x8x8x4xf32>
    %c0_207 = arith.constant 0 : index
    %c0_208 = arith.constant 0 : index
    %c0_209 = arith.constant 0 : index
    %c100 = arith.constant 100 : index
    %79 = vector.load %arg4[%c0_207, %c0_208, %c0_209, %c100] : memref<4x8x8x128xf32, #tpu.memory_space<vmem>>, vector<4x8x8x4xf32>
    tpu.vector_store %arg4[%c0_207, %c0_208, %c0_209, %c100], %78 {strides = array<i32>} : memref<4x8x8x128xf32, #tpu.memory_space<vmem>>, vector<4x8x8x4xf32>,
    %c0_210 = arith.constant 0 : index
    %c2_211 = arith.constant 2 : index
    %c2_212 = arith.constant 2 : index
    %c2_213 = arith.constant 2 : index
    %c0_214 = arith.constant 0 : index
    %80 = vector.load %arg1[%c0_210, %c2_211, %c2_212, %c2_213, %c0_214] : memref<1x6x10x10x4xf32, #tpu.memory_space<vmem>>, vector<1x4x8x8x4xf32>
    %81 = vector.shape_cast %80 : vector<1x4x8x8x4xf32> to vector<4x8x8x4xf32>
    %c0_215 = arith.constant 0 : index
    %c0_216 = arith.constant 0 : index
    %c0_217 = arith.constant 0 : index
    %c104 = arith.constant 104 : index
    %82 = vector.load %arg4[%c0_215, %c0_216, %c0_217, %c104] : memref<4x8x8x128xf32, #tpu.memory_space<vmem>>, vector<4x8x8x4xf32>
    tpu.vector_store %arg4[%c0_215, %c0_216, %c0_217, %c104], %81 {strides = array<i32>} : memref<4x8x8x128xf32, #tpu.memory_space<vmem>>, vector<4x8x8x4xf32>,
    %c0_218 = arith.constant 0 : index
    %c0_219 = arith.constant 0 : index
    %c0_220 = arith.constant 0 : index
    %c0_221 = arith.constant 0 : index
    %83 = vector.load %arg4[%c0_218, %c0_219, %c0_220, %c0_221] : memref<4x8x8x128xf32, #tpu.memory_space<vmem>>, vector<4x8x8x128xf32>
    %84 = vector.shape_cast %83 : vector<4x8x8x128xf32> to vector<256x128xf32>
    %85 = arith.truncf %84 : vector<256x128xf32> to vector<256x128xbf16>
    %c0_222 = arith.constant 0 : index
    %c0_223 = arith.constant 0 : index
    %86 = vector.load %arg2[%c0_222, %c0_223] : memref<128x128xbf16, #tpu.memory_space<vmem>>, vector<128x128xbf16>
    %cst_224 = arith.constant dense<0.000000e+00> : vector<256x128xf32>
    %87 = tpu.matmul %85, %86, %cst_224 {dimension_numbers = #tpu.dot_dimension_numbers<[1], [0], [0], [1], [0, 0, 1, 1], [], []>} : vector<256x128xbf16>, vector<128x128xbf16>, vector<256x128xf32> -> vector<256x128xf32>
    %cst_225 = arith.constant 0.000000e+00 : f32
    %88 = vector.broadcast %cst_225 : f32 to vector<256x128xf32>
    %89 = arith.maximumf %87, %88 : vector<256x128xf32>
    %90 = arith.truncf %89 : vector<256x128xf32> to vector<256x128xbf16>
    %c0_226 = arith.constant 0 : index
    %c0_227 = arith.constant 0 : index
    %91 = vector.load %arg3[%c0_226, %c0_227] : memref<256x128xbf16, #tpu.memory_space<vmem>>, vector<256x128xbf16>
    tpu.vector_store %arg3[%c0_226, %c0_227], %90 {strides = array<i32>} : memref<256x128xbf16, #tpu.memory_space<vmem>>, vector<256x128xbf16>,
    return
  }
  func.func @transform_0(%arg0: i32) -> (i32, i32, i32, i32, i32) {
    %c0_i32 = arith.constant 0 : i32
    %c0_i32_0 = arith.constant 0 : i32
    %c0_i32_1 = arith.constant 0 : i32
    %c0_i32_2 = arith.constant 0 : i32
    %c0_i32_3 = arith.constant 0 : i32
    return %arg0, %c0_i32, %c0_i32_0, %c0_i32_1, %c0_i32_2 : i32, i32, i32, i32, i32
  }
  func.func @transform_1(%arg0: i32) -> (i32, i32) {
    %c0_i32 = arith.constant 0 : i32
    %c0_i32_0 = arith.constant 0 : i32
    %c0_i32_1 = arith.constant 0 : i32
    return %c0_i32, %c0_i32_0 : i32, i32
  }
  func.func @transform_2(%arg0: i32) -> (i32, i32) {
    %c0_i32 = arith.constant 0 : i32
    %c0_i32_0 = arith.constant 0 : i32
    return %arg0, %c0_i32 : i32, i32
  }
}

</mosaic_0001>

<llo_original>
// kernel: relaxed_octahedral_lift_conv3d.1
$region0: #{relaxed_octahedral_lift_conv3d.1}
  #allocation0 [shape = 'u32[]', space=smem, size = 0x4, offset = 0x4, fixed_abs, tag = 'smem constant byte address 0x4 - core index']
  #allocation1 [shape = 'u32[144,128]{1,0:T(1,128)}', space=vmem, size = 0x12000, scoped, tag = 'internal scratch']
  #allocation2 [shape = 'f32[4,8,8,128]{3,2,1,0:T(8,128)}', space=vmem, size = 0x20000, scoped, tag = 'scratch operand']
  %s0 = inlined_call_operand.vmem [shape: f32[4,6,10,10,4], index: 0, kind: input, shape index: {}]
  %s1 = inlined_call_operand.vmem [shape: bf16[128,128], index: 1, kind: input, shape index: {}]
  %s2 = inlined_call_operand.vmem [shape: bf16[1024,128], index: 2, kind: output, shape index: {}]
  %s3 = sld [smem:[#allocation0]]
  $region41: #{relaxed_octahedral_lift_conv3d.1} parent=0
    _
  %s5 = ssub.s32 1, %s3
  %s6 = scalar_select 0, %s5, %s3
  loop: start=0, step=1, limit=6
  $region2: #{relaxed_octahedral_lift_conv3d.1} parent=0 // loop_pre_header
    _
  $region3: #{relaxed_octahedral_lift_conv3d.1} parent=0 // loop_header
    %s8 = sphi 0, %s12
    %p9 = scmp.ge.s32.totalorder %s8, 6
    %s18 = sphi 0, %s20
    %s21 = sphi 0, %s18
    %s22 = sphi 0, %s21
    %s38 = sphi 0, %s22
    %s42 = sphi 0, %s42
    %s44 = sphi 0, %s42
    %s45 = sphi 0, %s44
    %s59 = sphi 0, %s45
    %s65 = sphi 0, %s67
    %s68 = sphi 0, %s65
    %s69 = sphi 0, %s68
    %s85 = sphi 0, %s69
  $region4: #{relaxed_octahedral_lift_conv3d.1} parent=0 // loop_header_branch
    %11 = sbr.rel (%p9) target = $region8
  $region5: #{relaxed_octahedral_lift_conv3d.1} parent=0 // loop_body
    %s13 = ssub.s32 %s8, 1
    %s14 = ssub.s32 %s8, 2
    %s15 = sadd.s32 %s8, 1
    %s16 = ssub.s32 %s8, %s15
    %p17 = scmp.eq.s32.totalorder %s16, 0
    %s19 = sadd.s32 %s18, 1
    %s20 = scalar_select %p17, %s18, %s19
    %p23 = pneg %p17
    %p24 = scmp.eq.s32.totalorder %s8, 3
    %p25 = por %p23, %p24
    %p26 = scmp.ne.s32.totalorder %s18, %s21
    %p27 = scmp.eq.s32.totalorder %s8, 0
    %p28 = por %p26, %p27
    %p29 = scmp.ne.s32.totalorder %s18, %s21
    %p30 = scmp.eq.s32.totalorder %s13, 3
    %p31 = por %p29, %p30
    %p32 = scmp.ne.s32.totalorder %s21, %s22
    %p33 = scmp.eq.s32.totalorder %s13, 0
    %p34 = por %p32, %p33
    %p35 = scmp.ne.s32.totalorder %s21, %s22
    %p36 = scmp.eq.s32.totalorder %s14, 3
    %p37 = por %p35, %p36
    %p39 = scmp.ne.s32.totalorder %s22, %s38
    %p40 = scmp.eq.s32.totalorder %s14, 0
    %p41 = por %p39, %p40
    %s43 = sadd.s32 %s42, 1
    %p46 = scmp.eq.s32.totalorder %s8, 3
    %p47 = scmp.ne.s32.totalorder %s42, %s44
    %p48 = scmp.eq.s32.totalorder %s8, 0
    %p49 = por %p47, %p48
    %p50 = scmp.ne.s32.totalorder %s42, %s44
    %p51 = scmp.eq.s32.totalorder %s13, 3
    %p52 = por %p50, %p51
    %p53 = scmp.ne.s32.totalorder %s44, %s45
    %p54 = scmp.eq.s32.totalorder %s13, 0
    %p55 = por %p53, %p54
    %p56 = scmp.ne.s32.totalorder %s44, %s45
    %p57 = scmp.eq.s32.totalorder %s14, 3
    %p58 = por %p56, %p57
    %p60 = scmp.ne.s32.totalorder %s45, %s59
    %p61 = scmp.eq.s32.totalorder %s14, 0
    %p62 = por %p60, %p61
    %s63 = ssub.s32 %s8, %s15
    %p64 = scmp.eq.s32.totalorder %s63, 0
    %s66 = sadd.s32 %s65, 1
    %s67 = scalar_select %p64, %s65, %s66
    %p70 = pneg %p64
    %p71 = scmp.eq.s32.totalorder %s8, 3
    %p72 = por %p70, %p71
    %p73 = scmp.ne.s32.totalorder %s65, %s68
    %p74 = scmp.eq.s32.totalorder %s8, 0
    %p75 = por %p73, %p74
    %p76 = scmp.ne.s32.totalorder %s65, %s68
    %p77 = scmp.eq.s32.totalorder %s13, 3
    %p78 = por %p76, %p77
    %p79 = scmp.ne.s32.totalorder %s68, %s69
    %p80 = scmp.eq.s32.totalorder %s13, 0
    %p81 = por %p79, %p80
    %p82 = scmp.ne.s32.totalorder %s68, %s69
    %p83 = scmp.eq.s32.totalorder %s14, 3
    %p84 = por %p82, %p83
    %p86 = scmp.ne.s32.totalorder %s69, %s85
    %p87 = scmp.eq.s32.totalorder %s14, 0
    %p88 = por %p86, %p87
    %p89 = scmp.le.s32.totalorder 1, %s8
    %p90 = scmp.lt.s32.totalorder %s8, 5
    %p91 = pnand %p89, %p90
    %p92 = pneg %p91
    // Predicated region
    $region9: #{relaxed_octahedral_lift_conv3d.1} parent=5 // pred_check
      _
    $region10: #{relaxed_octahedral_lift_conv3d.1} parent=5 // pred_check_branch
      %94 = sbr.rel (%p91) target = $region12
    $region11: #{relaxed_octahedral_lift_conv3d.1} parent=5 // pred_region
      %s95 = ssub.s32 %s8, 1
      // Predicated region
      $region13: #{relaxed_octahedral_lift_conv3d.1} parent=11 // pred_check
        %p96 = pneg %p55
      $region14: #{relaxed_octahedral_lift_conv3d.1} parent=11 // pred_check_branch
        %98 = sbr.rel (%p96) target = $region16
      $region15: #{relaxed_octahedral_lift_conv3d.1} parent=11 // pred_region
        _
      $region16: #{relaxed_octahedral_lift_conv3d.1} parent=11 // pred_fallthru
        _
    $region12: #{relaxed_octahedral_lift_conv3d.1} parent=5 // pred_fallthru
      _
    %p99 = scmp.lt.s32.totalorder %s8, 4
    // Predicated region
    $region17: #{relaxed_octahedral_lift_conv3d.1} parent=5 // pred_check
      %p100 = pneg %p99
    $region18: #{relaxed_octahedral_lift_conv3d.1} parent=5 // pred_check_branch
      %102 = sbr.rel (%p100) target = $region20
    $region19: #{relaxed_octahedral_lift_conv3d.1} parent=5 // pred_region
      // Predicated region
      $region21: #{relaxed_octahedral_lift_conv3d.1} parent=19 // pred_check
        %p103 = pneg %p28
      $region22: #{relaxed_octahedral_lift_conv3d.1} parent=19 // pred_check_branch
        %105 = sbr.rel (%p103) target = $region24
      $region23: #{relaxed_octahedral_lift_conv3d.1} parent=19 // pred_region
        %p106 = scmp.lt.s32.totalorder %s8, 3
        %s107 = scalar_select %p106, %s8, 3
        %s108 = smul.addr %s107, 120
        %s109 = smul.addr %s108, 8
        %s110 = scalar_lea.vmem %s0, %s109
      $region24: #{relaxed_octahedral_lift_conv3d.1} parent=19 // pred_fallthru
        _
    $region20: #{relaxed_octahedral_lift_conv3d.1} parent=5 // pred_fallthru
      _
    %p111 = scmp.le.s32.totalorder 1, %s8
    %p112 = scmp.lt.s32.totalorder %s8, 5
    %p113 = pnand %p111, %p112
    %p114 = pneg %p113
    // Predicated region
    $region25: #{relaxed_octahedral_lift_conv3d.1} parent=5 // pred_check
      _
    $region26: #{relaxed_octahedral_lift_conv3d.1} parent=5 // pred_check_branch
      %116 = sbr.rel (%p113) target = $region28
    $region27: #{relaxed_octahedral_lift_conv3d.1} parent=5 // pred_region
      %s117 = ssub.s32 %s8, 1
      %p118 = scmp.lt.s32.totalorder %s13, 3
      %s119 = scalar_select %p118, %s13, 3
      %s120 = smul.addr %s119, 120
      %s121 = smul.addr %s120, 8
      %s122 = scalar_lea.vmem %s0, %s121
      %p123 = pneg %p34
      %p124 = pneg %p31
      %p125 = pneg %p55
      %p126 = pneg %p52
      %p127 = pneg %p81
      %p128 = pneg %p78
      %s129 = smul.u32 32, %s13
      %p130 = scmp.lt.s32.totalorder %s129, 127
      %s131 = scalar_select %p130, %s129, 127
      %s132 = smul.addr %s131, 4
      %s133 = scalar_lea.vmem %s2, %s132
      %p134 = scmp.lt.s32.totalorder %s13, 3
      %s135 = scalar_select %p134, %s13, 3
      %s136 = smul.addr %s135, 120
      %s137 = smul.addr %s136, 8
      %s138 = scalar_lea.vmem %s0, %s137
      %s139 = smul.u32 32, %s13
      %p140 = scmp.lt.s32.totalorder %s139, 127
      %s141 = scalar_select %p140, %s139, 127
      %s142 = smul.addr %s141, 4
      %s143 = scalar_lea.vmem %s2, %s142
      %s144 = smul.u32 32, %s13
      %146 = vst [vmem:[#allocation2] sm:$0xff] 0.0
      %147 = vst [vmem:[#allocation2 + $0x8] sm:$0xff] 0.0
      %148 = vst [vmem:[#allocation2 + $0x10] sm:$0xff] 0.0
      %149 = vst [vmem:[#allocation2 + $0x18] sm:$0xff] 0.0
      %150 = vst [vmem:[#allocation2 + $0x20] sm:$0xff] 0.0
      %151 = vst [vmem:[#allocation2 + $0x28] sm:$0xff] 0.0
      %152 = vst [vmem:[#allocation2 + $0x30] sm:$0xff] 0.0
      %153 = vst [vmem:[#allocation2 + $0x38] sm:$0xff] 0.0
      %154 = vst [vmem:[#allocation2 + $0x40] sm:$0xff] 0.0
      %155 = vst [vmem:[#allocation2 + $0x48] sm:$0xff] 0.0
      %156 = vst [vmem:[#allocation2 + $0x50] sm:$0xff] 0.0
      %157 = vst [vmem:[#allocation2 + $0x58] sm:$0xff] 0.0
      %158 = vst [vmem:[#allocation2 + $0x60] sm:$0xff] 0.0
      %159 = vst [vmem:[#allocation2 + $0x68] sm:$0xff] 0.0
      %160 = vst [vmem:[#allocation2 + $0x70] sm:$0xff] 0.0
      %161 = vst [vmem:[#allocation2 + $0x78] sm:$0xff] 0.0
      %162 = vst [vmem:[#allocation2 + $0x80] sm:$0xff] 0.0
      %163 = vst [vmem:[#allocation2 + $0x88] sm:$0xff] 0.0
      %164 = vst [vmem:[#allocation2 + $0x90] sm:$0xff] 0.0
      %165 = vst [vmem:[#allocation2 + $0x98] sm:$0xff] 0.0
      %166 = vst [vmem:[#allocation2 + $0xa0] sm:$0xff] 0.0
      %167 = vst [vmem:[#allocation2 + $0xa8] sm:$0xff] 0.0
      %168 = vst [vmem:[#allocation2 + $0xb0] sm:$0xff] 0.0
      %169 = vst [vmem:[#allocation2 + $0xb8] sm:$0xff] 0.0
      %170 = vst [vmem:[#allocation2 + $0xc0] sm:$0xff] 0.0
      %171 = vst [vmem:[#allocation2 + $0xc8] sm:$0xff] 0.0
      %172 = vst [vmem:[#allocation2 + $0xd0] sm:$0xff] 0.0
      %173 = vst [vmem:[#allocation2 + $0xd8] sm:$0xff] 0.0
      %174 = vst [vmem:[#allocation2 + $0xe0] sm:$0xff] 0.0
      %175 = vst [vmem:[#allocation2 + $0xe8] sm:$0xff] 0.0
      %176 = vst [vmem:[#allocation2 + $0xf0] sm:$0xff] 0.0
      %177 = vst [vmem:[#allocation2 + $0xf8] sm:$0xff] 0.0
      %v178 = vld [vmem:[%s138] sm:$0xff]
      %v179 = vld [vmem:[%s138 + $0x10] sm:$0xff]
      %v180 = vld [vmem:[%s138 + $0x20] sm:$0xff]
      %v181 = vld [vmem:[%s138 + $0x30] sm:$0xff]
      %v182 = vld [vmem:[%s138 + $0x40] sm:$0xff]
      %v183 = vld [vmem:[%s138 + $0x50] sm:$0xff]
      %v184 = vld [vmem:[%s138 + $0x60] sm:$0xff]
      %v185 = vld [vmem:[%s138 + $0x70] sm:$0xff]
      %v186 = vld [vmem:[%s138 + $0xa0] sm:$0xff]
      %v187 = vld [vmem:[%s138 + $0xb0] sm:$0xff]
      %v188 = vld [vmem:[%s138 + $0xc0] sm:$0xff]
      %v189 = vld [vmem:[%s138 + $0xd0] sm:$0xff]
      %v190 = vld [vmem:[%s138 + $0xe0] sm:$0xff]
      %v191 = vld [vmem:[%s138 + $0xf0] sm:$0xff]
      %v192 = vld [vmem:[%s138 + $0x100] sm:$0xff]
      %v193 = vld [vmem:[%s138 + $0x110] sm:$0xff]
      %v194 = vld [vmem:[%s138 + $0x140] sm:$0xff]
      %v195 = vld [vmem:[%s138 + $0x150] sm:$0xff]
      %v196 = vld [vmem:[%s138 + $0x160] sm:$0xff]
      %v197 = vld [vmem:[%s138 + $0x170] sm:$0xff]
      %v198 = vld [vmem:[%s138 + $0x180] sm:$0xff]
      %v199 = vld [vmem:[%s138 + $0x190] sm:$0xff]
      %v200 = vld [vmem:[%s138 + $0x1a0] sm:$0xff]
      %v201 = vld [vmem:[%s138 + $0x1b0] sm:$0xff]
      %v202 = vld [vmem:[%s138 + $0x1e0] sm:$0xff]
      %v203 = vld [vmem:[%s138 + $0x1f0] sm:$0xff]
      %v204 = vld [vmem:[%s138 + $0x200] sm:$0xff]
      %v205 = vld [vmem:[%s138 + $0x210] sm:$0xff]
      %v206 = vld [vmem:[%s138 + $0x220] sm:$0xff]
      %v207 = vld [vmem:[%s138 + $0x230] sm:$0xff]
      %v208 = vld [vmem:[%s138 + $0x240] sm:$0xff]
      %v209 = vld [vmem:[%s138 + $0x250] sm:$0xff]
      %vm210 = vcmask 31744
      %211 = vst.msk [vmem:[#allocation2] sm:$0xff] %vm210, %v178
      %212 = vst.msk [vmem:[#allocation2 + $0x8] sm:$0xff] %vm210, %v179
      %213 = vst.msk [vmem:[#allocation2 + $0x10] sm:$0xff] %vm210, %v180
      %214 = vst.msk [vmem:[#allocation2 + $0x18] sm:$0xff] %vm210, %v181
      %215 = vst.msk [vmem:[#allocation2 + $0x20] sm:$0xff] %vm210, %v182
      %216 = vst.msk [vmem:[#allocation2 + $0x28] sm:$0xff] %vm210, %v183
      %217 = vst.msk [vmem:[#allocation2 + $0x30] sm:$0xff] %vm210, %v184
      %218 = vst.msk [vmem:[#allocation2 + $0x38] sm:$0xff] %vm210, %v185
      %219 = vst.msk [vmem:[#allocation2 + $0x40] sm:$0xff] %vm210, %v186
      %220 = vst.msk [vmem:[#allocation2 + $0x48] sm:$0xff] %vm210, %v187
      %221 = vst.msk [vmem:[#allocation2 + $0x50] sm:$0xff] %vm210, %v188
      %222 = vst.msk [vmem:[#allocation2 + $0x58] sm:$0xff] %vm210, %v189
      %223 = vst.msk [vmem:[#allocation2 + $0x60] sm:$0xff] %vm210, %v190
      %224 = vst.msk [vmem:[#allocation2 + $0x68] sm:$0xff] %vm210, %v191
      %225 = vst.msk [vmem:[#allocation2 + $0x70] sm:$0xff] %vm210, %v192
      %226 = vst.msk [vmem:[#allocation2 + $0x78] sm:$0xff] %vm210, %v193
      %227 = vst.msk [vmem:[#allocation2 + $0x80] sm:$0xff] %vm210, %v194
      %228 = vst.msk [vmem:[#allocation2 + $0x88] sm:$0xff] %vm210, %v195
      %229 = vst.msk [vmem:[#allocation2 + $0x90] sm:$0xff] %vm210, %v196
      %230 = vst.msk [vmem:[#allocation2 + $0x98] sm:$0xff] %vm210, %v197
      %231 = vst.msk [vmem:[#allocation2 + $0xa0] sm:$0xff] %vm210, %v198
      %232 = vst.msk [vmem:[#allocation2 + $0xa8] sm:$0xff] %vm210, %v199
      %233 = vst.msk [vmem:[#allocation2 + $0xb0] sm:$0xff] %vm210, %v200
      %234 = vst.msk [vmem:[#allocation2 + $0xb8] sm:$0xff] %vm210, %v201
      %235 = vst.msk [vmem:[#allocation2 + $0xc0] sm:$0xff] %vm210, %v202
      %236 = vst.msk [vmem:[#allocation2 + $0xc8] sm:$0xff] %vm210, %v203
      %237 = vst.msk [vmem:[#allocation2 + $0xd0] sm:$0xff] %vm210, %v204
      %238 = vst.msk [vmem:[#allocation2 + $0xd8] sm:$0xff] %vm210, %v205
      %239 = vst.msk [vmem:[#allocation2 + $0xe0] sm:$0xff] %vm210, %v206
      %240 = vst.msk [vmem:[#allocation2 + $0xe8] sm:$0xff] %vm210, %v207
      %241 = vst.msk [vmem:[#allocation2 + $0xf0] sm:$0xff] %vm210, %v208
      %242 = vst.msk [vmem:[#allocation2 + $0xf8] sm:$0xff] %vm210, %v209
      %v243 = vld [vmem:[%s138 + $0x1] sm:$0xff]
      %v244 = vld [vmem:[%s138 + $0x11] sm:$0xff]
      %v245 = vld [vmem:[%s138 + $0x21] sm:$0xff]
      %v246 = vld [vmem:[%s138 + $0x31] sm:$0xff]
      %v247 = vld [vmem:[%s138 + $0x41] sm:$0xff]
      %v248 = vld [vmem:[%s138 + $0x51] sm:$0xff]
      %v249 = vld [vmem:[%s138 + $0x61] sm:$0xff]
      %v250 = vld [vmem:[%s138 + $0x71] sm:$0xff]
      %v251 = vld [vmem:[%s138 + $0xa1] sm:$0xff]
      %v252 = vld [vmem:[%s138 + $0xb1] sm:$0xff]
      %v253 = vld [vmem:[%s138 + $0xc1] sm:$0xff]
      %v254 = vld [vmem:[%s138 + $0xd1] sm:$0xff]
      %v255 = vld [vmem:[%s138 + $0xe1] sm:$0xff]
      %v256 = vld [vmem:[%s138 + $0xf1] sm:$0xff]
      %v257 = vld [vmem:[%s138 + $0x101] sm:$0xff]
      %v258 = vld [vmem:[%s138 + $0x111] sm:$0xff]
      %v259 = vld [vmem:[%s138 + $0x141] sm:$0xff]
      %v260 = vld [vmem:[%s138 + $0x151] sm:$0xff]
      %v261 = vld [vmem:[%s138 + $0x161] sm:$0xff]
      %v262 = vld [vmem:[%s138 + $0x171] sm:$0xff]
      %v263 = vld [vmem:[%s138 + $0x181] sm:$0xff]
      %v264 = vld [vmem:[%s138 + $0x191] sm:$0xff]
      %v265 = vld [vmem:[%s138 + $0x1a1] sm:$0xff]
      %v266 = vld [vmem:[%s138 + $0x1b1] sm:$0xff]
      %v267 = vld [vmem:[%s138 + $0x1e1] sm:$0xff]
      %v268 = vld [vmem:[%s138 + $0x1f1] sm:$0xff]
      %v269 = vld [vmem:[%s138 + $0x201] sm:$0xff]
      %v270 = vld [vmem:[%s138 + $0x211] sm:$0xff]
      %v271 = vld [vmem:[%s138 + $0x221] sm:$0xff]
      %v272 = vld [vmem:[%s138 + $0x231] sm:$0xff]
      %v273 = vld [vmem:[%s138 + $0x241] sm:$0xff]
      %v274 = vld [vmem:[%s138 + $0x251] sm:$0xff]
      %307 = vrot.lane.b32.xlu0 %v243, 4
      %v308 = vpop.permute.xlu0 %307
      %309 = vrot.lane.b32.xlu0 %v244, 4
      %v310 = vpop.permute.xlu0 %309
      %311 = vrot.lane.b32.xlu0 %v245, 4
      %v312 = vpop.permute.xlu0 %311
      %313 = vrot.lane.b32.xlu0 %v246, 4
      %v314 = vpop.permute.xlu0 %313
      %315 = vrot.lane.b32.xlu0 %v247, 4
      %v316 = vpop.permute.xlu0 %315
      %317 = vrot.lane.b32.xlu0 %v248, 4
      %v318 = vpop.permute.xlu0 %317
      %319 = vrot.lane.b32.xlu0 %v249, 4
      %v320 = vpop.permute.xlu0 %319
      %321 = vrot.lane.b32.xlu0 %v250, 4
      %v322 = vpop.permute.xlu0 %321
      %323 = vrot.lane.b32.xlu0 %v251, 4
      %v324 = vpop.permute.xlu0 %323
      %325 = vrot.lane.b32.xlu0 %v252, 4
      %v326 = vpop.permute.xlu0 %325
      %327 = vrot.lane.b32.xlu0 %v253, 4
      %v328 = vpop.permute.xlu0 %327
      %329 = vrot.lane.b32.xlu0 %v254, 4
      %v330 = vpop.permute.xlu0 %329
      %331 = vrot.lane.b32.xlu0 %v255, 4
      %v332 = vpop.permute.xlu0 %331
      %333 = vrot.lane.b32.xlu0 %v256, 4
      %v334 = vpop.permute.xlu0 %333
      %335 = vrot.lane.b32.xlu0 %v257, 4
      %v336 = vpop.permute.xlu0 %335
      %337 = vrot.lane.b32.xlu0 %v258, 4
      %v338 = vpop.permute.xlu0 %337
      %339 = vrot.lane.b32.xlu0 %v259, 4
      %v340 = vpop.permute.xlu0 %339
      %341 = vrot.lane.b32.xlu0 %v260, 4
      %v342 = vpop.permute.xlu0 %341
      %343 = vrot.lane.b32.xlu0 %v261, 4
      %v344 = vpop.permute.xlu0 %343
      %345 = vrot.lane.b32.xlu0 %v262, 4
      %v346 = vpop.permute.xlu0 %345
      %347 = vrot.lane.b32.xlu0 %v263, 4
      %v348 = vpop.permute.xlu0 %347
      %349 = vrot.lane.b32.xlu0 %v264, 4
      %v350 = vpop.permute.xlu0 %349
      %351 = vrot.lane.b32.xlu0 %v265, 4
      %v352 = vpop.permute.xlu0 %351
      %353 = vrot.lane.b32.xlu0 %v266, 4
      %v354 = vpop.permute.xlu0 %353
      %355 = vrot.lane.b32.xlu0 %v267, 4
      %v356 = vpop.permute.xlu0 %355
      %357 = vrot.lane.b32.xlu0 %v268, 4
      %v358 = vpop.permute.xlu0 %357
      %359 = vrot.lane.b32.xlu0 %v269, 4
      %v360 = vpop.permute.xlu0 %359
      %361 = vrot.lane.b32.xlu0 %v270, 4
      %v362 = vpop.permute.xlu0 %361
      %363 = vrot.lane.b32.xlu0 %v271, 4
      %v364 = vpop.permute.xlu0 %363
      %365 = vrot.lane.b32.xlu0 %v272, 4
      %v366 = vpop.permute.xlu0 %365
      %367 = vrot.lane.b32.xlu0 %v273, 4
      %v368 = vpop.permute.xlu0 %367
      %369 = vrot.lane.b32.xlu0 %v274, 4
      %v370 = vpop.permute.xlu0 %369
      %vm403 = vcmask 64544
      %404 = vst.msk [vmem:[#allocation2] sm:$0xff] %vm403, %v308
      %405 = vst.msk [vmem:[#allocation2 + $0x8] sm:$0xff] %vm403, %v310
      %406 = vst.msk [vmem:[#allocation2 + $0x10] sm:$0xff] %vm403, %v312
      %407 = vst.msk [vmem:[#allocation2 + $0x18] sm:$0xff] %vm403, %v314
      %408 = vst.msk [vmem:[#allocation2 + $0x20] sm:$0xff] %vm403, %v316
      %409 = vst.msk [vmem:[#allocation2 + $0x28] sm:$0xff] %vm403, %v318
      %410 = vst.msk [vmem:[#allocation2 + $0x30] sm:$0xff] %vm403, %v320
      %411 = vst.msk [vmem:[#allocation2 + $0x38] sm:$0xff] %vm403, %v322
      %412 = vst.msk [vmem:[#allocation2 + $0x40] sm:$0xff] %vm403, %v324
      %413 = vst.msk [vmem:[#allocation2 + $0x48] sm:$0xff] %vm403, %v326
      %414 = vst.msk [vmem:[#allocation2 + $0x50] sm:$0xff] %vm403, %v328
      %415 = vst.msk [vmem:[#allocation2 + $0x58] sm:$0xff] %vm403, %v330
      %416 = vst.msk [vmem:[#allocation2 + $0x60] sm:$0xff] %vm403, %v332
      %417 = vst.msk [vmem:[#allocation2 + $0x68] sm:$0xff] %vm403, %v334
      %418 = vst.msk [vmem:[#allocation2 + $0x70] sm:$0xff] %vm403, %v336
      %419 = vst.msk [vmem:[#allocation2 + $0x78] sm:$0xff] %vm403, %v338
      %420 = vst.msk [vmem:[#allocation2 + $0x80] sm:$0xff] %vm403, %v340
      %421 = vst.msk [vmem:[#allocation2 + $0x88] sm:$0xff] %vm403, %v342
      %422 = vst.msk [vmem:[#allocation2 + $0x90] sm:$0xff] %vm403, %v344
      %423 = vst.msk [vmem:[#allocation2 + $0x98] sm:$0xff] %vm403, %v346
      %424 = vst.msk [vmem:[#allocation2 + $0xa0] sm:$0xff] %vm403, %v348
      %425 = vst.msk [vmem:[#allocation2 + $0xa8] sm:$0xff] %vm403, %v350
      %426 = vst.msk [vmem:[#allocation2 + $0xb0] sm:$0xff] %vm403, %v352
      %427 = vst.msk [vmem:[#allocation2 + $0xb8] sm:$0xff] %vm403, %v354
      %428 = vst.msk [vmem:[#allocation2 + $0xc0] sm:$0xff] %vm403, %v356
      %429 = vst.msk [vmem:[#allocation2 + $0xc8] sm:$0xff] %vm403, %v358
      %430 = vst.msk [vmem:[#allocation2 + $0xd0] sm:$0xff] %vm403, %v360
      %431 = vst.msk [vmem:[#allocation2 + $0xd8] sm:$0xff] %vm403, %v362
      %432 = vst.msk [vmem:[#allocation2 + $0xe0] sm:$0xff] %vm403, %v364
      %433 = vst.msk [vmem:[#allocation2 + $0xe8] sm:$0xff] %vm403, %v366
      %434 = vst.msk [vmem:[#allocation2 + $0xf0] sm:$0xff] %vm403, %v368
      %435 = vst.msk [vmem:[#allocation2 + $0xf8] sm:$0xff] %vm403, %v370
      %v436 = vld [vmem:[%s138 + $0x2] sm:$0xff]
      %v437 = vld [vmem:[%s138 + $0x12] sm:$0xff]
      %v438 = vld [vmem:[%s138 + $0x22] sm:$0xff]
      %v439 = vld [vmem:[%s138 + $0x32] sm:$0xff]
      %v440 = vld [vmem:[%s138 + $0x42] sm:$0xff]
      %v441 = vld [vmem:[%s138 + $0x52] sm:$0xff]
      %v442 = vld [vmem:[%s138 + $0x62] sm:$0xff]
      %v443 = vld [vmem:[%s138 + $0x72] sm:$0xff]
      %v444 = vld [vmem:[%s138 + $0xa2] sm:$0xff]
      %v445 = vld [vmem:[%s138 + $0xb2] sm:$0xff]
      %v446 = vld [vmem:[%s138 + $0xc2] sm:$0xff]
      %v447 = vld [vmem:[%s138 + $0xd2] sm:$0xff]
      %v448 = vld [vmem:[%s138 + $0xe2] sm:$0xff]
      %v449 = vld [vmem:[%s138 + $0xf2] sm:$0xff]
      %v450 = vld [vmem:[%s138 + $0x102] sm:$0xff]
      %v451 = vld [vmem:[%s138 + $0x112] sm:$0xff]
      %v452 = vld [vmem:[%s138 + $0x142] sm:$0xff]
      %v453 = vld [vmem:[%s138 + $0x152] sm:$0xff]
      %v454 = vld [vmem:[%s138 + $0x162] sm:$0xff]
      %v455 = vld [vmem:[%s138 + $0x172] sm:$0xff]
      %v456 = vld [vmem:[%s138 + $0x182] sm:$0xff]
      %v457 = vld [vmem:[%s138 + $0x192] sm:$0xff]
      %v458 = vld [vmem:[%s138 + $0x1a2] sm:$0xff]
      %v459 = vld [vmem:[%s138 + $0x1b2] sm:$0xff]
      %v460 = vld [vmem:[%s138 + $0x1e2] sm:$0xff]
      %v461 = vld [vmem:[%s138 + $0x1f2] sm:$0xff]
      %v462 = vld [vmem:[%s138 + $0x202] sm:$0xff]
      %v463 = vld [vmem:[%s138 + $0x212] sm:$0xff]
      %v464 = vld [vmem:[%s138 + $0x222] sm:$0xff]
      %v465 = vld [vmem:[%s138 + $0x232] sm:$0xff]
      %v466 = vld [vmem:[%s138 + $0x242] sm:$0xff]
      %v467 = vld [vmem:[%s138 + $0x252] sm:$0xff]
      %500 = vrot.lane.b32.xlu0 %v436, 8
      %v501 = vpop.permute.xlu0 %500
      %502 = vrot.lane.b32.xlu0 %v437, 8
      %v503 = vpop.permute.xlu0 %502
      %504 = vrot.lane.b32.xlu0 %v438, 8
      %v505 = vpop.permute.xlu0 %504
      %506 = vrot.lane.b32.xlu0 %v439, 8
      %v507 = vpop.permute.xlu0 %506
      %508 = vrot.lane.b32.xlu0 %v440, 8
      %v509 = vpop.permute.xlu0 %508
      %510 = vrot.lane.b32.xlu0 %v441, 8
      %v511 = vpop.permute.xlu0 %510
      %512 = vrot.lane.b32.xlu0 %v442, 8
      %v513 = vpop.permute.xlu0 %512
      %514 = vrot.lane.b32.xlu0 %v443, 8
      %v515 = vpop.permute.xlu0 %514
      %516 = vrot.lane.b32.xlu0 %v444, 8
      %v517 = vpop.permute.xlu0 %516
      %518 = vrot.lane.b32.xlu0 %v445, 8
      %v519 = vpop.permute.xlu0 %518
      %520 = vrot.lane.b32.xlu0 %v446, 8
      %v521 = vpop.permute.xlu0 %520
      %522 = vrot.lane.b32.xlu0 %v447, 8
      %v523 = vpop.permute.xlu0 %522
      %524 = vrot.lane.b32.xlu0 %v448, 8
      %v525 = vpop.permute.xlu0 %524
      %526 = vrot.lane.b32.xlu0 %v449, 8
      %v527 = vpop.permute.xlu0 %526
      %528 = vrot.lane.b32.xlu0 %v450, 8
      %v529 = vpop.permute.xlu0 %528
      %530 = vrot.lane.b32.xlu0 %v451, 8
      %v531 = vpop.permute.xlu0 %530
      %532 = vrot.lane.b32.xlu0 %v452, 8
      %v533 = vpop.permute.xlu0 %532
      %534 = vrot.lane.b32.xlu0 %v453, 8
      %v535 = vpop.permute.xlu0 %534
      %536 = vrot.lane.b32.xlu0 %v454, 8
      %v537 = vpop.permute.xlu0 %536
      %538 = vrot.lane.b32.xlu0 %v455, 8
      %v539 = vpop.permute.xlu0 %538
      %540 = vrot.lane.b32.xlu0 %v456, 8
      %v541 = vpop.permute.xlu0 %540
      %542 = vrot.lane.b32.xlu0 %v457, 8
      %v543 = vpop.permute.xlu0 %542
      %544 = vrot.lane.b32.xlu0 %v458, 8
      %v545 = vpop.permute.xlu0 %544
      %546 = vrot.lane.b32.xlu0 %v459, 8
      %v547 = vpop.permute.xlu0 %546
      %548 = vrot.lane.b32.xlu0 %v460, 8
      %v549 = vpop.permute.xlu0 %548
      %550 = vrot.lane.b32.xlu0 %v461, 8
      %v551 = vpop.permute.xlu0 %550
      %552 = vrot.lane.b32.xlu0 %v462, 8
      %v553 = vpop.permute.xlu0 %552
      %554 = vrot.lane.b32.xlu0 %v463, 8
      %v555 = vpop.permute.xlu0 %554
      %556 = vrot.lane.b32.xlu0 %v464, 8
      %v557 = vpop.permute.xlu0 %556
      %558 = vrot.lane.b32.xlu0 %v465, 8
      %v559 = vpop.permute.xlu0 %558
      %560 = vrot.lane.b32.xlu0 %v466, 8
      %v561 = vpop.permute.xlu0 %560
      %562 = vrot.lane.b32.xlu0 %v467, 8
      %v563 = vpop.permute.xlu0 %562
      %vm596 = vcmask 97344
      %597 = vst.msk [vmem:[#allocation2] sm:$0xff] %vm596, %v501
      %598 = vst.msk [vmem:[#allocation2 + $0x8] sm:$0xff] %vm596, %v503
      %599 = vst.msk [vmem:[#allocation2 + $0x10] sm:$0xff] %vm596, %v505
      %600 = vst.msk [vmem:[#allocation2 + $0x18] sm:$0xff] %vm596, %v507
      %601 = vst.msk [vmem:[#allocation2 + $0x20] sm:$0xff] %vm596, %v509
      %602 = vst.msk [vmem:[#allocation2 + $0x28] sm:$0xff] %vm596, %v511
      %603 = vst.msk [vmem:[#allocation2 + $0x30] sm:$0xff] %vm596, %v513
      %604 = vst.msk [vmem:[#allocation2 + $0x38] sm:$0xff] %vm596, %v515
      %605 = vst.msk [vmem:[#allocation2 + $0x40] sm:$0xff] %vm596, %v517
      %606 = vst.msk [vmem:[#allocation2 + $0x48] sm:$0xff] %vm596, %v519
      %607 = vst.msk [vmem:[#allocation2 + $0x50] sm:$0xff] %vm596, %v521
      %608 = vst.msk [vmem:[#allocation2 + $0x58] sm:$0xff] %vm596, %v523
      %609 = vst.msk [vmem:[#allocation2 + $0x60] sm:$0xff] %vm596, %v525
      %610 = vst.msk [vmem:[#allocation2 + $0x68] sm:$0xff] %vm596, %v527
      %611 = vst.msk [vmem:[#allocation2 + $0x70] sm:$0xff] %vm596, %v529
      %612 = vst.msk [vmem:[#allocation2 + $0x78] sm:$0xff] %vm596, %v531
      %613 = vst.msk [vmem:[#allocation2 + $0x80] sm:$0xff] %vm596, %v533
      %614 = vst.msk [vmem:[#allocation2 + $0x88] sm:$0xff] %vm596, %v535
      %615 = vst.msk [vmem:[#allocation2 + $0x90] sm:$0xff] %vm596, %v537
      %616 = vst.msk [vmem:[#allocation2 + $0x98] sm:$0xff] %vm596, %v539
      %617 = vst.msk [vmem:[#allocation2 + $0xa0] sm:$0xff] %vm596, %v541
      %618 = vst.msk [vmem:[#allocation2 + $0xa8] sm:$0xff] %vm596, %v543
      %619 = vst.msk [vmem:[#allocation2 + $0xb0] sm:$0xff] %vm596, %v545
      %620 = vst.msk [vmem:[#allocation2 + $0xb8] sm:$0xff] %vm596, %v547
      %621 = vst.msk [vmem:[#allocation2 + $0xc0] sm:$0xff] %vm596, %v549
      %622 = vst.msk [vmem:[#allocation2 + $0xc8] sm:$0xff] %vm596, %v551
      %623 = vst.msk [vmem:[#allocation2 + $0xd0] sm:$0xff] %vm596, %v553
      %624 = vst.msk [vmem:[#allocation2 + $0xd8] sm:$0xff] %vm596, %v555
      %625 = vst.msk [vmem:[#allocation2 + $0xe0] sm:$0xff] %vm596, %v557
      %626 = vst.msk [vmem:[#allocation2 + $0xe8] sm:$0xff] %vm596, %v559
      %627 = vst.msk [vmem:[#allocation2 + $0xf0] sm:$0xff] %vm596, %v561
      %628 = vst.msk [vmem:[#allocation2 + $0xf8] sm:$0xff] %vm596, %v563
      %s629 = scalar_lea.vmem %s138, 16
      %v630 = vld [vmem:[%s629] sm:$0xff]
      %v631 = vld [vmem:[%s629 + $0x10] sm:$0xff]
      %v632 = vld [vmem:[%s629 + $0x20] sm:$0xff]
      %v633 = vld [vmem:[%s629 + $0x30] sm:$0xff]
      %v634 = vld [vmem:[%s629 + $0x40] sm:$0xff]
      %v635 = vld [vmem:[%s629 + $0x50] sm:$0xff]
      %v636 = vld [vmem:[%s629 + $0x60] sm:$0xff]
      %v637 = vld [vmem:[%s629 + $0x70] sm:$0xff]
      %v638 = vld [vmem:[%s629 + $0xa0] sm:$0xff]
      %v639 = vld [vmem:[%s629 + $0xb0] sm:$0xff]
      %v640 = vld [vmem:[%s629 + $0xc0] sm:$0xff]
      %v641 = vld [vmem:[%s629 + $0xd0] sm:$0xff]
      %v642 = vld [vmem:[%s629 + $0xe0] sm:$0xff]
      %v643 = vld [vmem:[%s629 + $0xf0] sm:$0xff]
      %v644 = vld [vmem:[%s629 + $0x100] sm:$0xff]
      %v645 = vld [vmem:[%s629 + $0x110] sm:$0xff]
      %v646 = vld [vmem:[%s629 + $0x140] sm:$0xff]
      %v647 = vld [vmem:[%s629 + $0x150] sm:$0xff]
      %v648 = vld [vmem:[%s629 + $0x160] sm:$0xff]
      %v649 = vld [vmem:[%s629 + $0x170] sm:$0xff]
      %v650 = vld [vmem:[%s629 + $0x180] sm:$0xff]
      %v651 = vld [vmem:[%s629 + $0x190] sm:$0xff]
      %v652 = vld [vmem:[%s629 + $0x1a0] sm:$0xff]
      %v653 = vld [vmem:[%s629 + $0x1b0] sm:$0xff]
      %v654 = vld [vmem:[%s629 + $0x1e0] sm:$0xff]
      %v655 = vld [vmem:[%s629 + $0x1f0] sm:$0xff]
      %v656 = vld [vmem:[%s629 + $0x200] sm:$0xff]
      %v657 = vld [vmem:[%s629 + $0x210] sm:$0xff]
      %v658 = vld [vmem:[%s629 + $0x220] sm:$0xff]
      %v659 = vld [vmem:[%s629 + $0x230] sm:$0xff]
      %v660 = vld [vmem:[%s629 + $0x240] sm:$0xff]
      %v661 = vld [vmem:[%s629 + $0x250] sm:$0xff]
      %694 = vrot.lane.b32.xlu0 %v630, 12
      %v695 = vpop.permute.xlu0 %694
      %696 = vrot.lane.b32.xlu0 %v631, 12
      %v697 = vpop.permute.xlu0 %696
      %698 = vrot.lane.b32.xlu0 %v632, 12
      %v699 = vpop.permute.xlu0 %698
      %700 = vrot.lane.b32.xlu0 %v633, 12
      %v701 = vpop.permute.xlu0 %700
      %702 = vrot.lane.b32.xlu0 %v634, 12
      %v703 = vpop.permute.xlu0 %702
      %704 = vrot.lane.b32.xlu0 %v635, 12
      %v705 = vpop.permute.xlu0 %704
      %706 = vrot.lane.b32.xlu0 %v636, 12
      %v707 = vpop.permute.xlu0 %706
      %708 = vrot.lane.b32.xlu0 %v637, 12
      %v709 = vpop.permute.xlu0 %708
      %710 = vrot.lane.b32.xlu0 %v638, 12
      %v711 = vpop.permute.xlu0 %710
      %712 = vrot.lane.b32.xlu0 %v639, 12
      %v713 = vpop.permute.xlu0 %712
      %714 = vrot.lane.b32.xlu0 %v640, 12
      %v715 = vpop.permute.xlu0 %714
      %716 = vrot.lane.b32.xlu0 %v641, 12
      %v717 = vpop.permute.xlu0 %716
      %718 = vrot.lane.b32.xlu0 %v642, 12
      %v719 = vpop.permute.xlu0 %718
      %720 = vrot.lane.b32.xlu0 %v643, 12
      %v721 = vpop.permute.xlu0 %720
      %722 = vrot.lane.b32.xlu0 %v644, 12
      %v723 = vpop.permute.xlu0 %722
      %724 = vrot.lane.b32.xlu0 %v645, 12
      %v725 = vpop.permute.xlu0 %724
      %726 = vrot.lane.b32.xlu0 %v646, 12
      %v727 = vpop.permute.xlu0 %726
      %728 = vrot.lane.b32.xlu0 %v647, 12
      %v729 = vpop.permute.xlu0 %728
      %730 = vrot.lane.b32.xlu0 %v648, 12
      %v731 = vpop.permute.xlu0 %730
      %732 = vrot.lane.b32.xlu0 %v649, 12
      %v733 = vpop.permute.xlu0 %732
      %734 = vrot.lane.b32.xlu0 %v650, 12
      %v735 = vpop.permute.xlu0 %734
      %736 = vrot.lane.b32.xlu0 %v651, 12
      %v737 = vpop.permute.xlu0 %736
      %738 = vrot.lane.b32.xlu0 %v652, 12
      %v739 = vpop.permute.xlu0 %738
      %740 = vrot.lane.b32.xlu0 %v653, 12
      %v741 = vpop.permute.xlu0 %740
      %742 = vrot.lane.b32.xlu0 %v654, 12
      %v743 = vpop.permute.xlu0 %742
      %744 = vrot.lane.b32.xlu0 %v655, 12
      %v745 = vpop.permute.xlu0 %744
      %746 = vrot.lane.b32.xlu0 %v656, 12
      %v747 = vpop.permute.xlu0 %746
      %748 = vrot.lane.b32.xlu0 %v657, 12
      %v749 = vpop.permute.xlu0 %748
      %750 = vrot.lane.b32.xlu0 %v658, 12
      %v751 = vpop.permute.xlu0 %750
      %752 = vrot.lane.b32.xlu0 %v659, 12
      %v753 = vpop.permute.xlu0 %752
      %754 = vrot.lane.b32.xlu0 %v660, 12
      %v755 = vpop.permute.xlu0 %754
      %756 = vrot.lane.b32.xlu0 %v661, 12
      %v757 = vpop.permute.xlu0 %756
      %vm790 = vcmask 130144
      %791 = vst.msk [vmem:[#allocation2] sm:$0xff] %vm790, %v695
      %792 = vst.msk [vmem:[#allocation2 + $0x8] sm:$0xff] %vm790, %v697
      %793 = vst.msk [vmem:[#allocation2 + $0x10] sm:$0xff] %vm790, %v699
      %794 = vst.msk [vmem:[#allocation2 + $0x18] sm:$0xff] %vm790, %v701
      %795 = vst.msk [vmem:[#allocation2 + $0x20] sm:$0xff] %vm790, %v703
      %796 = vst.msk [vmem:[#allocation2 + $0x28] sm:$0xff] %vm790, %v705
      %797 = vst.msk [vmem:[#allocation2 + $0x30] sm:$0xff] %vm790, %v707
      %798 = vst.msk [vmem:[#allocation2 + $0x38] sm:$0xff] %vm790, %v709
      %799 = vst.msk [vmem:[#allocation2 + $0x40] sm:$0xff] %vm790, %v711
      %800 = vst.msk [vmem:[#allocation2 + $0x48] sm:$0xff] %vm790, %v713
      %801 = vst.msk [vmem:[#allocation2 + $0x50] sm:$0xff] %vm790, %v715
      %802 = vst.msk [vmem:[#allocation2 + $0x58] sm:$0xff] %vm790, %v717
      %803 = vst.msk [vmem:[#allocation2 + $0x60] sm:$0xff] %vm790, %v719
      %804 = vst.msk [vmem:[#allocation2 + $0x68] sm:$0xff] %vm790, %v721
      %805 = vst.msk [vmem:[#allocation2 + $0x70] sm:$0xff] %vm790, %v723
      %806 = vst.msk [vmem:[#allocation2 + $0x78] sm:$0xff] %vm790, %v725
      %807 = vst.msk [vmem:[#allocation2 + $0x80] sm:$0xff] %vm790, %v727
      %808 = vst.msk [vmem:[#allocation2 + $0x88] sm:$0xff] %vm790, %v729
      %809 = vst.msk [vmem:[#allocation2 + $0x90] sm:$0xff] %vm790, %v731
      %810 = vst.msk [vmem:[#allocation2 + $0x98] sm:$0xff] %vm790, %v733
      %811 = vst.msk [vmem:[#allocation2 + $0xa0] sm:$0xff] %vm790, %v735
      %812 = vst.msk [vmem:[#allocation2 + $0xa8] sm:$0xff] %vm790, %v737
      %813 = vst.msk [vmem:[#allocation2 + $0xb0] sm:$0xff] %vm790, %v739
      %814 = vst.msk [vmem:[#allocation2 + $0xb8] sm:$0xff] %vm790, %v741
      %815 = vst.msk [vmem:[#allocation2 + $0xc0] sm:$0xff] %vm790, %v743
      %816 = vst.msk [vmem:[#allocation2 + $0xc8] sm:$0xff] %vm790, %v745
      %817 = vst.msk [vmem:[#allocation2 + $0xd0] sm:$0xff] %vm790, %v747
      %818 = vst.msk [vmem:[#allocation2 + $0xd8] sm:$0xff] %vm790, %v749
      %819 = vst.msk [vmem:[#allocation2 + $0xe0] sm:$0xff] %vm790, %v751
      %820 = vst.msk [vmem:[#allocation2 + $0xe8] sm:$0xff] %vm790, %v753
      %821 = vst.msk [vmem:[#allocation2 + $0xf0] sm:$0xff] %vm790, %v755
      %822 = vst.msk [vmem:[#allocation2 + $0xf8] sm:$0xff] %vm790, %v757
      %v823 = vld [vmem:[%s629 + $0x1] sm:$0xff]
      %v824 = vld [vmem:[%s629 + $0x11] sm:$0xff]
      %v825 = vld [vmem:[%s629 + $0x21] sm:$0xff]
      %v826 = vld [vmem:[%s629 + $0x31] sm:$0xff]
      %v827 = vld [vmem:[%s629 + $0x41] sm:$0xff]
      %v828 = vld [vmem:[%s629 + $0x51] sm:$0xff]
      %v829 = vld [vmem:[%s629 + $0x61] sm:$0xff]
      %v830 = vld [vmem:[%s629 + $0x71] sm:$0xff]
      %v831 = vld [vmem:[%s629 + $0xa1] sm:$0xff]
      %v832 = vld [vmem:[%s629 + $0xb1] sm:$0xff]
      %v833 = vld [vmem:[%s629 + $0xc1] sm:$0xff]
      %v834 = vld [vmem:[%s629 + $0xd1] sm:$0xff]
      %v835 = vld [vmem:[%s629 + $0xe1] sm:$0xff]
      %v836 = vld [vmem:[%s629 + $0xf1] sm:$0xff]
      %v837 = vld [vmem:[%s629 + $0x101] sm:$0xff]
      %v838 = vld [vmem:[%s629 + $0x111] sm:$0xff]
      %v839 = vld [vmem:[%s629 + $0x141] sm:$0xff]
      %v840 = vld [vmem:[%s629 + $0x151] sm:$0xff]
      %v841 = vld [vmem:[%s629 + $0x161] sm:$0xff]
      %v842 = vld [vmem:[%s629 + $0x171] sm:$0xff]
      %v843 = vld [vmem:[%s629 + $0x181] sm:$0xff]
      %v844 = vld [vmem:[%s629 + $0x191] sm:$0xff]
      %v845 = vld [vmem:[%s629 + $0x1a1] sm:$0xff]
      %v846 = vld [vmem:[%s629 + $0x1b1] sm:$0xff]
      %v847 = vld [vmem:[%s629 + $0x1e1] sm:$0xff]
      %v848 = vld [vmem:[%s629 + $0x1f1] sm:$0xff]
      %v849 = vld [vmem:[%s629 + $0x201] sm:$0xff]
      %v850 = vld [vmem:[%s629 + $0x211] sm:$0xff]
      %v851 = vld [vmem:[%s629 + $0x221] sm:$0xff]
      %v852 = vld [vmem:[%s629 + $0x231] sm:$0xff]
      %v853 = vld [vmem:[%s629 + $0x241] sm:$0xff]
      %v854 = vld [vmem:[%s629 + $0x251] sm:$0xff]
      %887 = vrot.lane.b32.xlu0 %v823, 16
      %v888 = vpop.permute.xlu0 %887
      %889 = vrot.lane.b32.xlu0 %v824, 16
      %v890 = vpop.permute.xlu0 %889
      %891 = vrot.lane.b32.xlu0 %v825, 16
      %v892 = vpop.permute.xlu0 %891
      %893 = vrot.lane.b32.xlu0 %v826, 16
      %v894 = vpop.permute.xlu0 %893
      %895 = vrot.lane.b32.xlu0 %v827, 16
      %v896 = vpop.permute.xlu0 %895
      %897 = vrot.lane.b32.xlu0 %v828, 16
      %v898 = vpop.permute.xlu0 %897
      %899 = vrot.lane.b32.xlu0 %v829, 16
      %v900 = vpop.permute.xlu0 %899
      %901 = vrot.lane.b32.xlu0 %v830, 16
      %v902 = vpop.permute.xlu0 %901
      %903 = vrot.lane.b32.xlu0 %v831, 16
      %v904 = vpop.permute.xlu0 %903
      %905 = vrot.lane.b32.xlu0 %v832, 16
      %v906 = vpop.permute.xlu0 %905
      %907 = vrot.lane.b32.xlu0 %v833, 16
      %v908 = vpop.permute.xlu0 %907
      %909 = vrot.lane.b32.xlu0 %v834, 16
      %v910 = vpop.permute.xlu0 %909
      %911 = vrot.lane.b32.xlu0 %v835, 16
      %v912 = vpop.permute.xlu0 %911
      %913 = vrot.lane.b32.xlu0 %v836, 16
      %v914 = vpop.permute.xlu0 %913
      %915 = vrot.lane.b32.xlu0 %v837, 16
      %v916 = vpop.permute.xlu0 %915
      %917 = vrot.lane.b32.xlu0 %v838, 16
      %v918 = vpop.permute.xlu0 %917
      %919 = vrot.lane.b32.xlu0 %v839, 16
      %v920 = vpop.permute.xlu0 %919
      %921 = vrot.lane.b32.xlu0 %v840, 16
      %v922 = vpop.permute.xlu0 %921
      %923 = vrot.lane.b32.xlu0 %v841, 16
      %v924 = vpop.permute.xlu0 %923
      %925 = vrot.lane.b32.xlu0 %v842, 16
      %v926 = vpop.permute.xlu0 %925
      %927 = vrot.lane.b32.xlu0 %v843, 16
      %v928 = vpop.permute.xlu0 %927
      %929 = vrot.lane.b32.xlu0 %v844, 16
      %v930 = vpop.permute.xlu0 %929
      %931 = vrot.lane.b32.xlu0 %v845, 16
      %v932 = vpop.permute.xlu0 %931
      %933 = vrot.lane.b32.xlu0 %v846, 16
      %v934 = vpop.permute.xlu0 %933
      %935 = vrot.lane.b32.xlu0 %v847, 16
      %v936 = vpop.permute.xlu0 %935
      %937 = vrot.lane.b32.xlu0 %v848, 16
      %v938 = vpop.permute.xlu0 %937
      %939 = vrot.lane.b32.xlu0 %v849, 16
      %v940 = vpop.permute.xlu0 %939
      %941 = vrot.lane.b32.xlu0 %v850, 16
      %v942 = vpop.permute.xlu0 %941
      %943 = vrot.lane.b32.xlu0 %v851, 16
      %v944 = vpop.permute.xlu0 %943
      %945 = vrot.lane.b32.xlu0 %v852, 16
      %v946 = vpop.permute.xlu0 %945
      %947 = vrot.lane.b32.xlu0 %v853, 16
      %v948 = vpop.permute.xlu0 %947
      %949 = vrot.lane.b32.xlu0 %v854, 16
      %v950 = vpop.permute.xlu0 %949
      %vm983 = vcmask 162944
      %984 = vst.msk [vmem:[#allocation2] sm:$0xff] %vm983, %v888
      %985 = vst.msk [vmem:[#allocation2 + $0x8] sm:$0xff] %vm983, %v890
      %986 = vst.msk [vmem:[#allocation2 + $0x10] sm:$0xff] %vm983, %v892
      %987 = vst.msk [vmem:[#allocation2 + $0x18] sm:$0xff] %vm983, %v894
      %988 = vst.msk [vmem:[#allocation2 + $0x20] sm:$0xff] %vm983, %v896
      %989 = vst.msk [vmem:[#allocation2 + $0x28] sm:$0xff] %vm983, %v898
      %990 = vst.msk [vmem:[#allocation2 + $0x30] sm:$0xff] %vm983, %v900
      %991 = vst.msk [vmem:[#allocation2 + $0x38] sm:$0xff] %vm983, %v902
      %992 = vst.msk [vmem:[#allocation2 + $0x40] sm:$0xff] %vm983, %v904
      %993 = vst.msk [vmem:[#allocation2 + $0x48] sm:$0xff] %vm983, %v906
      %994 = vst.msk [vmem:[#allocation2 + $0x50] sm:$0xff] %vm983, %v908
      %995 = vst.msk [vmem:[#allocation2 + $0x58] sm:$0xff] %vm983, %v910
      %996 = vst.msk [vmem:[#allocation2 + $0x60] sm:$0xff] %vm983, %v912
      %997 = vst.msk [vmem:[#allocation2 + $0x68] sm:$0xff] %vm983, %v914
      %998 = vst.msk [vmem:[#allocation2 + $0x70] sm:$0xff] %vm983, %v916
      %999 = vst.msk [vmem:[#allocation2 + $0x78] sm:$0xff] %vm983, %v918
      %1000 = vst.msk [vmem:[#allocation2 + $0x80] sm:$0xff] %vm983, %v920
      %1001 = vst.msk [vmem:[#allocation2 + $0x88] sm:$0xff] %vm983, %v922
      %1002 = vst.msk [vmem:[#allocation2 + $0x90] sm:$0xff] %vm983, %v924
      %1003 = vst.msk [vmem:[#allocation2 + $0x98] sm:$0xff] %vm983, %v926
      %1004 = vst.msk [vmem:[#allocation2 + $0xa0] sm:$0xff] %vm983, %v928
      %1005 = vst.msk [vmem:[#allocation2 + $0xa8] sm:$0xff] %vm983, %v930
      %1006 = vst.msk [vmem:[#allocation2 + $0xb0] sm:$0xff] %vm983, %v932
      %1007 = vst.msk [vmem:[#allocation2 + $0xb8] sm:$0xff] %vm983, %v934
      %1008 = vst.msk [vmem:[#allocation2 + $0xc0] sm:$0xff] %vm983, %v936
      %1009 = vst.msk [vmem:[#allocation2 + $0xc8] sm:$0xff] %vm983, %v938
      %1010 = vst.msk [vmem:[#allocation2 + $0xd0] sm:$0xff] %vm983, %v940
      %1011 = vst.msk [vmem:[#allocation2 + $0xd8] sm:$0xff] %vm983, %v942
      %1012 = vst.msk [vmem:[#allocation2 + $0xe0] sm:$0xff] %vm983, %v944
      %1013 = vst.msk [vmem:[#allocation2 + $0xe8] sm:$0xff] %vm983, %v946
      %1014 = vst.msk [vmem:[#allocation2 + $0xf0] sm:$0xff] %vm983, %v948
      %1015 = vst.msk [vmem:[#allocation2 + $0xf8] sm:$0xff] %vm983, %v950
      %v1016 = vld [vmem:[%s629 + $0x2] sm:$0xff]
      %v1017 = vld [vmem:[%s629 + $0x12] sm:$0xff]
      %v1018 = vld [vmem:[%s629 + $0x22] sm:$0xff]
      %v1019 = vld [vmem:[%s629 + $0x32] sm:$0xff]
      %v1020 = vld [vmem:[%s629 + $0x42] sm:$0xff]
      %v1021 = vld [vmem:[%s629 + $0x52] sm:$0xff]
      %v1022 = vld [vmem:[%s629 + $0x62] sm:$0xff]
      %v1023 = vld [vmem:[%s629 + $0x72] sm:$0xff]
      %v1024 = vld [vmem:[%s629 + $0xa2] sm:$0xff]
      %v1025 = vld [vmem:[%s629 + $0xb2] sm:$0xff]
      %v1026 = vld [vmem:[%s629 + $0xc2] sm:$0xff]
      %v1027 = vld [vmem:[%s629 + $0xd2] sm:$0xff]
      %v1028 = vld [vmem:[%s629 + $0xe2] sm:$0xff]
      %v1029 = vld [vmem:[%s629 + $0xf2] sm:$0xff]
      %v1030 = vld [vmem:[%s629 + $0x102] sm:$0xff]
      %v1031 = vld [vmem:[%s629 + $0x112] sm:$0xff]
      %v1032 = vld [vmem:[%s629 + $0x142] sm:$0xff]
      %v1033 = vld [vmem:[%s629 + $0x152] sm:$0xff]
      %v1034 = vld [vmem:[%s629 + $0x162] sm:$0xff]
      %v1035 = vld [vmem:[%s629 + $0x172] sm:$0xff]
      %v1036 = vld [vmem:[%s629 + $0x182] sm:$0xff]
      %v1037 = vld [vmem:[%s629 + $0x192] sm:$0xff]
      %v1038 = vld [vmem:[%s629 + $0x1a2] sm:$0xff]
      %v1039 = vld [vmem:[%s629 + $0x1b2] sm:$0xff]
      %v1040 = vld [vmem:[%s629 + $0x1e2] sm:$0xff]
      %v1041 = vld [vmem:[%s629 + $0x1f2] sm:$0xff]
      %v1042 = vld [vmem:[%s629 + $0x202] sm:$0xff]
      %v1043 = vld [vmem:[%s629 + $0x212] sm:$0xff]
      %v1044 = vld [vmem:[%s629 + $0x222] sm:$0xff]
      %v1045 = vld [vmem:[%s629 + $0x232] sm:$0xff]
      %v1046 = vld [vmem:[%s629 + $0x242] sm:$0xff]
      %v1047 = vld [vmem:[%s629 + $0x252] sm:$0xff]
      %1080 = vrot.lane.b32.xlu0 %v1016, 20
      %v1081 = vpop.permute.xlu0 %1080
      %1082 = vrot.lane.b32.xlu0 %v1017, 20
      %v1083 = vpop.permute.xlu0 %1082
      %1084 = vrot.lane.b32.xlu0 %v1018, 20
      %v1085 = vpop.permute.xlu0 %1084
      %1086 = vrot.lane.b32.xlu0 %v1019, 20
      %v1087 = vpop.permute.xlu0 %1086
      %1088 = vrot.lane.b32.xlu0 %v1020, 20
      %v1089 = vpop.permute.xlu0 %1088
      %1090 = vrot.lane.b32.xlu0 %v1021, 20
      %v1091 = vpop.permute.xlu0 %1090
      %1092 = vrot.lane.b32.xlu0 %v1022, 20
      %v1093 = vpop.permute.xlu0 %1092
      %1094 = vrot.lane.b32.xlu0 %v1023, 20
      %v1095 = vpop.permute.xlu0 %1094
      %1096 = vrot.lane.b32.xlu0 %v1024, 20
      %v1097 = vpop.permute.xlu0 %1096
      %1098 = vrot.lane.b32.xlu0 %v1025, 20
      %v1099 = vpop.permute.xlu0 %1098
      %1100 = vrot.lane.b32.xlu0 %v1026, 20
      %v1101 = vpop.permute.xlu0 %1100
      %1102 = vrot.lane.b32.xlu0 %v1027, 20
      %v1103 = vpop.permute.xlu0 %1102
      %1104 = vrot.lane.b32.xlu0 %v1028, 20
      %v1105 = vpop.permute.xlu0 %1104
      %1106 = vrot.lane.b32.xlu0 %v1029, 20
      %v1107 = vpop.permute.xlu0 %1106
      %1108 = vrot.lane.b32.xlu0 %v1030, 20
      %v1109 = vpop.permute.xlu0 %1108
      %1110 = vrot.lane.b32.xlu0 %v1031, 20
      %v1111 = vpop.permute.xlu0 %1110
      %1112 = vrot.lane.b32.xlu0 %v1032, 20
      %v1113 = vpop.permute.xlu0 %1112
      %1114 = vrot.lane.b32.xlu0 %v1033, 20
      %v1115 = vpop.permute.xlu0 %1114
      %1116 = vrot.lane.b32.xlu0 %v1034, 20
      %v1117 = vpop.permute.xlu0 %1116
      %1118 = vrot.lane.b32.xlu0 %v1035, 20
      %v1119 = vpop.permute.xlu0 %1118
      %1120 = vrot.lane.b32.xlu0 %v1036, 20
      %v1121 = vpop.permute.xlu0 %1120
      %1122 = vrot.lane.b32.xlu0 %v1037, 20
      %v1123 = vpop.permute.xlu0 %1122
      %1124 = vrot.lane.b32.xlu0 %v1038, 20
      %v1125 = vpop.permute.xlu0 %1124
      %1126 = vrot.lane.b32.xlu0 %v1039, 20
      %v1127 = vpop.permute.xlu0 %1126
      %1128 = vrot.lane.b32.xlu0 %v1040, 20
      %v1129 = vpop.permute.xlu0 %1128
      %1130 = vrot.lane.b32.xlu0 %v1041, 20
      %v1131 = vpop.permute.xlu0 %1130
      %1132 = vrot.lane.b32.xlu0 %v1042, 20
      %v1133 = vpop.permute.xlu0 %1132
      %1134 = vrot.lane.b32.xlu0 %v1043, 20
      %v1135 = vpop.permute.xlu0 %1134
      %1136 = vrot.lane.b32.xlu0 %v1044, 20
      %v1137 = vpop.permute.xlu0 %1136
      %1138 = vrot.lane.b32.xlu0 %v1045, 20
      %v1139 = vpop.permute.xlu0 %1138
      %1140 = vrot.lane.b32.xlu0 %v1046, 20
      %v1141 = vpop.permute.xlu0 %1140
      %1142 = vrot.lane.b32.xlu0 %v1047, 20
      %v1143 = vpop.permute.xlu0 %1142
      %vm1176 = vcmask 195744
      %1177 = vst.msk [vmem:[#allocation2] sm:$0xff] %vm1176, %v1081
      %1178 = vst.msk [vmem:[#allocation2 + $0x8] sm:$0xff] %vm1176, %v1083
      %1179 = vst.msk [vmem:[#allocation2 + $0x10] sm:$0xff] %vm1176, %v1085
      %1180 = vst.msk [vmem:[#allocation2 + $0x18] sm:$0xff] %vm1176, %v1087
      %1181 = vst.msk [vmem:[#allocation2 + $0x20] sm:$0xff] %vm1176, %v1089
      %1182 = vst.msk [vmem:[#allocation2 + $0x28] sm:$0xff] %vm1176, %v1091
      %1183 = vst.msk [vmem:[#allocation2 + $0x30] sm:$0xff] %vm1176, %v1093
      %1184 = vst.msk [vmem:[#allocation2 + $0x38] sm:$0xff] %vm1176, %v1095
      %1185 = vst.msk [vmem:[#allocation2 + $0x40] sm:$0xff] %vm1176, %v1097
      %1186 = vst.msk [vmem:[#allocation2 + $0x48] sm:$0xff] %vm1176, %v1099
      %1187 = vst.msk [vmem:[#allocation2 + $0x50] sm:$0xff] %vm1176, %v1101
      %1188 = vst.msk [vmem:[#allocation2 + $0x58] sm:$0xff] %vm1176, %v1103
      %1189 = vst.msk [vmem:[#allocation2 + $0x60] sm:$0xff] %vm1176, %v1105
      %1190 = vst.msk [vmem:[#allocation2 + $0x68] sm:$0xff] %vm1176, %v1107
      %1191 = vst.msk [vmem:[#allocation2 + $0x70] sm:$0xff] %vm1176, %v1109
      %1192 = vst.msk [vmem:[#allocation2 + $0x78] sm:$0xff] %vm1176, %v1111
      %1193 = vst.msk [vmem:[#allocation2 + $0x80] sm:$0xff] %vm1176, %v1113
      %1194 = vst.msk [vmem:[#allocation2 + $0x88] sm:$0xff] %vm1176, %v1115
      %1195 = vst.msk [vmem:[#allocation2 + $0x90] sm:$0xff] %vm1176, %v1117
      %1196 = vst.msk [vmem:[#allocation2 + $0x98] sm:$0xff] %vm1176, %v1119
      %1197 = vst.msk [vmem:[#allocation2 + $0xa0] sm:$0xff] %vm1176, %v1121
      %1198 = vst.msk [vmem:[#allocation2 + $0xa8] sm:$0xff] %vm1176, %v1123
      %1199 = vst.msk [vmem:[#allocation2 + $0xb0] sm:$0xff] %vm1176, %v1125
      %1200 = vst.msk [vmem:[#allocation2 + $0xb8] sm:$0xff] %vm1176, %v1127
      %1201 = vst.msk [vmem:[#allocation2 + $0xc0] sm:$0xff] %vm1176, %v1129
      %1202 = vst.msk [vmem:[#allocation2 + $0xc8] sm:$0xff] %vm1176, %v1131
      %1203 = vst.msk [vmem:[#allocation2 + $0xd0] sm:$0xff] %vm1176, %v1133
      %1204 = vst.msk [vmem:[#allocation2 + $0xd8] sm:$0xff] %vm1176, %v1135
      %1205 = vst.msk [vmem:[#allocation2 + $0xe0] sm:$0xff] %vm1176, %v1137
      %1206 = vst.msk [vmem:[#allocation2 + $0xe8] sm:$0xff] %vm1176, %v1139
      %1207 = vst.msk [vmem:[#allocation2 + $0xf0] sm:$0xff] %vm1176, %v1141
      %1208 = vst.msk [vmem:[#allocation2 + $0xf8] sm:$0xff] %vm1176, %v1143
      %s1209 = scalar_lea.vmem %s138, 32
      %v1210 = vld [vmem:[%s1209] sm:$0xff]
      %v1211 = vld [vmem:[%s1209 + $0x10] sm:$0xff]
      %v1212 = vld [vmem:[%s1209 + $0x20] sm:$0xff]
      %v1213 = vld [vmem:[%s1209 + $0x30] sm:$0xff]
      %v1214 = vld [vmem:[%s1209 + $0x40] sm:$0xff]
      %v1215 = vld [vmem:[%s1209 + $0x50] sm:$0xff]
      %v1216 = vld [vmem:[%s1209 + $0x60] sm:$0xff]
      %v1217 = vld [vmem:[%s1209 + $0x70] sm:$0xff]
      %v1218 = vld [vmem:[%s1209 + $0xa0] sm:$0xff]
      %v1219 = vld [vmem:[%s1209 + $0xb0] sm:$0xff]
      %v1220 = vld [vmem:[%s1209 + $0xc0] sm:$0xff]
      %v1221 = vld [vmem:[%s1209 + $0xd0] sm:$0xff]
      %v1222 = vld [vmem:[%s1209 + $0xe0] sm:$0xff]
      %v1223 = vld [vmem:[%s1209 + $0xf0] sm:$0xff]
      %v1224 = vld [vmem:[%s1209 + $0x100] sm:$0xff]
      %v1225 = vld [vmem:[%s1209 + $0x110] sm:$0xff]
      %v1226 = vld [vmem:[%s1209 + $0x140] sm:$0xff]
      %v1227 = vld [vmem:[%s1209 + $0x150] sm:$0xff]
      %v1228 = vld [vmem:[%s1209 + $0x160] sm:$0xff]
      %v1229 = vld [vmem:[%s1209 + $0x170] sm:$0xff]
      %v1230 = vld [vmem:[%s1209 + $0x180] sm:$0xff]
      %v1231 = vld [vmem:[%s1209 + $0x190] sm:$0xff]
      %v1232 = vld [vmem:[%s1209 + $0x1a0] sm:$0xff]
      %v1233 = vld [vmem:[%s1209 + $0x1b0] sm:$0xff]
      %v1234 = vld [vmem:[%s1209 + $0x1e0] sm:$0xff]
      %v1235 = vld [vmem:[%s1209 + $0x1f0] sm:$0xff]
      %v1236 = vld [vmem:[%s1209 + $0x200] sm:$0xff]
      %v1237 = vld [vmem:[%s1209 + $0x210] sm:$0xff]
      %v1238 = vld [vmem:[%s1209 + $0x220] sm:$0xff]
      %v1239 = vld [vmem:[%s1209 + $0x230] sm:$0xff]
      %v1240 = vld [vmem:[%s1209 + $0x240] sm:$0xff]
      %v1241 = vld [vmem:[%s1209 + $0x250] sm:$0xff]
      %1274 = vrot.lane.b32.xlu0 %v1210, 24
      %v1275 = vpop.permute.xlu0 %1274
      %1276 = vrot.lane.b32.xlu0 %v1211, 24
      %v1277 = vpop.permute.xlu0 %1276
      %1278 = vrot.lane.b32.xlu0 %v1212, 24
      %v1279 = vpop.permute.xlu0 %1278
      %1280 = vrot.lane.b32.xlu0 %v1213, 24
      %v1281 = vpop.permute.xlu0 %1280
      %1282 = vrot.lane.b32.xlu0 %v1214, 24
      %v1283 = vpop.permute.xlu0 %1282
      %1284 = vrot.lane.b32.xlu0 %v1215, 24
      %v1285 = vpop.permute.xlu0 %1284
      %1286 = vrot.lane.b32.xlu0 %v1216, 24
      %v1287 = vpop.permute.xlu0 %1286
      %1288 = vrot.lane.b32.xlu0 %v1217, 24
      %v1289 = vpop.permute.xlu0 %1288
      %1290 = vrot.lane.b32.xlu0 %v1218, 24
      %v1291 = vpop.permute.xlu0 %1290
      %1292 = vrot.lane.b32.xlu0 %v1219, 24
      %v1293 = vpop.permute.xlu0 %1292
      %1294 = vrot.lane.b32.xlu0 %v1220, 24
      %v1295 = vpop.permute.xlu0 %1294
      %1296 = vrot.lane.b32.xlu0 %v1221, 24
      %v1297 = vpop.permute.xlu0 %1296
      %1298 = vrot.lane.b32.xlu0 %v1222, 24
      %v1299 = vpop.permute.xlu0 %1298
      %1300 = vrot.lane.b32.xlu0 %v1223, 24
      %v1301 = vpop.permute.xlu0 %1300
      %1302 = vrot.lane.b32.xlu0 %v1224, 24
      %v1303 = vpop.permute.xlu0 %1302
      %1304 = vrot.lane.b32.xlu0 %v1225, 24
      %v1305 = vpop.permute.xlu0 %1304
      %1306 = vrot.lane.b32.xlu0 %v1226, 24
      %v1307 = vpop.permute.xlu0 %1306
      %1308 = vrot.lane.b32.xlu0 %v1227, 24
      %v1309 = vpop.permute.xlu0 %1308
      %1310 = vrot.lane.b32.xlu0 %v1228, 24
      %v1311 = vpop.permute.xlu0 %1310
      %1312 = vrot.lane.b32.xlu0 %v1229, 24
      %v1313 = vpop.permute.xlu0 %1312
      %1314 = vrot.lane.b32.xlu0 %v1230, 24
      %v1315 = vpop.permute.xlu0 %1314
      %1316 = vrot.lane.b32.xlu0 %v1231, 24
      %v1317 = vpop.permute.xlu0 %1316
      %1318 = vrot.lane.b32.xlu0 %v1232, 24
      %v1319 = vpop.permute.xlu0 %1318
      %1320 = vrot.lane.b32.xlu0 %v1233, 24
      %v1321 = vpop.permute.xlu0 %1320
      %1322 = vrot.lane.b32.xlu0 %v1234, 24
      %v1323 = vpop.permute.xlu0 %1322
      %1324 = vrot.lane.b32.xlu0 %v1235, 24
      %v1325 = vpop.permute.xlu0 %1324
      %1326 = vrot.lane.b32.xlu0 %v1236, 24
      %v1327 = vpop.permute.xlu0 %1326
      %1328 = vrot.lane.b32.xlu0 %v1237, 24
      %v1329 = vpop.permute.xlu0 %1328
      %1330 = vrot.lane.b32.xlu0 %v1238, 24
      %v1331 = vpop.permute.xlu0 %1330
      %1332 = vrot.lane.b32.xlu0 %v1239, 24
      %v1333 = vpop.permute.xlu0 %1332
      %1334 = vrot.lane.b32.xlu0 %v1240, 24
      %v1335 = vpop.permute.xlu0 %1334
      %1336 = vrot.lane.b32.xlu0 %v1241, 24
      %v1337 = vpop.permute.xlu0 %1336
      %vm1370 = vcmask 228544
      %1371 = vst.msk [vmem:[#allocation2] sm:$0xff] %vm1370, %v1275
      %1372 = vst.msk [vmem:[#allocation2 + $0x8] sm:$0xff] %vm1370, %v1277
      %1373 = vst.msk [vmem:[#allocation2 + $0x10] sm:$0xff] %vm1370, %v1279
      %1374 = vst.msk [vmem:[#allocation2 + $0x18] sm:$0xff] %vm1370, %v1281
      %1375 = vst.msk [vmem:[#allocation2 + $0x20] sm:$0xff] %vm1370, %v1283
      %1376 = vst.msk [vmem:[#allocation2 + $0x28] sm:$0xff] %vm1370, %v1285
      %1377 = vst.msk [vmem:[#allocation2 + $0x30] sm:$0xff] %vm1370, %v1287
      %1378 = vst.msk [vmem:[#allocation2 + $0x38] sm:$0xff] %vm1370, %v1289
      %1379 = vst.msk [vmem:[#allocation2 + $0x40] sm:$0xff] %vm1370, %v1291
      %1380 = vst.msk [vmem:[#allocation2 + $0x48] sm:$0xff] %vm1370, %v1293
      %1381 = vst.msk [vmem:[#allocation2 + $0x50] sm:$0xff] %vm1370, %v1295
      %1382 = vst.msk [vmem:[#allocation2 + $0x58] sm:$0xff] %vm1370, %v1297
      %1383 = vst.msk [vmem:[#allocation2 + $0x60] sm:$0xff] %vm1370, %v1299
      %1384 = vst.msk [vmem:[#allocation2 + $0x68] sm:$0xff] %vm1370, %v1301
      %1385 = vst.msk [vmem:[#allocation2 + $0x70] sm:$0xff] %vm1370, %v1303
      %1386 = vst.msk [vmem:[#allocation2 + $0x78] sm:$0xff] %vm1370, %v1305
      %1387 = vst.msk [vmem:[#allocation2 + $0x80] sm:$0xff] %vm1370, %v1307
      %1388 = vst.msk [vmem:[#allocation2 + $0x88] sm:$0xff] %vm1370, %v1309
      %1389 = vst.msk [vmem:[#allocation2 + $0x90] sm:$0xff] %vm1370, %v1311
      %1390 = vst.msk [vmem:[#allocation2 + $0x98] sm:$0xff] %vm1370, %v1313
      %1391 = vst.msk [vmem:[#allocation2 + $0xa0] sm:$0xff] %vm1370, %v1315
      %1392 = vst.msk [vmem:[#allocation2 + $0xa8] sm:$0xff] %vm1370, %v1317
      %1393 = vst.msk [vmem:[#allocation2 + $0xb0] sm:$0xff] %vm1370, %v1319
      %1394 = vst.msk [vmem:[#allocation2 + $0xb8] sm:$0xff] %vm1370, %v1321
      %1395 = vst.msk [vmem:[#allocation2 + $0xc0] sm:$0xff] %vm1370, %v1323
      %1396 = vst.msk [vmem:[#allocation2 + $0xc8] sm:$0xff] %vm1370, %v1325
      %1397 = vst.msk [vmem:[#allocation2 + $0xd0] sm:$0xff] %vm1370, %v1327
      %1398 = vst.msk [vmem:[#allocation2 + $0xd8] sm:$0xff] %vm1370, %v1329
      %1399 = vst.msk [vmem:[#allocation2 + $0xe0] sm:$0xff] %vm1370, %v1331
      %1400 = vst.msk [vmem:[#allocation2 + $0xe8] sm:$0xff] %vm1370, %v1333
      %1401 = vst.msk [vmem:[#allocation2 + $0xf0] sm:$0xff] %vm1370, %v1335
      %1402 = vst.msk [vmem:[#allocation2 + $0xf8] sm:$0xff] %vm1370, %v1337
      %v1403 = vld [vmem:[%s1209 + $0x1] sm:$0xff]
      %v1404 = vld [vmem:[%s1209 + $0x11] sm:$0xff]
      %v1405 = vld [vmem:[%s1209 + $0x21] sm:$0xff]
      %v1406 = vld [vmem:[%s1209 + $0x31] sm:$0xff]
      %v1407 = vld [vmem:[%s1209 + $0x41] sm:$0xff]
      %v1408 = vld [vmem:[%s1209 + $0x51] sm:$0xff]
      %v1409 = vld [vmem:[%s1209 + $0x61] sm:$0xff]
      %v1410 = vld [vmem:[%s1209 + $0x71] sm:$0xff]
      %v1411 = vld [vmem:[%s1209 + $0xa1] sm:$0xff]
      %v1412 = vld [vmem:[%s1209 + $0xb1] sm:$0xff]
      %v1413 = vld [vmem:[%s1209 + $0xc1] sm:$0xff]
      %v1414 = vld [vmem:[%s1209 + $0xd1] sm:$0xff]
      %v1415 = vld [vmem:[%s1209 + $0xe1] sm:$0xff]
      %v1416 = vld [vmem:[%s1209 + $0xf1] sm:$0xff]
      %v1417 = vld [vmem:[%s1209 + $0x101] sm:$0xff]
      %v1418 = vld [vmem:[%s1209 + $0x111] sm:$0xff]
      %v1419 = vld [vmem:[%s1209 + $0x141] sm:$0xff]
      %v1420 = vld [vmem:[%s1209 + $0x151] sm:$0xff]
      %v1421 = vld [vmem:[%s1209 + $0x161] sm:$0xff]
      %v1422 = vld [vmem:[%s1209 + $0x171] sm:$0xff]
      %v1423 = vld [vmem:[%s1209 + $0x181] sm:$0xff]
      %v1424 = vld [vmem:[%s1209 + $0x191] sm:$0xff]
      %v1425 = vld [vmem:[%s1209 + $0x1a1] sm:$0xff]
      %v1426 = vld [vmem:[%s1209 + $0x1b1] sm:$0xff]
      %v1427 = vld [vmem:[%s1209 + $0x1e1] sm:$0xff]
      %v1428 = vld [vmem:[%s1209 + $0x1f1] sm:$0xff]
      %v1429 = vld [vmem:[%s1209 + $0x201] sm:$0xff]
      %v1430 = vld [vmem:[%s1209 + $0x211] sm:$0xff]
      %v1431 = vld [vmem:[%s1209 + $0x221] sm:$0xff]
      %v1432 = vld [vmem:[%s1209 + $0x231] sm:$0xff]
      %v1433 = vld [vmem:[%s1209 + $0x241] sm:$0xff]
      %v1434 = vld [vmem:[%s1209 + $0x251] sm:$0xff]
      %1467 = vrot.lane.b32.xlu0 %v1403, 28
      %v1468 = vpop.permute.xlu0 %1467
      %1469 = vrot.lane.b32.xlu0 %v1404, 28
      %v1470 = vpop.permute.xlu0 %1469
      %1471 = vrot.lane.b32.xlu0 %v1405, 28
      %v1472 = vpop.permute.xlu0 %1471
      %1473 = vrot.lane.b32.xlu0 %v1406, 28
      %v1474 = vpop.permute.xlu0 %1473
      %1475 = vrot.lane.b32.xlu0 %v1407, 28
      %v1476 = vpop.permute.xlu0 %1475
      %1477 = vrot.lane.b32.xlu0 %v1408, 28
      %v1478 = vpop.permute.xlu0 %1477
      %1479 = vrot.lane.b32.xlu0 %v1409, 28
      %v1480 = vpop.permute.xlu0 %1479
      %1481 = vrot.lane.b32.xlu0 %v1410, 28
      %v1482 = vpop.permute.xlu0 %1481
      %1483 = vrot.lane.b32.xlu0 %v1411, 28
      %v1484 = vpop.permute.xlu0 %1483
      %1485 = vrot.lane.b32.xlu0 %v1412, 28
      %v1486 = vpop.permute.xlu0 %1485
      %1487 = vrot.lane.b32.xlu0 %v1413, 28
      %v1488 = vpop.permute.xlu0 %1487
      %1489 = vrot.lane.b32.xlu0 %v1414, 28
      %v1490 = vpop.permute.xlu0 %1489
      %1491 = vrot.lane.b32.xlu0 %v1415, 28
      %v1492 = vpop.permute.xlu0 %1491
      %1493 = vrot.lane.b32.xlu0 %v1416, 28
      %v1494 = vpop.permute.xlu0 %1493
      %1495 = vrot.lane.b32.xlu0 %v1417, 28
      %v1496 = vpop.permute.xlu0 %1495
      %1497 = vrot.lane.b32.xlu0 %v1418, 28
      %v1498 = vpop.permute.xlu0 %1497
      %1499 = vrot.lane.b32.xlu0 %v1419, 28
      %v1500 = vpop.permute.xlu0 %1499
      %1501 = vrot.lane.b32.xlu0 %v1420, 28
      %v1502 = vpop.permute.xlu0 %1501
      %1503 = vrot.lane.b32.xlu0 %v1421, 28
      %v1504 = vpop.permute.xlu0 %1503
      %1505 = vrot.lane.b32.xlu0 %v1422, 28
      %v1506 = vpop.permute.xlu0 %1505
      %1507 = vrot.lane.b32.xlu0 %v1423, 28
      %v1508 = vpop.permute.xlu0 %1507
      %1509 = vrot.lane.b32.xlu0 %v1424, 28
      %v1510 = vpop.permute.xlu0 %1509
      %1511 = vrot.lane.b32.xlu0 %v1425, 28
      %v1512 = vpop.permute.xlu0 %1511
      %1513 = vrot.lane.b32.xlu0 %v1426, 28
      %v1514 = vpop.permute.xlu0 %1513
      %1515 = vrot.lane.b32.xlu0 %v1427, 28
      %v1516 = vpop.permute.xlu0 %1515
      %1517 = vrot.lane.b32.xlu0 %v1428, 28
      %v1518 = vpop.permute.xlu0 %1517
      %1519 = vrot.lane.b32.xlu0 %v1429, 28
      %v1520 = vpop.permute.xlu0 %1519
      %1521 = vrot.lane.b32.xlu0 %v1430, 28
      %v1522 = vpop.permute.xlu0 %1521
      %1523 = vrot.lane.b32.xlu0 %v1431, 28
      %v1524 = vpop.permute.xlu0 %1523
      %1525 = vrot.lane.b32.xlu0 %v1432, 28
      %v1526 = vpop.permute.xlu0 %1525
      %1527 = vrot.lane.b32.xlu0 %v1433, 28
      %v1528 = vpop.permute.xlu0 %1527
      %1529 = vrot.lane.b32.xlu0 %v1434, 28
      %v1530 = vpop.permute.xlu0 %1529
      %vm1563 = vcmask 261344
      %1564 = vst.msk [vmem:[#allocation2] sm:$0xff] %vm1563, %v1468
      %1565 = vst.msk [vmem:[#allocation2 + $0x8] sm:$0xff] %vm1563, %v1470
      %1566 = vst.msk [vmem:[#allocation2 + $0x10] sm:$0xff] %vm1563, %v1472
      %1567 = vst.msk [vmem:[#allocation2 + $0x18] sm:$0xff] %vm1563, %v1474
      %1568 = vst.msk [vmem:[#allocation2 + $0x20] sm:$0xff] %vm1563, %v1476
      %1569 = vst.msk [vmem:[#allocation2 + $0x28] sm:$0xff] %vm1563, %v1478
      %1570 = vst.msk [vmem:[#allocation2 + $0x30] sm:$0xff] %vm1563, %v1480
      %1571 = vst.msk [vmem:[#allocation2 + $0x38] sm:$0xff] %vm1563, %v1482
      %1572 = vst.msk [vmem:[#allocation2 + $0x40] sm:$0xff] %vm1563, %v1484
      %1573 = vst.msk [vmem:[#allocation2 + $0x48] sm:$0xff] %vm1563, %v1486
      %1574 = vst.msk [vmem:[#allocation2 + $0x50] sm:$0xff] %vm1563, %v1488
      %1575 = vst.msk [vmem:[#allocation2 + $0x58] sm:$0xff] %vm1563, %v1490
      %1576 = vst.msk [vmem:[#allocation2 + $0x60] sm:$0xff] %vm1563, %v1492
      %1577 = vst.msk [vmem:[#allocation2 + $0x68] sm:$0xff] %vm1563, %v1494
      %1578 = vst.msk [vmem:[#allocation2 + $0x70] sm:$0xff] %vm1563, %v1496
      %1579 = vst.msk [vmem:[#allocation2 + $0x78] sm:$0xff] %vm1563, %v1498
      %1580 = vst.msk [vmem:[#allocation2 + $0x80] sm:$0xff] %vm1563, %v1500
      %1581 = vst.msk [vmem:[#allocation2 + $0x88] sm:$0xff] %vm1563, %v1502
      %1582 = vst.msk [vmem:[#allocation2 + $0x90] sm:$0xff] %vm1563, %v1504
      %1583 = vst.msk [vmem:[#allocation2 + $0x98] sm:$0xff] %vm1563, %v1506
      %1584 = vst.msk [vmem:[#allocation2 + $0xa0] sm:$0xff] %vm1563, %v1508
      %1585 = vst.msk [vmem:[#allocation2 + $0xa8] sm:$0xff] %vm1563, %v1510
      %1586 = vst.msk [vmem:[#allocation2 + $0xb0] sm:$0xff] %vm1563, %v1512
      %1587 = vst.msk [vmem:[#allocation2 + $0xb8] sm:$0xff] %vm1563, %v1514
      %1588 = vst.msk [vmem:[#allocation2 + $0xc0] sm:$0xff] %vm1563, %v1516
      %1589 = vst.msk [vmem:[#allocation2 + $0xc8] sm:$0xff] %vm1563, %v1518
      %1590 = vst.msk [vmem:[#allocation2 + $0xd0] sm:$0xff] %vm1563, %v1520
      %1591 = vst.msk [vmem:[#allocation2 + $0xd8] sm:$0xff] %vm1563, %v1522
      %1592 = vst.msk [vmem:[#allocation2 + $0xe0] sm:$0xff] %vm1563, %v1524
      %1593 = vst.msk [vmem:[#allocation2 + $0xe8] sm:$0xff] %vm1563, %v1526
      %1594 = vst.msk [vmem:[#allocation2 + $0xf0] sm:$0xff] %vm1563, %v1528
      %1595 = vst.msk [vmem:[#allocation2 + $0xf8] sm:$0xff] %vm1563, %v1530
      %v1596 = vld [vmem:[%s1209 + $0x2] sm:$0xff]
      %v1597 = vld [vmem:[%s1209 + $0x12] sm:$0xff]
      %v1598 = vld [vmem:[%s1209 + $0x22] sm:$0xff]
      %v1599 = vld [vmem:[%s1209 + $0x32] sm:$0xff]
      %v1600 = vld [vmem:[%s1209 + $0x42] sm:$0xff]
      %v1601 = vld [vmem:[%s1209 + $0x52] sm:$0xff]
      %v1602 = vld [vmem:[%s1209 + $0x62] sm:$0xff]
      %v1603 = vld [vmem:[%s1209 + $0x72] sm:$0xff]
      %v1604 = vld [vmem:[%s1209 + $0xa2] sm:$0xff]
      %v1605 = vld [vmem:[%s1209 + $0xb2] sm:$0xff]
      %v1606 = vld [vmem:[%s1209 + $0xc2] sm:$0xff]
      %v1607 = vld [vmem:[%s1209 + $0xd2] sm:$0xff]
      %v1608 = vld [vmem:[%s1209 + $0xe2] sm:$0xff]
      %v1609 = vld [vmem:[%s1209 + $0xf2] sm:$0xff]
      %v1610 = vld [vmem:[%s1209 + $0x102] sm:$0xff]
      %v1611 = vld [vmem:[%s1209 + $0x112] sm:$0xff]
      %v1612 = vld [vmem:[%s1209 + $0x142] sm:$0xff]
      %v1613 = vld [vmem:[%s1209 + $0x152] sm:$0xff]
      %v1614 = vld [vmem:[%s1209 + $0x162] sm:$0xff]
      %v1615 = vld [vmem:[%s1209 + $0x172] sm:$0xff]
      %v1616 = vld [vmem:[%s1209 + $0x182] sm:$0xff]
      %v1617 = vld [vmem:[%s1209 + $0x192] sm:$0xff]
      %v1618 = vld [vmem:[%s1209 + $0x1a2] sm:$0xff]
      %v1619 = vld [vmem:[%s1209 + $0x1b2] sm:$0xff]
      %v1620 = vld [vmem:[%s1209 + $0x1e2] sm:$0xff]
      %v1621 = vld [vmem:[%s1209 + $0x1f2] sm:$0xff]
      %v1622 = vld [vmem:[%s1209 + $0x202] sm:$0xff]
      %v1623 = vld [vmem:[%s1209 + $0x212] sm:$0xff]
      %v1624 = vld [vmem:[%s1209 + $0x222] sm:$0xff]
      %v1625 = vld [vmem:[%s1209 + $0x232] sm:$0xff]
      %v1626 = vld [vmem:[%s1209 + $0x242] sm:$0xff]
      %v1627 = vld [vmem:[%s1209 + $0x252] sm:$0xff]
      %1660 = vrot.lane.b32.xlu0 %v1596, 32
      %v1661 = vpop.permute.xlu0 %1660
      %1662 = vrot.lane.b32.xlu0 %v1597, 32
      %v1663 = vpop.permute.xlu0 %1662
      %1664 = vrot.lane.b32.xlu0 %v1598, 32
      %v1665 = vpop.permute.xlu0 %1664
      %1666 = vrot.lane.b32.xlu0 %v1599, 32
      %v1667 = vpop.permute.xlu0 %1666
      %1668 = vrot.lane.b32.xlu0 %v1600, 32
      %v1669 = vpop.permute.xlu0 %1668
      %1670 = vrot.lane.b32.xlu0 %v1601, 32
      %v1671 = vpop.permute.xlu0 %1670
      %1672 = vrot.lane.b32.xlu0 %v1602, 32
      %v1673 = vpop.permute.xlu0 %1672
      %1674 = vrot.lane.b32.xlu0 %v1603, 32
      %v1675 = vpop.permute.xlu0 %1674
      %1676 = vrot.lane.b32.xlu0 %v1604, 32
      %v1677 = vpop.permute.xlu0 %1676
      %1678 = vrot.lane.b32.xlu0 %v1605, 32
      %v1679 = vpop.permute.xlu0 %1678
      %1680 = vrot.lane.b32.xlu0 %v1606, 32
      %v1681 = vpop.permute.xlu0 %1680
      %1682 = vrot.lane.b32.xlu0 %v1607, 32
      %v1683 = vpop.permute.xlu0 %1682
      %1684 = vrot.lane.b32.xlu0 %v1608, 32
      %v1685 = vpop.permute.xlu0 %1684
      %1686 = vrot.lane.b32.xlu0 %v1609, 32
      %v1687 = vpop.permute.xlu0 %1686
      %1688 = vrot.lane.b32.xlu0 %v1610, 32
      %v1689 = vpop.permute.xlu0 %1688
      %1690 = vrot.lane.b32.xlu0 %v1611, 32
      %v1691 = vpop.permute.xlu0 %1690
      %1692 = vrot.lane.b32.xlu0 %v1612, 32
      %v1693 = vpop.permute.xlu0 %1692
      %1694 = vrot.lane.b32.xlu0 %v1613, 32
      %v1695 = vpop.permute.xlu0 %1694
      %1696 = vrot.lane.b32.xlu0 %v1614, 32
      %v1697 = vpop.permute.xlu0 %1696
      %1698 = vrot.lane.b32.xlu0 %v1615, 32
      %v1699 = vpop.permute.xlu0 %1698
      %1700 = vrot.lane.b32.xlu0 %v1616, 32
      %v1701 = vpop.permute.xlu0 %1700
      %1702 = vrot.lane.b32.xlu0 %v1617, 32
      %v1703 = vpop.permute.xlu0 %1702
      %1704 = vrot.lane.b32.xlu0 %v1618, 32
      %v1705 = vpop.permute.xlu0 %1704
      %1706 = vrot.lane.b32.xlu0 %v1619, 32
      %v1707 = vpop.permute.xlu0 %1706
      %1708 = vrot.lane.b32.xlu0 %v1620, 32
      %v1709 = vpop.permute.xlu0 %1708
      %1710 = vrot.lane.b32.xlu0 %v1621, 32
      %v1711 = vpop.permute.xlu0 %1710
      %1712 = vrot.lane.b32.xlu0 %v1622, 32
      %v1713 = vpop.permute.xlu0 %1712
      %1714 = vrot.lane.b32.xlu0 %v1623, 32
      %v1715 = vpop.permute.xlu0 %1714
      %1716 = vrot.lane.b32.xlu0 %v1624, 32
      %v1717 = vpop.permute.xlu0 %1716
      %1718 = vrot.lane.b32.xlu0 %v1625, 32
      %v1719 = vpop.permute.xlu0 %1718
      %1720 = vrot.lane.b32.xlu0 %v1626, 32
      %v1721 = vpop.permute.xlu0 %1720
      %1722 = vrot.lane.b32.xlu0 %v1627, 32
      %v1723 = vpop.permute.xlu0 %1722
      %vm1756 = vcmask 294144
      %1757 = vst.msk [vmem:[#allocation2] sm:$0xff] %vm1756, %v1661
      %1758 = vst.msk [vmem:[#allocation2 + $0x8] sm:$0xff] %vm1756, %v1663
      %1759 = vst.msk [vmem:[#allocation2 + $0x10] sm:$0xff] %vm1756, %v1665
      %1760 = vst.msk [vmem:[#allocation2 + $0x18] sm:$0xff] %vm1756, %v1667
      %1761 = vst.msk [vmem:[#allocation2 + $0x20] sm:$0xff] %vm1756, %v1669
      %1762 = vst.msk [vmem:[#allocation2 + $0x28] sm:$0xff] %vm1756, %v1671
      %1763 = vst.msk [vmem:[#allocation2 + $0x30] sm:$0xff] %vm1756, %v1673
      %1764 = vst.msk [vmem:[#allocation2 + $0x38] sm:$0xff] %vm1756, %v1675
      %1765 = vst.msk [vmem:[#allocation2 + $0x40] sm:$0xff] %vm1756, %v1677
      %1766 = vst.msk [vmem:[#allocation2 + $0x48] sm:$0xff] %vm1756, %v1679
      %1767 = vst.msk [vmem:[#allocation2 + $0x50] sm:$0xff] %vm1756, %v1681
      %1768 = vst.msk [vmem:[#allocation2 + $0x58] sm:$0xff] %vm1756, %v1683
      %1769 = vst.msk [vmem:[#allocation2 + $0x60] sm:$0xff] %vm1756, %v1685
      %1770 = vst.msk [vmem:[#allocation2 + $0x68] sm:$0xff] %vm1756, %v1687
      %1771 = vst.msk [vmem:[#allocation2 + $0x70] sm:$0xff] %vm1756, %v1689
      %1772 = vst.msk [vmem:[#allocation2 + $0x78] sm:$0xff] %vm1756, %v1691
      %1773 = vst.msk [vmem:[#allocation2 + $0x80] sm:$0xff] %vm1756, %v1693
      %1774 = vst.msk [vmem:[#allocation2 + $0x88] sm:$0xff] %vm1756, %v1695
      %1775 = vst.msk [vmem:[#allocation2 + $0x90] sm:$0xff] %vm1756, %v1697
      %1776 = vst.msk [vmem:[#allocation2 + $0x98] sm:$0xff] %vm1756, %v1699
      %1777 = vst.msk [vmem:[#allocation2 + $0xa0] sm:$0xff] %vm1756, %v1701
      %1778 = vst.msk [vmem:[#allocation2 + $0xa8] sm:$0xff] %vm1756, %v1703
      %1779 = vst.msk [vmem:[#allocation2 + $0xb0] sm:$0xff] %vm1756, %v1705
      %1780 = vst.msk [vmem:[#allocation2 + $0xb8] sm:$0xff] %vm1756, %v1707
      %1781 = vst.msk [vmem:[#allocation2 + $0xc0] sm:$0xff] %vm1756, %v1709
      %1782 = vst.msk [vmem:[#allocation2 + $0xc8] sm:$0xff] %vm1756, %v1711
      %1783 = vst.msk [vmem:[#allocation2 + $0xd0] sm:$0xff] %vm1756, %v1713
      %1784 = vst.msk [vmem:[#allocation2 + $0xd8] sm:$0xff] %vm1756, %v1715
      %1785 = vst.msk [vmem:[#allocation2 + $0xe0] sm:$0xff] %vm1756, %v1717
      %1786 = vst.msk [vmem:[#allocation2 + $0xe8] sm:$0xff] %vm1756, %v1719
      %1787 = vst.msk [vmem:[#allocation2 + $0xf0] sm:$0xff] %vm1756, %v1721
      %1788 = vst.msk [vmem:[#allocation2 + $0xf8] sm:$0xff] %vm1756, %v1723
      %s1789 = scalar_lea.vmem %s138, 160
      %v1790 = vld [vmem:[%s1789] sm:$0xff]
      %v1791 = vld [vmem:[%s1789 + $0x10] sm:$0xff]
      %v1792 = vld [vmem:[%s1789 + $0x20] sm:$0xff]
      %v1793 = vld [vmem:[%s1789 + $0x30] sm:$0xff]
      %v1794 = vld [vmem:[%s1789 + $0x40] sm:$0xff]
      %v1795 = vld [vmem:[%s1789 + $0x50] sm:$0xff]
      %v1796 = vld [vmem:[%s1789 + $0x60] sm:$0xff]
      %v1797 = vld [vmem:[%s1789 + $0x70] sm:$0xff]
      %v1798 = vld [vmem:[%s1789 + $0xa0] sm:$0xff]
      %v1799 = vld [vmem:[%s1789 + $0xb0] sm:$0xff]
      %v1800 = vld [vmem:[%s1789 + $0xc0] sm:$0xff]
      %v1801 = vld [vmem:[%s1789 + $0xd0] sm:$0xff]
      %v1802 = vld [vmem:[%s1789 + $0xe0] sm:$0xff]
      %v1803 = vld [vmem:[%s1789 + $0xf0] sm:$0xff]
      %v1804 = vld [vmem:[%s1789 + $0x100] sm:$0xff]
      %v1805 = vld [vmem:[%s1789 + $0x110] sm:$0xff]
      %v1806 = vld [vmem:[%s1789 + $0x140] sm:$0xff]
      %v1807 = vld [vmem:[%s1789 + $0x150] sm:$0xff]
      %v1808 = vld [vmem:[%s1789 + $0x160] sm:$0xff]
      %v1809 = vld [vmem:[%s1789 + $0x170] sm:$0xff]
      %v1810 = vld [vmem:[%s1789 + $0x180] sm:$0xff]
      %v1811 = vld [vmem:[%s1789 + $0x190] sm:$0xff]
      %v1812 = vld [vmem:[%s1789 + $0x1a0] sm:$0xff]
      %v1813 = vld [vmem:[%s1789 + $0x1b0] sm:$0xff]
      %v1814 = vld [vmem:[%s1789 + $0x1e0] sm:$0xff]
      %v1815 = vld [vmem:[%s1789 + $0x1f0] sm:$0xff]
      %v1816 = vld [vmem:[%s1789 + $0x200] sm:$0xff]
      %v1817 = vld [vmem:[%s1789 + $0x210] sm:$0xff]
      %v1818 = vld [vmem:[%s1789 + $0x220] sm:$0xff]
      %v1819 = vld [vmem:[%s1789 + $0x230] sm:$0xff]
      %v1820 = vld [vmem:[%s1789 + $0x240] sm:$0xff]
      %v1821 = vld [vmem:[%s1789 + $0x250] sm:$0xff]
      %1854 = vrot.lane.b32.xlu0 %v1790, 36
      %v1855 = vpop.permute.xlu0 %1854
      %1856 = vrot.lane.b32.xlu0 %v1791, 36
      %v1857 = vpop.permute.xlu0 %1856
      %1858 = vrot.lane.b32.xlu0 %v1792, 36
      %v1859 = vpop.permute.xlu0 %1858
      %1860 = vrot.lane.b32.xlu0 %v1793, 36
      %v1861 = vpop.permute.xlu0 %1860
      %1862 = vrot.lane.b32.xlu0 %v1794, 36
      %v1863 = vpop.permute.xlu0 %1862
      %1864 = vrot.lane.b32.xlu0 %v1795, 36
      %v1865 = vpop.permute.xlu0 %1864
      %1866 = vrot.lane.b32.xlu0 %v1796, 36
      %v1867 = vpop.permute.xlu0 %1866
      %1868 = vrot.lane.b32.xlu0 %v1797, 36
      %v1869 = vpop.permute.xlu0 %1868
      %1870 = vrot.lane.b32.xlu0 %v1798, 36
      %v1871 = vpop.permute.xlu0 %1870
      %1872 = vrot.lane.b32.xlu0 %v1799, 36
      %v1873 = vpop.permute.xlu0 %1872
      %1874 = vrot.lane.b32.xlu0 %v1800, 36
      %v1875 = vpop.permute.xlu0 %1874
      %1876 = vrot.lane.b32.xlu0 %v1801, 36
      %v1877 = vpop.permute.xlu0 %1876
      %1878 = vrot.lane.b32.xlu0 %v1802, 36
      %v1879 = vpop.permute.xlu0 %1878
      %1880 = vrot.lane.b32.xlu0 %v1803, 36
      %v1881 = vpop.permute.xlu0 %1880
      %1882 = vrot.lane.b32.xlu0 %v1804, 36
      %v1883 = vpop.permute.xlu0 %1882
      %1884 = vrot.lane.b32.xlu0 %v1805, 36
      %v1885 = vpop.permute.xlu0 %1884
      %1886 = vrot.lane.b32.xlu0 %v1806, 36
      %v1887 = vpop.permute.xlu0 %1886
      %1888 = vrot.lane.b32.xlu0 %v1807, 36
      %v1889 = vpop.permute.xlu0 %1888
      %1890 = vrot.lane.b32.xlu0 %v1808, 36
      %v1891 = vpop.permute.xlu0 %1890
      %1892 = vrot.lane.b32.xlu0 %v1809, 36
      %v1893 = vpop.permute.xlu0 %1892
      %1894 = vrot.lane.b32.xlu0 %v1810, 36
      %v1895 = vpop.permute.xlu0 %1894
      %1896 = vrot.lane.b32.xlu0 %v1811, 36
      %v1897 = vpop.permute.xlu0 %1896
      %1898 = vrot.lane.b32.xlu0 %v1812, 36
      %v1899 = vpop.permute.xlu0 %1898
      %1900 = vrot.lane.b32.xlu0 %v1813, 36
      %v1901 = vpop.permute.xlu0 %1900
      %1902 = vrot.lane.b32.xlu0 %v1814, 36
      %v1903 = vpop.permute.xlu0 %1902
      %1904 = vrot.lane.b32.xlu0 %v1815, 36
      %v1905 = vpop.permute.xlu0 %1904
      %1906 = vrot.lane.b32.xlu0 %v1816, 36
      %v1907 = vpop.permute.xlu0 %1906
      %1908 = vrot.lane.b32.xlu0 %v1817, 36
      %v1909 = vpop.permute.xlu0 %1908
      %1910 = vrot.lane.b32.xlu0 %v1818, 36
      %v1911 = vpop.permute.xlu0 %1910
      %1912 = vrot.lane.b32.xlu0 %v1819, 36
      %v1913 = vpop.permute.xlu0 %1912
      %1914 = vrot.lane.b32.xlu0 %v1820, 36
      %v1915 = vpop.permute.xlu0 %1914
      %1916 = vrot.lane.b32.xlu0 %v1821, 36
      %v1917 = vpop.permute.xlu0 %1916
      %vm1950 = vcmask 326944
      %1951 = vst.msk [vmem:[#allocation2] sm:$0xff] %vm1950, %v1855
      %1952 = vst.msk [vmem:[#allocation2 + $0x8] sm:$0xff] %vm1950, %v1857
      %1953 = vst.msk [vmem:[#allocation2 + $0x10] sm:$0xff] %vm1950, %v1859
      %1954 = vst.msk [vmem:[#allocation2 + $0x18] sm:$0xff] %vm1950, %v1861
      %1955 = vst.msk [vmem:[#allocation2 + $0x20] sm:$0xff] %vm1950, %v1863
      %1956 = vst.msk [vmem:[#allocation2 + $0x28] sm:$0xff] %vm1950, %v1865
      %1957 = vst.msk [vmem:[#allocation2 + $0x30] sm:$0xff] %vm1950, %v1867
      %1958 = vst.msk [vmem:[#allocation2 + $0x38] sm:$0xff] %vm1950, %v1869
      %1959 = vst.msk [vmem:[#allocation2 + $0x40] sm:$0xff] %vm1950, %v1871
      %1960 = vst.msk [vmem:[#allocation2 + $0x48] sm:$0xff] %vm1950, %v1873
      %1961 = vst.msk [vmem:[#allocation2 + $0x50] sm:$0xff] %vm1950, %v1875
      %1962 = vst.msk [vmem:[#allocation2 + $0x58] sm:$0xff] %vm1950, %v1877
      %1963 = vst.msk [vmem:[#allocation2 + $0x60] sm:$0xff] %vm1950, %v1879
      %1964 = vst.msk [vmem:[#allocation2 + $0x68] sm:$0xff] %vm1950, %v1881
      %1965 = vst.msk [vmem:[#allocation2 + $0x70] sm:$0xff] %vm1950, %v1883
      %1966 = vst.msk [vmem:[#allocation2 + $0x78] sm:$0xff] %vm1950, %v1885
      %1967 = vst.msk [vmem:[#allocation2 + $0x80] sm:$0xff] %vm1950, %v1887
      %1968 = vst.msk [vmem:[#allocation2 + $0x88] sm:$0xff] %vm1950, %v1889
      %1969 = vst.msk [vmem:[#allocation2 + $0x90] sm:$0xff] %vm1950, %v1891
      %1970 = vst.msk [vmem:[#allocation2 + $0x98] sm:$0xff] %vm1950, %v1893
      %1971 = vst.msk [vmem:[#allocation2 + $0xa0] sm:$0xff] %vm1950, %v1895
      %1972 = vst.msk [vmem:[#allocation2 + $0xa8] sm:$0xff] %vm1950, %v1897
      %1973 = vst.msk [vmem:[#allocation2 + $0xb0] sm:$0xff] %vm1950, %v1899
      %1974 = vst.msk [vmem:[#allocation2 + $0xb8] sm:$0xff] %vm1950, %v1901
      %1975 = vst.msk [vmem:[#allocation2 + $0xc0] sm:$0xff] %vm1950, %v1903
      %1976 = vst.msk [vmem:[#allocation2 + $0xc8] sm:$0xff] %vm1950, %v1905
      %1977 = vst.msk [vmem:[#allocation2 + $0xd0] sm:$0xff] %vm1950, %v1907
      %1978 = vst.msk [vmem:[#allocation2 + $0xd8] sm:$0xff] %vm1950, %v1909
      %1979 = vst.msk [vmem:[#allocation2 + $0xe0] sm:$0xff] %vm1950, %v1911
      %1980 = vst.msk [vmem:[#allocation2 + $0xe8] sm:$0xff] %vm1950, %v1913
      %1981 = vst.msk [vmem:[#allocation2 + $0xf0] sm:$0xff] %vm1950, %v1915
      %1982 = vst.msk [vmem:[#allocation2 + $0xf8] sm:$0xff] %vm1950, %v1917
      %v1983 = vld [vmem:[%s1789 + $0x1] sm:$0xff]
      %v1984 = vld [vmem:[%s1789 + $0x11] sm:$0xff]
      %v1985 = vld [vmem:[%s1789 + $0x21] sm:$0xff]
      %v1986 = vld [vmem:[%s1789 + $0x31] sm:$0xff]
      %v1987 = vld [vmem:[%s1789 + $0x41] sm:$0xff]
      %v1988 = vld [vmem:[%s1789 + $0x51] sm:$0xff]
      %v1989 = vld [vmem:[%s1789 + $0x61] sm:$0xff]
      %v1990 = vld [vmem:[%s1789 + $0x71] sm:$0xff]
      %v1991 = vld [vmem:[%s1789 + $0xa1] sm:$0xff]
      %v1992 = vld [vmem:[%s1789 + $0xb1] sm:$0xff]
      %v1993 = vld [vmem:[%s1789 + $0xc1] sm:$0xff]
      %v1994 = vld [vmem:[%s1789 + $0xd1] sm:$0xff]
      %v1995 = vld [vmem:[%s1789 + $0xe1] sm:$0xff]
      %v1996 = vld [vmem:[%s1789 + $0xf1] sm:$0xff]
      %v1997 = vld [vmem:[%s1789 + $0x101] sm:$0xff]
      %v1998 = vld [vmem:[%s1789 + $0x111] sm:$0xff]
      %v1999 = vld [vmem:[%s1789 + $0x141] sm:$0xff]
      %v2000 = vld [vmem:[%s1789 + $0x151] sm:$0xff]
      %v2001 = vld [vmem:[%s1789 + $0x161] sm:$0xff]
      %v2002 = vld [vmem:[%s1789 + $0x171] sm:$0xff]
      %v2003 = vld [vmem:[%s1789 + $0x181] sm:$0xff]
      %v2004 = vld [vmem:[%s1789 + $0x191] sm:$0xff]
      %v2005 = vld [vmem:[%s1789 + $0x1a1] sm:$0xff]
      %v2006 = vld [vmem:[%s1789 + $0x1b1] sm:$0xff]
      %v2007 = vld [vmem:[%s1789 + $0x1e1] sm:$0xff]
      %v2008 = vld [vmem:[%s1789 + $0x1f1] sm:$0xff]
      %v2009 = vld [vmem:[%s1789 + $0x201] sm:$0xff]
      %v2010 = vld [vmem:[%s1789 + $0x211] sm:$0xff]
      %v2011 = vld [vmem:[%s1789 + $0x221] sm:$0xff]
      %v2012 = vld [vmem:[%s1789 + $0x231] sm:$0xff]
      %v2013 = vld [vmem:[%s1789 + $0x241] sm:$0xff]
      %v2014 = vld [vmem:[%s1789 + $0x251] sm:$0xff]
      %2047 = vrot.lane.b32.xlu0 %v1983, 40
      %v2048 = vpop.permute.xlu0 %2047
      %2049 = vrot.lane.b32.xlu0 %v1984, 40
      %v2050 = vpop.permute.xlu0 %2049
      %2051 = vrot.lane.b32.xlu0 %v1985, 40
      %v2052 = vpop.permute.xlu0 %2051
      %2053 = vrot.lane.b32.xlu0 %v1986, 40
      %v2054 = vpop.permute.xlu0 %2053
      %2055 = vrot.lane.b32.xlu0 %v1987, 40
      %v2056 = vpop.permute.xlu0 %2055
      %2057 = vrot.lane.b32.xlu0 %v1988, 40
      %v2058 = vpop.permute.xlu0 %2057
      %2059 = vrot.lane.b32.xlu0 %v1989, 40
      %v2060 = vpop.permute.xlu0 %2059
      %2061 = vrot.lane.b32.xlu0 %v1990, 40
      %v2062 = vpop.permute.xlu0 %2061
      %2063 = vrot.lane.b32.xlu0 %v1991, 40
      %v2064 = vpop.permute.xlu0 %2063
      %2065 = vrot.lane.b32.xlu0 %v1992, 40
      %v2066 = vpop.permute.xlu0 %2065
      %2067 = vrot.lane.b32.xlu0 %v1993, 40
      %v2068 = vpop.permute.xlu0 %2067
      %2069 = vrot.lane.b32.xlu0 %v1994, 40
      %v2070 = vpop.permute.xlu0 %2069
      %2071 = vrot.lane.b32.xlu0 %v1995, 40
      %v2072 = vpop.permute.xlu0 %2071
      %2073 = vrot.lane.b32.xlu0 %v1996, 40
      %v2074 = vpop.permute.xlu0 %2073
      %2075 = vrot.lane.b32.xlu0 %v1997, 40
      %v2076 = vpop.permute.xlu0 %2075
      %2077 = vrot.lane.b32.xlu0 %v1998, 40
      %v2078 = vpop.permute.xlu0 %2077
      %2079 = vrot.lane.b32.xlu0 %v1999, 40
      %v2080 = vpop.permute.xlu0 %2079
      %2081 = vrot.lane.b32.xlu0 %v2000, 40
      %v2082 = vpop.permute.xlu0 %2081
      %2083 = vrot.lane.b32.xlu0 %v2001, 40
      %v2084 = vpop.permute.xlu0 %2083
      %2085 = vrot.lane.b32.xlu0 %v2002, 40
      %v2086 = vpop.permute.xlu0 %2085
      %2087 = vrot.lane.b32.xlu0 %v2003, 40
      %v2088 = vpop.permute.xlu0 %2087
      %2089 = vrot.lane.b32.xlu0 %v2004, 40
      %v2090 = vpop.permute.xlu0 %2089
      %2091 = vrot.lane.b32.xlu0 %v2005, 40
      %v2092 = vpop.permute.xlu0 %2091
      %2093 = vrot.lane.b32.xlu0 %v2006, 40
      %v2094 = vpop.permute.xlu0 %2093
      %2095 = vrot.lane.b32.xlu0 %v2007, 40
      %v2096 = vpop.permute.xlu0 %2095
      %2097 = vrot.lane.b32.xlu0 %v2008, 40
      %v2098 = vpop.permute.xlu0 %2097
      %2099 = vrot.lane.b32.xlu0 %v2009, 40
      %v2100 = vpop.permute.xlu0 %2099
      %2101 = vrot.lane.b32.xlu0 %v2010, 40
      %v2102 = vpop.permute.xlu0 %2101
      %2103 = vrot.lane.b32.xlu0 %v2011, 40
      %v2104 = vpop.permute.xlu0 %2103
      %2105 = vrot.lane.b32.xlu0 %v2012, 40
      %v2106 = vpop.permute.xlu0 %2105
      %2107 = vrot.lane.b32.xlu0 %v2013, 40
      %v2108 = vpop.permute.xlu0 %2107
      %2109 = vrot.lane.b32.xlu0 %v2014, 40
      %v2110 = vpop.permute.xlu0 %2109
      %vm2143 = vcmask 359744
      %2144 = vst.msk [vmem:[#allocation2] sm:$0xff] %vm2143, %v2048
      %2145 = vst.msk [vmem:[#allocation2 + $0x8] sm:$0xff] %vm2143, %v2050
      %2146 = vst.msk [vmem:[#allocation2 + $0x10] sm:$0xff] %vm2143, %v2052
      %2147 = vst.msk [vmem:[#allocation2 + $0x18] sm:$0xff] %vm2143, %v2054
      %2148 = vst.msk [vmem:[#allocation2 + $0x20] sm:$0xff] %vm2143, %v2056
      %2149 = vst.msk [vmem:[#allocation2 + $0x28] sm:$0xff] %vm2143, %v2058
      %2150 = vst.msk [vmem:[#allocation2 + $0x30] sm:$0xff] %vm2143, %v2060
      %2151 = vst.msk [vmem:[#allocation2 + $0x38] sm:$0xff] %vm2143, %v2062
      %2152 = vst.msk [vmem:[#allocation2 + $0x40] sm:$0xff] %vm2143, %v2064
      %2153 = vst.msk [vmem:[#allocation2 + $0x48] sm:$0xff] %vm2143, %v2066
      %2154 = vst.msk [vmem:[#allocation2 + $0x50] sm:$0xff] %vm2143, %v2068
      %2155 = vst.msk [vmem:[#allocation2 + $0x58] sm:$0xff] %vm2143, %v2070
      %2156 = vst.msk [vmem:[#allocation2 + $0x60] sm:$0xff] %vm2143, %v2072
      %2157 = vst.msk [vmem:[#allocation2 + $0x68] sm:$0xff] %vm2143, %v2074
      %2158 = vst.msk [vmem:[#allocation2 + $0x70] sm:$0xff] %vm2143, %v2076
      %2159 = vst.msk [vmem:[#allocation2 + $0x78] sm:$0xff] %vm2143, %v2078
      %2160 = vst.msk [vmem:[#allocation2 + $0x80] sm:$0xff] %vm2143, %v2080
      %2161 = vst.msk [vmem:[#allocation2 + $0x88] sm:$0xff] %vm2143, %v2082
      %2162 = vst.msk [vmem:[#allocation2 + $0x90] sm:$0xff] %vm2143, %v2084
      %2163 = vst.msk [vmem:[#allocation2 + $0x98] sm:$0xff] %vm2143, %v2086
      %2164 = vst.msk [vmem:[#allocation2 + $0xa0] sm:$0xff] %vm2143, %v2088
      %2165 = vst.msk [vmem:[#allocation2 + $0xa8] sm:$0xff] %vm2143, %v2090
      %2166 = vst.msk [vmem:[#allocation2 + $0xb0] sm:$0xff] %vm2143, %v2092
      %2167 = vst.msk [vmem:[#allocation2 + $0xb8] sm:$0xff] %vm2143, %v2094
      %2168 = vst.msk [vmem:[#allocation2 + $0xc0] sm:$0xff] %vm2143, %v2096
      %2169 = vst.msk [vmem:[#allocation2 + $0xc8] sm:$0xff] %vm2143, %v2098
      %2170 = vst.msk [vmem:[#allocation2 + $0xd0] sm:$0xff] %vm2143, %v2100
      %2171 = vst.msk [vmem:[#allocation2 + $0xd8] sm:$0xff] %vm2143, %v2102
      %2172 = vst.msk [vmem:[#allocation2 + $0xe0] sm:$0xff] %vm2143, %v2104
      %2173 = vst.msk [vmem:[#allocation2 + $0xe8] sm:$0xff] %vm2143, %v2106
      %2174 = vst.msk [vmem:[#allocation2 + $0xf0] sm:$0xff] %vm2143, %v2108
      %2175 = vst.msk [vmem:[#allocation2 + $0xf8] sm:$0xff] %vm2143, %v2110
      %v2176 = vld [vmem:[%s1789 + $0x2] sm:$0xff]
      %v2177 = vld [vmem:[%s1789 + $0x12] sm:$0xff]
      %v2178 = vld [vmem:[%s1789 + $0x22] sm:$0xff]
      %v2179 = vld [vmem:[%s1789 + $0x32] sm:$0xff]
      %v2180 = vld [vmem:[%s1789 + $0x42] sm:$0xff]
      %v2181 = vld [vmem:[%s1789 + $0x52] sm:$0xff]
      %v2182 = vld [vmem:[%s1789 + $0x62] sm:$0xff]
      %v2183 = vld [vmem:[%s1789 + $0x72] sm:$0xff]
      %v2184 = vld [vmem:[%s1789 + $0xa2] sm:$0xff]
      %v2185 = vld [vmem:[%s1789 + $0xb2] sm:$0xff]
      %v2186 = vld [vmem:[%s1789 + $0xc2] sm:$0xff]
      %v2187 = vld [vmem:[%s1789 + $0xd2] sm:$0xff]
      %v2188 = vld [vmem:[%s1789 + $0xe2] sm:$0xff]
      %v2189 = vld [vmem:[%s1789 + $0xf2] sm:$0xff]
      %v2190 = vld [vmem:[%s1789 + $0x102] sm:$0xff]
      %v2191 = vld [vmem:[%s1789 + $0x112] sm:$0xff]
      %v2192 = vld [vmem:[%s1789 + $0x142] sm:$0xff]
      %v2193 = vld [vmem:[%s1789 + $0x152] sm:$0xff]
      %v2194 = vld [vmem:[%s1789 + $0x162] sm:$0xff]
      %v2195 = vld [vmem:[%s1789 + $0x172] sm:$0xff]
      %v2196 = vld [vmem:[%s1789 + $0x182] sm:$0xff]
      %v2197 = vld [vmem:[%s1789 + $0x192] sm:$0xff]
      %v2198 = vld [vmem:[%s1789 + $0x1a2] sm:$0xff]
      %v2199 = vld [vmem:[%s1789 + $0x1b2] sm:$0xff]
      %v2200 = vld [vmem:[%s1789 + $0x1e2] sm:$0xff]
      %v2201 = vld [vmem:[%s1789 + $0x1f2] sm:$0xff]
      %v2202 = vld [vmem:[%s1789 + $0x202] sm:$0xff]
      %v2203 = vld [vmem:[%s1789 + $0x212] sm:$0xff]
      %v2204 = vld [vmem:[%s1789 + $0x222] sm:$0xff]
      %v2205 = vld [vmem:[%s1789 + $0x232] sm:$0xff]
      %v2206 = vld [vmem:[%s1789 + $0x242] sm:$0xff]
      %v2207 = vld [vmem:[%s1789 + $0x252] sm:$0xff]
      %2240 = vrot.lane.b32.xlu0 %v2176, 44
      %v2241 = vpop.permute.xlu0 %2240
      %2242 = vrot.lane.b32.xlu0 %v2177, 44
      %v2243 = vpop.permute.xlu0 %2242
      %2244 = vrot.lane.b32.xlu0 %v2178, 44
      %v2245 = vpop.permute.xlu0 %2244
      %2246 = vrot.lane.b32.xlu0 %v2179, 44
      %v2247 = vpop.permute.xlu0 %2246
      %2248 = vrot.lane.b32.xlu0 %v2180, 44
      %v2249 = vpop.permute.xlu0 %2248
      %2250 = vrot.lane.b32.xlu0 %v2181, 44
      %v2251 = vpop.permute.xlu0 %2250
      %2252 = vrot.lane.b32.xlu0 %v2182, 44
      %v2253 = vpop.permute.xlu0 %2252
      %2254 = vrot.lane.b32.xlu0 %v2183, 44
      %v2255 = vpop.permute.xlu0 %2254
      %2256 = vrot.lane.b32.xlu0 %v2184, 44
      %v2257 = vpop.permute.xlu0 %2256
      %2258 = vrot.lane.b32.xlu0 %v2185, 44
      %v2259 = vpop.permute.xlu0 %2258
      %2260 = vrot.lane.b32.xlu0 %v2186, 44
      %v2261 = vpop.permute.xlu0 %2260
      %2262 = vrot.lane.b32.xlu0 %v2187, 44
      %v2263 = vpop.permute.xlu0 %2262
      %2264 = vrot.lane.b32.xlu0 %v2188, 44
      %v2265 = vpop.permute.xlu0 %2264
      %2266 = vrot.lane.b32.xlu0 %v2189, 44
      %v2267 = vpop.permute.xlu0 %2266
      %2268 = vrot.lane.b32.xlu0 %v2190, 44
      %v2269 = vpop.permute.xlu0 %2268
      %2270 = vrot.lane.b32.xlu0 %v2191, 44
      %v2271 = vpop.permute.xlu0 %2270
      %2272 = vrot.lane.b32.xlu0 %v2192, 44
      %v2273 = vpop.permute.xlu0 %2272
      %2274 = vrot.lane.b32.xlu0 %v2193, 44
      %v2275 = vpop.permute.xlu0 %2274
      %2276 = vrot.lane.b32.xlu0 %v2194, 44
      %v2277 = vpop.permute.xlu0 %2276
      %2278 = vrot.lane.b32.xlu0 %v2195, 44
      %v2279 = vpop.permute.xlu0 %2278
      %2280 = vrot.lane.b32.xlu0 %v2196, 44
      %v2281 = vpop.permute.xlu0 %2280
      %2282 = vrot.lane.b32.xlu0 %v2197, 44
      %v2283 = vpop.permute.xlu0 %2282
      %2284 = vrot.lane.b32.xlu0 %v2198, 44
      %v2285 = vpop.permute.xlu0 %2284
      %2286 = vrot.lane.b32.xlu0 %v2199, 44
      %v2287 = vpop.permute.xlu0 %2286
      %2288 = vrot.lane.b32.xlu0 %v2200, 44
      %v2289 = vpop.permute.xlu0 %2288
      %2290 = vrot.lane.b32.xlu0 %v2201, 44
      %v2291 = vpop.permute.xlu0 %2290
      %2292 = vrot.lane.b32.xlu0 %v2202, 44
      %v2293 = vpop.permute.xlu0 %2292
      %2294 = vrot.lane.b32.xlu0 %v2203, 44
      %v2295 = vpop.permute.xlu0 %2294
      %2296 = vrot.lane.b32.xlu0 %v2204, 44
      %v2297 = vpop.permute.xlu0 %2296
      %2298 = vrot.lane.b32.xlu0 %v2205, 44
      %v2299 = vpop.permute.xlu0 %2298
      %2300 = vrot.lane.b32.xlu0 %v2206, 44
      %v2301 = vpop.permute.xlu0 %2300
      %2302 = vrot.lane.b32.xlu0 %v2207, 44
      %v2303 = vpop.permute.xlu0 %2302
      %vm2336 = vcmask 392544
      %2337 = vst.msk [vmem:[#allocation2] sm:$0xff] %vm2336, %v2241
      %2338 = vst.msk [vmem:[#allocation2 + $0x8] sm:$0xff] %vm2336, %v2243
      %2339 = vst.msk [vmem:[#allocation2 + $0x10] sm:$0xff] %vm2336, %v2245
      %2340 = vst.msk [vmem:[#allocation2 + $0x18] sm:$0xff] %vm2336, %v2247
      %2341 = vst.msk [vmem:[#allocation2 + $0x20] sm:$0xff] %vm2336, %v2249
      %2342 = vst.msk [vmem:[#allocation2 + $0x28] sm:$0xff] %vm2336, %v2251
      %2343 = vst.msk [vmem:[#allocation2 + $0x30] sm:$0xff] %vm2336, %v2253
      %2344 = vst.msk [vmem:[#allocation2 + $0x38] sm:$0xff] %vm2336, %v2255
      %2345 = vst.msk [vmem:[#allocation2 + $0x40] sm:$0xff] %vm2336, %v2257
      %2346 = vst.msk [vmem:[#allocation2 + $0x48] sm:$0xff] %vm2336, %v2259
      %2347 = vst.msk [vmem:[#allocation2 + $0x50] sm:$0xff] %vm2336, %v2261
      %2348 = vst.msk [vmem:[#allocation2 + $0x58] sm:$0xff] %vm2336, %v2263
      %2349 = vst.msk [vmem:[#allocation2 + $0x60] sm:$0xff] %vm2336, %v2265
      %2350 = vst.msk [vmem:[#allocation2 + $0x68] sm:$0xff] %vm2336, %v2267
      %2351 = vst.msk [vmem:[#allocation2 + $0x70] sm:$0xff] %vm2336, %v2269
      %2352 = vst.msk [vmem:[#allocation2 + $0x78] sm:$0xff] %vm2336, %v2271
      %2353 = vst.msk [vmem:[#allocation2 + $0x80] sm:$0xff] %vm2336, %v2273
      %2354 = vst.msk [vmem:[#allocation2 + $0x88] sm:$0xff] %vm2336, %v2275
      %2355 = vst.msk [vmem:[#allocation2 + $0x90] sm:$0xff] %vm2336, %v2277
      %2356 = vst.msk [vmem:[#allocation2 + $0x98] sm:$0xff] %vm2336, %v2279
      %2357 = vst.msk [vmem:[#allocation2 + $0xa0] sm:$0xff] %vm2336, %v2281
      %2358 = vst.msk [vmem:[#allocation2 + $0xa8] sm:$0xff] %vm2336, %v2283
      %2359 = vst.msk [vmem:[#allocation2 + $0xb0] sm:$0xff] %vm2336, %v2285
      %2360 = vst.msk [vmem:[#allocation2 + $0xb8] sm:$0xff] %vm2336, %v2287
      %2361 = vst.msk [vmem:[#allocation2 + $0xc0] sm:$0xff] %vm2336, %v2289
      %2362 = vst.msk [vmem:[#allocation2 + $0xc8] sm:$0xff] %vm2336, %v2291
      %2363 = vst.msk [vmem:[#allocation2 + $0xd0] sm:$0xff] %vm2336, %v2293
      %2364 = vst.msk [vmem:[#allocation2 + $0xd8] sm:$0xff] %vm2336, %v2295
      %2365 = vst.msk [vmem:[#allocation2 + $0xe0] sm:$0xff] %vm2336, %v2297
      %2366 = vst.msk [vmem:[#allocation2 + $0xe8] sm:$0xff] %vm2336, %v2299
      %2367 = vst.msk [vmem:[#allocation2 + $0xf0] sm:$0xff] %vm2336, %v2301
      %2368 = vst.msk [vmem:[#allocation2 + $0xf8] sm:$0xff] %vm2336, %v2303
      %s2369 = scalar_lea.vmem %s138, 176
      %v2370 = vld [vmem:[%s2369] sm:$0xff]
      %v2371 = vld [vmem:[%s2369 + $0x10] sm:$0xff]
      %v2372 = vld [vmem:[%s2369 + $0x20] sm:$0xff]
      %v2373 = vld [vmem:[%s2369 + $0x30] sm:$0xff]
      %v2374 = vld [vmem:[%s2369 + $0x40] sm:$0xff]
      %v2375 = vld [vmem:[%s2369 + $0x50] sm:$0xff]
      %v2376 = vld [vmem:[%s2369 + $0x60] sm:$0xff]
      %v2377 = vld [vmem:[%s2369 + $0x70] sm:$0xff]
      %v2378 = vld [vmem:[%s2369 + $0xa0] sm:$0xff]
      %v2379 = vld [vmem:[%s2369 + $0xb0] sm:$0xff]
      %v2380 = vld [vmem:[%s2369 + $0xc0] sm:$0xff]
      %v2381 = vld [vmem:[%s2369 + $0xd0] sm:$0xff]
      %v2382 = vld [vmem:[%s2369 + $0xe0] sm:$0xff]
      %v2383 = vld [vmem:[%s2369 + $0xf0] sm:$0xff]
      %v2384 = vld [vmem:[%s2369 + $0x100] sm:$0xff]
      %v2385 = vld [vmem:[%s2369 + $0x110] sm:$0xff]
      %v2386 = vld [vmem:[%s2369 + $0x140] sm:$0xff]
      %v2387 = vld [vmem:[%s2369 + $0x150] sm:$0xff]
      %v2388 = vld [vmem:[%s2369 + $0x160] sm:$0xff]
      %v2389 = vld [vmem:[%s2369 + $0x170] sm:$0xff]
      %v2390 = vld [vmem:[%s2369 + $0x180] sm:$0xff]
      %v2391 = vld [vmem:[%s2369 + $0x190] sm:$0xff]
      %v2392 = vld [vmem:[%s2369 + $0x1a0] sm:$0xff]
      %v2393 = vld [vmem:[%s2369 + $0x1b0] sm:$0xff]
      %v2394 = vld [vmem:[%s2369 + $0x1e0] sm:$0xff]
      %v2395 = vld [vmem:[%s2369 + $0x1f0] sm:$0xff]
      %v2396 = vld [vmem:[%s2369 + $0x200] sm:$0xff]
      %v2397 = vld [vmem:[%s2369 + $0x210] sm:$0xff]
      %v2398 = vld [vmem:[%s2369 + $0x220] sm:$0xff]
      %v2399 = vld [vmem:[%s2369 + $0x230] sm:$0xff]
      %v2400 = vld [vmem:[%s2369 + $0x240] sm:$0xff]
      %v2401 = vld [vmem:[%s2369 + $0x250] sm:$0xff]
      %2434 = vrot.lane.b32.xlu0 %v2370, 48
      %v2435 = vpop.permute.xlu0 %2434
      %2436 = vrot.lane.b32.xlu0 %v2371, 48
      %v2437 = vpop.permute.xlu0 %2436
      %2438 = vrot.lane.b32.xlu0 %v2372, 48
      %v2439 = vpop.permute.xlu0 %2438
      %2440 = vrot.lane.b32.xlu0 %v2373, 48
      %v2441 = vpop.permute.xlu0 %2440
      %2442 = vrot.lane.b32.xlu0 %v2374, 48
      %v2443 = vpop.permute.xlu0 %2442
      %2444 = vrot.lane.b32.xlu0 %v2375, 48
      %v2445 = vpop.permute.xlu0 %2444
      %2446 = vrot.lane.b32.xlu0 %v2376, 48
      %v2447 = vpop.permute.xlu0 %2446
      %2448 = vrot.lane.b32.xlu0 %v2377, 48
      %v2449 = vpop.permute.xlu0 %2448
      %2450 = vrot.lane.b32.xlu0 %v2378, 48
      %v2451 = vpop.permute.xlu0 %2450
      %2452 = vrot.lane.b32.xlu0 %v2379, 48
      %v2453 = vpop.permute.xlu0 %2452
      %2454 = vrot.lane.b32.xlu0 %v2380, 48
      %v2455 = vpop.permute.xlu0 %2454
      %2456 = vrot.lane.b32.xlu0 %v2381, 48
      %v2457 = vpop.permute.xlu0 %2456
      %2458 = vrot.lane.b32.xlu0 %v2382, 48
      %v2459 = vpop.permute.xlu0 %2458
      %2460 = vrot.lane.b32.xlu0 %v2383, 48
      %v2461 = vpop.permute.xlu0 %2460
      %2462 = vrot.lane.b32.xlu0 %v2384, 48
      %v2463 = vpop.permute.xlu0 %2462
      %2464 = vrot.lane.b32.xlu0 %v2385, 48
      %v2465 = vpop.permute.xlu0 %2464
      %2466 = vrot.lane.b32.xlu0 %v2386, 48
      %v2467 = vpop.permute.xlu0 %2466
      %2468 = vrot.lane.b32.xlu0 %v2387, 48
      %v2469 = vpop.permute.xlu0 %2468
      %2470 = vrot.lane.b32.xlu0 %v2388, 48
      %v2471 = vpop.permute.xlu0 %2470
      %2472 = vrot.lane.b32.xlu0 %v2389, 48
      %v2473 = vpop.permute.xlu0 %2472
      %2474 = vrot.lane.b32.xlu0 %v2390, 48
      %v2475 = vpop.permute.xlu0 %2474
      %2476 = vrot.lane.b32.xlu0 %v2391, 48
      %v2477 = vpop.permute.xlu0 %2476
      %2478 = vrot.lane.b32.xlu0 %v2392, 48
      %v2479 = vpop.permute.xlu0 %2478
      %2480 = vrot.lane.b32.xlu0 %v2393, 48
      %v2481 = vpop.permute.xlu0 %2480
      %2482 = vrot.lane.b32.xlu0 %v2394, 48
      %v2483 = vpop.permute.xlu0 %2482
      %2484 = vrot.lane.b32.xlu0 %v2395, 48
      %v2485 = vpop.permute.xlu0 %2484
      %2486 = vrot.lane.b32.xlu0 %v2396, 48
      %v2487 = vpop.permute.xlu0 %2486
      %2488 = vrot.lane.b32.xlu0 %v2397, 48
      %v2489 = vpop.permute.xlu0 %2488
      %2490 = vrot.lane.b32.xlu0 %v2398, 48
      %v2491 = vpop.permute.xlu0 %2490
      %2492 = vrot.lane.b32.xlu0 %v2399, 48
      %v2493 = vpop.permute.xlu0 %2492
      %2494 = vrot.lane.b32.xlu0 %v2400, 48
      %v2495 = vpop.permute.xlu0 %2494
      %2496 = vrot.lane.b32.xlu0 %v2401, 48
      %v2497 = vpop.permute.xlu0 %2496
      %vm2530 = vcmask 425344
      %2531 = vst.msk [vmem:[#allocation2] sm:$0xff] %vm2530, %v2435
      %2532 = vst.msk [vmem:[#allocation2 + $0x8] sm:$0xff] %vm2530, %v2437
      %2533 = vst.msk [vmem:[#allocation2 + $0x10] sm:$0xff] %vm2530, %v2439
      %2534 = vst.msk [vmem:[#allocation2 + $0x18] sm:$0xff] %vm2530, %v2441
      %2535 = vst.msk [vmem:[#allocation2 + $0x20] sm:$0xff] %vm2530, %v2443
      %2536 = vst.msk [vmem:[#allocation2 + $0x28] sm:$0xff] %vm2530, %v2445
      %2537 = vst.msk [vmem:[#allocation2 + $0x30] sm:$0xff] %vm2530, %v2447
      %2538 = vst.msk [vmem:[#allocation2 + $0x38] sm:$0xff] %vm2530, %v2449
      %2539 = vst.msk [vmem:[#allocation2 + $0x40] sm:$0xff] %vm2530, %v2451
      %2540 = vst.msk [vmem:[#allocation2 + $0x48] sm:$0xff] %vm2530, %v2453
      %2541 = vst.msk [vmem:[#allocation2 + $0x50] sm:$0xff] %vm2530, %v2455
      %2542 = vst.msk [vmem:[#allocation2 + $0x58] sm:$0xff] %vm2530, %v2457
      %2543 = vst.msk [vmem:[#allocation2 + $0x60] sm:$0xff] %vm2530, %v2459
      %2544 = vst.msk [vmem:[#allocation2 + $0x68] sm:$0xff] %vm2530, %v2461
      %2545 = vst.msk [vmem:[#allocation2 + $0x70] sm:$0xff] %vm2530, %v2463
      %2546 = vst.msk [vmem:[#allocation2 + $0x78] sm:$0xff] %vm2530, %v2465
      %2547 = vst.msk [vmem:[#allocation2 + $0x80] sm:$0xff] %vm2530, %v2467
      %2548 = vst.msk [vmem:[#allocation2 + $0x88] sm:$0xff] %vm2530, %v2469
      %2549 = vst.msk [vmem:[#allocation2 + $0x90] sm:$0xff] %vm2530, %v2471
      %2550 = vst.msk [vmem:[#allocation2 + $0x98] sm:$0xff] %vm2530, %v2473
      %2551 = vst.msk [vmem:[#allocation2 + $0xa0] sm:$0xff] %vm2530, %v2475
      %2552 = vst.msk [vmem:[#allocation2 + $0xa8] sm:$0xff] %vm2530, %v2477
      %2553 = vst.msk [vmem:[#allocation2 + $0xb0] sm:$0xff] %vm2530, %v2479
      %2554 = vst.msk [vmem:[#allocation2 + $0xb8] sm:$0xff] %vm2530, %v2481
      %2555 = vst.msk [vmem:[#allocation2 + $0xc0] sm:$0xff] %vm2530, %v2483
      %2556 = vst.msk [vmem:[#allocation2 + $0xc8] sm:$0xff] %vm2530, %v2485
      %2557 = vst.msk [vmem:[#allocation2 + $0xd0] sm:$0xff] %vm2530, %v2487
      %2558 = vst.msk [vmem:[#allocation2 + $0xd8] sm:$0xff] %vm2530, %v2489
      %2559 = vst.msk [vmem:[#allocation2 + $0xe0] sm:$0xff] %vm2530, %v2491
      %2560 = vst.msk [vmem:[#allocation2 + $0xe8] sm:$0xff] %vm2530, %v2493
      %2561 = vst.msk [vmem:[#allocation2 + $0xf0] sm:$0xff] %vm2530, %v2495
      %2562 = vst.msk [vmem:[#allocation2 + $0xf8] sm:$0xff] %vm2530, %v2497
      %v2563 = vld [vmem:[%s2369 + $0x1] sm:$0xff]
      %v2564 = vld [vmem:[%s2369 + $0x11] sm:$0xff]
      %v2565 = vld [vmem:[%s2369 + $0x21] sm:$0xff]
      %v2566 = vld [vmem:[%s2369 + $0x31] sm:$0xff]
      %v2567 = vld [vmem:[%s2369 + $0x41] sm:$0xff]
      %v2568 = vld [vmem:[%s2369 + $0x51] sm:$0xff]
      %v2569 = vld [vmem:[%s2369 + $0x61] sm:$0xff]
      %v2570 = vld [vmem:[%s2369 + $0x71] sm:$0xff]
      %v2571 = vld [vmem:[%s2369 + $0xa1] sm:$0xff]
      %v2572 = vld [vmem:[%s2369 + $0xb1] sm:$0xff]
      %v2573 = vld [vmem:[%s2369 + $0xc1] sm:$0xff]
      %v2574 = vld [vmem:[%s2369 + $0xd1] sm:$0xff]
      %v2575 = vld [vmem:[%s2369 + $0xe1] sm:$0xff]
      %v2576 = vld [vmem:[%s2369 + $0xf1] sm:$0xff]
      %v2577 = vld [vmem:[%s2369 + $0x101] sm:$0xff]
      %v2578 = vld [vmem:[%s2369 + $0x111] sm:$0xff]
      %v2579 = vld [vmem:[%s2369 + $0x141] sm:$0xff]
      %v2580 = vld [vmem:[%s2369 + $0x151] sm:$0xff]
      %v2581 = vld [vmem:[%s2369 + $0x161] sm:$0xff]
      %v2582 = vld [vmem:[%s2369 + $0x171] sm:$0xff]
      %v2583 = vld [vmem:[%s2369 + $0x181] sm:$0xff]
      %v2584 = vld [vmem:[%s2369 + $0x191] sm:$0xff]
      %v2585 = vld [vmem:[%s2369 + $0x1a1] sm:$0xff]
      %v2586 = vld [vmem:[%s2369 + $0x1b1] sm:$0xff]
      %v2587 = vld [vmem:[%s2369 + $0x1e1] sm:$0xff]
      %v2588 = vld [vmem:[%s2369 + $0x1f1] sm:$0xff]
      %v2589 = vld [vmem:[%s2369 + $0x201] sm:$0xff]
      %v2590 = vld [vmem:[%s2369 + $0x211] sm:$0xff]
      %v2591 = vld [vmem:[%s2369 + $0x221] sm:$0xff]
      %v2592 = vld [vmem:[%s2369 + $0x231] sm:$0xff]
      %v2593 = vld [vmem:[%s2369 + $0x241] sm:$0xff]
      %v2594 = vld [vmem:[%s2369 + $0x251] sm:$0xff]
      %2627 = vrot.lane.b32.xlu0 %v2563, 52
      %v2628 = vpop.permute.xlu0 %2627
      %2629 = vrot.lane.b32.xlu0 %v2564, 52
      %v2630 = vpop.permute.xlu0 %2629
      %2631 = vrot.lane.b32.xlu0 %v2565, 52
      %v2632 = vpop.permute.xlu0 %2631
      %2633 = vrot.lane.b32.xlu0 %v2566, 52
      %v2634 = vpop.permute.xlu0 %2633
      %2635 = vrot.lane.b32.xlu0 %v2567, 52
      %v2636 = vpop.permute.xlu0 %2635
      %2637 = vrot.lane.b32.xlu0 %v2568, 52
      %v2638 = vpop.permute.xlu0 %2637
      %2639 = vrot.lane.b32.xlu0 %v2569, 52
      %v2640 = vpop.permute.xlu0 %2639
      %2641 = vrot.lane.b32.xlu0 %v2570, 52
      %v2642 = vpop.permute.xlu0 %2641
      %2643 = vrot.lane.b32.xlu0 %v2571, 52
      %v2644 = vpop.permute.xlu0 %2643
      %2645 = vrot.lane.b32.xlu0 %v2572, 52
      %v2646 = vpop.permute.xlu0 %2645
      %2647 = vrot.lane.b32.xlu0 %v2573, 52
      %v2648 = vpop.permute.xlu0 %2647
      %2649 = vrot.lane.b32.xlu0 %v2574, 52
      %v2650 = vpop.permute.xlu0 %2649
      %2651 = vrot.lane.b32.xlu0 %v2575, 52
      %v2652 = vpop.permute.xlu0 %2651
      %2653 = vrot.lane.b32.xlu0 %v2576, 52
      %v2654 = vpop.permute.xlu0 %2653
      %2655 = vrot.lane.b32.xlu0 %v2577, 52
      %v2656 = vpop.permute.xlu0 %2655
      %2657 = vrot.lane.b32.xlu0 %v2578, 52
      %v2658 = vpop.permute.xlu0 %2657
      %2659 = vrot.lane.b32.xlu0 %v2579, 52
      %v2660 = vpop.permute.xlu0 %2659
      %2661 = vrot.lane.b32.xlu0 %v2580, 52
      %v2662 = vpop.permute.xlu0 %2661
      %2663 = vrot.lane.b32.xlu0 %v2581, 52
      %v2664 = vpop.permute.xlu0 %2663
      %2665 = vrot.lane.b32.xlu0 %v2582, 52
      %v2666 = vpop.permute.xlu0 %2665
      %2667 = vrot.lane.b32.xlu0 %v2583, 52
      %v2668 = vpop.permute.xlu0 %2667
      %2669 = vrot.lane.b32.xlu0 %v2584, 52
      %v2670 = vpop.permute.xlu0 %2669
      %2671 = vrot.lane.b32.xlu0 %v2585, 52
      %v2672 = vpop.permute.xlu0 %2671
      %2673 = vrot.lane.b32.xlu0 %v2586, 52
      %v2674 = vpop.permute.xlu0 %2673
      %2675 = vrot.lane.b32.xlu0 %v2587, 52
      %v2676 = vpop.permute.xlu0 %2675
      %2677 = vrot.lane.b32.xlu0 %v2588, 52
      %v2678 = vpop.permute.xlu0 %2677
      %2679 = vrot.lane.b32.xlu0 %v2589, 52
      %v2680 = vpop.permute.xlu0 %2679
      %2681 = vrot.lane.b32.xlu0 %v2590, 52
      %v2682 = vpop.permute.xlu0 %2681
      %2683 = vrot.lane.b32.xlu0 %v2591, 52
      %v2684 = vpop.permute.xlu0 %2683
      %2685 = vrot.lane.b32.xlu0 %v2592, 52
      %v2686 = vpop.permute.xlu0 %2685
      %2687 = vrot.lane.b32.xlu0 %v2593, 52
      %v2688 = vpop.permute.xlu0 %2687
      %2689 = vrot.lane.b32.xlu0 %v2594, 52
      %v2690 = vpop.permute.xlu0 %2689
      %vm2723 = vcmask 458144
      %2724 = vst.msk [vmem:[#allocation2] sm:$0xff] %vm2723, %v2628
      %2725 = vst.msk [vmem:[#allocation2 + $0x8] sm:$0xff] %vm2723, %v2630
      %2726 = vst.msk [vmem:[#allocation2 + $0x10] sm:$0xff] %vm2723, %v2632
      %2727 = vst.msk [vmem:[#allocation2 + $0x18] sm:$0xff] %vm2723, %v2634
      %2728 = vst.msk [vmem:[#allocation2 + $0x20] sm:$0xff] %vm2723, %v2636
      %2729 = vst.msk [vmem:[#allocation2 + $0x28] sm:$0xff] %vm2723, %v2638
      %2730 = vst.msk [vmem:[#allocation2 + $0x30] sm:$0xff] %vm2723, %v2640
      %2731 = vst.msk [vmem:[#allocation2 + $0x38] sm:$0xff] %vm2723, %v2642
      %2732 = vst.msk [vmem:[#allocation2 + $0x40] sm:$0xff] %vm2723, %v2644
      %2733 = vst.msk [vmem:[#allocation2 + $0x48] sm:$0xff] %vm2723, %v2646
      %2734 = vst.msk [vmem:[#allocation2 + $0x50] sm:$0xff] %vm2723, %v2648
      %2735 = vst.msk [vmem:[#allocation2 + $0x58] sm:$0xff] %vm2723, %v2650
      %2736 = vst.msk [vmem:[#allocation2 + $0x60] sm:$0xff] %vm2723, %v2652
      %2737 = vst.msk [vmem:[#allocation2 + $0x68] sm:$0xff] %vm2723, %v2654
      %2738 = vst.msk [vmem:[#allocation2 + $0x70] sm:$0xff] %vm2723, %v2656
      %2739 = vst.msk [vmem:[#allocation2 + $0x78] sm:$0xff] %vm2723, %v2658
      %2740 = vst.msk [vmem:[#allocation2 + $0x80] sm:$0xff] %vm2723, %v2660
      %2741 = vst.msk [vmem:[#allocation2 + $0x88] sm:$0xff] %vm2723, %v2662
      %2742 = vst.msk [vmem:[#allocation2 + $0x90] sm:$0xff] %vm2723, %v2664
      %2743 = vst.msk [vmem:[#allocation2 + $0x98] sm:$0xff] %vm2723, %v2666
      %2744 = vst.msk [vmem:[#allocation2 + $0xa0] sm:$0xff] %vm2723, %v2668
      %2745 = vst.msk [vmem:[#allocation2 + $0xa8] sm:$0xff] %vm2723, %v2670
      %2746 = vst.msk [vmem:[#allocation2 + $0xb0] sm:$0xff] %vm2723, %v2672
      %2747 = vst.msk [vmem:[#allocation2 + $0xb8] sm:$0xff] %vm2723, %v2674
      %2748 = vst.msk [vmem:[#allocation2 + $0xc0] sm:$0xff] %vm2723, %v2676
      %2749 = vst.msk [vmem:[#allocation2 + $0xc8] sm:$0xff] %vm2723, %v2678
      %2750 = vst.msk [vmem:[#allocation2 + $0xd0] sm:$0xff] %vm2723, %v2680
      %2751 = vst.msk [vmem:[#allocation2 + $0xd8] sm:$0xff] %vm2723, %v2682
      %2752 = vst.msk [vmem:[#allocation2 + $0xe0] sm:$0xff] %vm2723, %v2684
      %2753 = vst.msk [vmem:[#allocation2 + $0xe8] sm:$0xff] %vm2723, %v2686
      %2754 = vst.msk [vmem:[#allocation2 + $0xf0] sm:$0xff] %vm2723, %v2688
      %2755 = vst.msk [vmem:[#allocation2 + $0xf8] sm:$0xff] %vm2723, %v2690
      %v2756 = vld [vmem:[%s2369 + $0x2] sm:$0xff]
      %v2757 = vld [vmem:[%s2369 + $0x12] sm:$0xff]
      %v2758 = vld [vmem:[%s2369 + $0x22] sm:$0xff]
      %v2759 = vld [vmem:[%s2369 + $0x32] sm:$0xff]
      %v2760 = vld [vmem:[%s2369 + $0x42] sm:$0xff]
      %v2761 = vld [vmem:[%s2369 + $0x52] sm:$0xff]
      %v2762 = vld [vmem:[%s2369 + $0x62] sm:$0xff]
      %v2763 = vld [vmem:[%s2369 + $0x72] sm:$0xff]
      %v2764 = vld [vmem:[%s2369 + $0xa2] sm:$0xff]
      %v2765 = vld [vmem:[%s2369 + $0xb2] sm:$0xff]
      %v2766 = vld [vmem:[%s2369 + $0xc2] sm:$0xff]
      %v2767 = vld [vmem:[%s2369 + $0xd2] sm:$0xff]
      %v2768 = vld [vmem:[%s2369 + $0xe2] sm:$0xff]
      %v2769 = vld [vmem:[%s2369 + $0xf2] sm:$0xff]
      %v2770 = vld [vmem:[%s2369 + $0x102] sm:$0xff]
      %v2771 = vld [vmem:[%s2369 + $0x112] sm:$0xff]
      %v2772 = vld [vmem:[%s2369 + $0x142] sm:$0xff]
      %v2773 = vld [vmem:[%s2369 + $0x152] sm:$0xff]
      %v2774 = vld [vmem:[%s2369 + $0x162] sm:$0xff]
      %v2775 = vld [vmem:[%s2369 + $0x172] sm:$0xff]
      %v2776 = vld [vmem:[%s2369 + $0x182] sm:$0xff]
      %v2777 = vld [vmem:[%s2369 + $0x192] sm:$0xff]
      %v2778 = vld [vmem:[%s2369 + $0x1a2] sm:$0xff]
      %v2779 = vld [vmem:[%s2369 + $0x1b2] sm:$0xff]
      %v2780 = vld [vmem:[%s2369 + $0x1e2] sm:$0xff]
      %v2781 = vld [vmem:[%s2369 + $0x1f2] sm:$0xff]
      %v2782 = vld [vmem:[%s2369 + $0x202] sm:$0xff]
      %v2783 = vld [vmem:[%s2369 + $0x212] sm:$0xff]
      %v2784 = vld [vmem:[%s2369 + $0x222] sm:$0xff]
      %v2785 = vld [vmem:[%s2369 + $0x232] sm:$0xff]
      %v2786 = vld [vmem:[%s2369 + $0x242] sm:$0xff]
      %v2787 = vld [vmem:[%s2369 + $0x252] sm:$0xff]
      %2820 = vrot.lane.b32.xlu0 %v2756, 56
      %v2821 = vpop.permute.xlu0 %2820
      %2822 = vrot.lane.b32.xlu0 %v2757, 56
      %v2823 = vpop.permute.xlu0 %2822
      %2824 = vrot.lane.b32.xlu0 %v2758, 56
      %v2825 = vpop.permute.xlu0 %2824
      %2826 = vrot.lane.b32.xlu0 %v2759, 56
      %v2827 = vpop.permute.xlu0 %2826
      %2828 = vrot.lane.b32.xlu0 %v2760, 56
      %v2829 = vpop.permute.xlu0 %2828
      %2830 = vrot.lane.b32.xlu0 %v2761, 56
      %v2831 = vpop.permute.xlu0 %2830
      %2832 = vrot.lane.b32.xlu0 %v2762, 56
      %v2833 = vpop.permute.xlu0 %2832
      %2834 = vrot.lane.b32.xlu0 %v2763, 56
      %v2835 = vpop.permute.xlu0 %2834
      %2836 = vrot.lane.b32.xlu0 %v2764, 56
      %v2837 = vpop.permute.xlu0 %2836
      %2838 = vrot.lane.b32.xlu0 %v2765, 56
      %v2839 = vpop.permute.xlu0 %2838
      %2840 = vrot.lane.b32.xlu0 %v2766, 56
      %v2841 = vpop.permute.xlu0 %2840
      %2842 = vrot.lane.b32.xlu0 %v2767, 56
      %v2843 = vpop.permute.xlu0 %2842
      %2844 = vrot.lane.b32.xlu0 %v2768, 56
      %v2845 = vpop.permute.xlu0 %2844
      %2846 = vrot.lane.b32.xlu0 %v2769, 56
      %v2847 = vpop.permute.xlu0 %2846
      %2848 = vrot.lane.b32.xlu0 %v2770, 56
      %v2849 = vpop.permute.xlu0 %2848
      %2850 = vrot.lane.b32.xlu0 %v2771, 56
      %v2851 = vpop.permute.xlu0 %2850
      %2852 = vrot.lane.b32.xlu0 %v2772, 56
      %v2853 = vpop.permute.xlu0 %2852
      %2854 = vrot.lane.b32.xlu0 %v2773, 56
      %v2855 = vpop.permute.xlu0 %2854
      %2856 = vrot.lane.b32.xlu0 %v2774, 56
      %v2857 = vpop.permute.xlu0 %2856
      %2858 = vrot.lane.b32.xlu0 %v2775, 56
      %v2859 = vpop.permute.xlu0 %2858
      %2860 = vrot.lane.b32.xlu0 %v2776, 56
      %v2861 = vpop.permute.xlu0 %2860
      %2862 = vrot.lane.b32.xlu0 %v2777, 56
      %v2863 = vpop.permute.xlu0 %2862
      %2864 = vrot.lane.b32.xlu0 %v2778, 56
      %v2865 = vpop.permute.xlu0 %2864
      %2866 = vrot.lane.b32.xlu0 %v2779, 56
      %v2867 = vpop.permute.xlu0 %2866
      %2868 = vrot.lane.b32.xlu0 %v2780, 56
      %v2869 = vpop.permute.xlu0 %2868
      %2870 = vrot.lane.b32.xlu0 %v2781, 56
      %v2871 = vpop.permute.xlu0 %2870
      %2872 = vrot.lane.b32.xlu0 %v2782, 56
      %v2873 = vpop.permute.xlu0 %2872
      %2874 = vrot.lane.b32.xlu0 %v2783, 56
      %v2875 = vpop.permute.xlu0 %2874
      %2876 = vrot.lane.b32.xlu0 %v2784, 56
      %v2877 = vpop.permute.xlu0 %2876
      %2878 = vrot.lane.b32.xlu0 %v2785, 56
      %v2879 = vpop.permute.xlu0 %2878
      %2880 = vrot.lane.b32.xlu0 %v2786, 56
      %v2881 = vpop.permute.xlu0 %2880
      %2882 = vrot.lane.b32.xlu0 %v2787, 56
      %v2883 = vpop.permute.xlu0 %2882
      %vm2916 = vcmask 490944
      %2917 = vst.msk [vmem:[#allocation2] sm:$0xff] %vm2916, %v2821
      %2918 = vst.msk [vmem:[#allocation2 + $0x8] sm:$0xff] %vm2916, %v2823
      %2919 = vst.msk [vmem:[#allocation2 + $0x10] sm:$0xff] %vm2916, %v2825
      %2920 = vst.msk [vmem:[#allocation2 + $0x18] sm:$0xff] %vm2916, %v2827
      %2921 = vst.msk [vmem:[#allocation2 + $0x20] sm:$0xff] %vm2916, %v2829
      %2922 = vst.msk [vmem:[#allocation2 + $0x28] sm:$0xff] %vm2916, %v2831
      %2923 = vst.msk [vmem:[#allocation2 + $0x30] sm:$0xff] %vm2916, %v2833
      %2924 = vst.msk [vmem:[#allocation2 + $0x38] sm:$0xff] %vm2916, %v2835
      %2925 = vst.msk [vmem:[#allocation2 + $0x40] sm:$0xff] %vm2916, %v2837
      %2926 = vst.msk [vmem:[#allocation2 + $0x48] sm:$0xff] %vm2916, %v2839
      %2927 = vst.msk [vmem:[#allocation2 + $0x50] sm:$0xff] %vm2916, %v2841
      %2928 = vst.msk [vmem:[#allocation2 + $0x58] sm:$0xff] %vm2916, %v2843
      %2929 = vst.msk [vmem:[#allocation2 + $0x60] sm:$0xff] %vm2916, %v2845
      %2930 = vst.msk [vmem:[#allocation2 + $0x68] sm:$0xff] %vm2916, %v2847
      %2931 = vst.msk [vmem:[#allocation2 + $0x70] sm:$0xff] %vm2916, %v2849
      %2932 = vst.msk [vmem:[#allocation2 + $0x78] sm:$0xff] %vm2916, %v2851
      %2933 = vst.msk [vmem:[#allocation2 + $0x80] sm:$0xff] %vm2916, %v2853
      %2934 = vst.msk [vmem:[#allocation2 + $0x88] sm:$0xff] %vm2916, %v2855
      %2935 = vst.msk [vmem:[#allocation2 + $0x90] sm:$0xff] %vm2916, %v2857
      %2936 = vst.msk [vmem:[#allocation2 + $0x98] sm:$0xff] %vm2916, %v2859
      %2937 = vst.msk [vmem:[#allocation2 + $0xa0] sm:$0xff] %vm2916, %v2861
      %2938 = vst.msk [vmem:[#allocation2 + $0xa8] sm:$0xff] %vm2916, %v2863
      %2939 = vst.msk [vmem:[#allocation2 + $0xb0] sm:$0xff] %vm2916, %v2865
      %2940 = vst.msk [vmem:[#allocation2 + $0xb8] sm:$0xff] %vm2916, %v2867
      %2941 = vst.msk [vmem:[#allocation2 + $0xc0] sm:$0xff] %vm2916, %v2869
      %2942 = vst.msk [vmem:[#allocation2 + $0xc8] sm:$0xff] %vm2916, %v2871
      %2943 = vst.msk [vmem:[#allocation2 + $0xd0] sm:$0xff] %vm2916, %v2873
      %2944 = vst.msk [vmem:[#allocation2 + $0xd8] sm:$0xff] %vm2916, %v2875
      %2945 = vst.msk [vmem:[#allocation2 + $0xe0] sm:$0xff] %vm2916, %v2877
      %2946 = vst.msk [vmem:[#allocation2 + $0xe8] sm:$0xff] %vm2916, %v2879
      %2947 = vst.msk [vmem:[#allocation2 + $0xf0] sm:$0xff] %vm2916, %v2881
      %2948 = vst.msk [vmem:[#allocation2 + $0xf8] sm:$0xff] %vm2916, %v2883
      %s2949 = scalar_lea.vmem %s138, 192
      %v2950 = vld [vmem:[%s2949] sm:$0xff]
      %v2951 = vld [vmem:[%s2949 + $0x10] sm:$0xff]
      %v2952 = vld [vmem:[%s2949 + $0x20] sm:$0xff]
      %v2953 = vld [vmem:[%s2949 + $0x30] sm:$0xff]
      %v2954 = vld [vmem:[%s2949 + $0x40] sm:$0xff]
      %v2955 = vld [vmem:[%s2949 + $0x50] sm:$0xff]
      %v2956 = vld [vmem:[%s2949 + $0x60] sm:$0xff]
      %v2957 = vld [vmem:[%s2949 + $0x70] sm:$0xff]
      %v2958 = vld [vmem:[%s2949 + $0xa0] sm:$0xff]
      %v2959 = vld [vmem:[%s2949 + $0xb0] sm:$0xff]
      %v2960 = vld [vmem:[%s2949 + $0xc0] sm:$0xff]
      %v2961 = vld [vmem:[%s2949 + $0xd0] sm:$0xff]
      %v2962 = vld [vmem:[%s2949 + $0xe0] sm:$0xff]
      %v2963 = vld [vmem:[%s2949 + $0xf0] sm:$0xff]
      %v2964 = vld [vmem:[%s2949 + $0x100] sm:$0xff]
      %v2965 = vld [vmem:[%s2949 + $0x110] sm:$0xff]
      %v2966 = vld [vmem:[%s2949 + $0x140] sm:$0xff]
      %v2967 = vld [vmem:[%s2949 + $0x150] sm:$0xff]
      %v2968 = vld [vmem:[%s2949 + $0x160] sm:$0xff]
      %v2969 = vld [vmem:[%s2949 + $0x170] sm:$0xff]
      %v2970 = vld [vmem:[%s2949 + $0x180] sm:$0xff]
      %v2971 = vld [vmem:[%s2949 + $0x190] sm:$0xff]
      %v2972 = vld [vmem:[%s2949 + $0x1a0] sm:$0xff]
      %v2973 = vld [vmem:[%s2949 + $0x1b0] sm:$0xff]
      %v2974 = vld [vmem:[%s2949 + $0x1e0] sm:$0xff]
      %v2975 = vld [vmem:[%s2949 + $0x1f0] sm:$0xff]
      %v2976 = vld [vmem:[%s2949 + $0x200] sm:$0xff]
      %v2977 = vld [vmem:[%s2949 + $0x210] sm:$0xff]
      %v2978 = vld [vmem:[%s2949 + $0x220] sm:$0xff]
      %v2979 = vld [vmem:[%s2949 + $0x230] sm:$0xff]
      %v2980 = vld [vmem:[%s2949 + $0x240] sm:$0xff]
      %v2981 = vld [vmem:[%s2949 + $0x250] sm:$0xff]
      %3014 = vrot.lane.b32.xlu0 %v2950, 60
      %v3015 = vpop.permute.xlu0 %3014
      %3016 = vrot.lane.b32.xlu0 %v2951, 60
      %v3017 = vpop.permute.xlu0 %3016
      %3018 = vrot.lane.b32.xlu0 %v2952, 60
      %v3019 = vpop.permute.xlu0 %3018
      %3020 = vrot.lane.b32.xlu0 %v2953, 60
      %v3021 = vpop.permute.xlu0 %3020
      %3022 = vrot.lane.b32.xlu0 %v2954, 60
      %v3023 = vpop.permute.xlu0 %3022
      %3024 = vrot.lane.b32.xlu0 %v2955, 60
      %v3025 = vpop.permute.xlu0 %3024
      %3026 = vrot.lane.b32.xlu0 %v2956, 60
      %v3027 = vpop.permute.xlu0 %3026
      %3028 = vrot.lane.b32.xlu0 %v2957, 60
      %v3029 = vpop.permute.xlu0 %3028
      %3030 = vrot.lane.b32.xlu0 %v2958, 60
      %v3031 = vpop.permute.xlu0 %3030
      %3032 = vrot.lane.b32.xlu0 %v2959, 60
      %v3033 = vpop.permute.xlu0 %3032
      %3034 = vrot.lane.b32.xlu0 %v2960, 60
      %v3035 = vpop.permute.xlu0 %3034
      %3036 = vrot.lane.b32.xlu0 %v2961, 60
      %v3037 = vpop.permute.xlu0 %3036
      %3038 = vrot.lane.b32.xlu0 %v2962, 60
      %v3039 = vpop.permute.xlu0 %3038
      %3040 = vrot.lane.b32.xlu0 %v2963, 60
      %v3041 = vpop.permute.xlu0 %3040
      %3042 = vrot.lane.b32.xlu0 %v2964, 60
      %v3043 = vpop.permute.xlu0 %3042
      %3044 = vrot.lane.b32.xlu0 %v2965, 60
      %v3045 = vpop.permute.xlu0 %3044
      %3046 = vrot.lane.b32.xlu0 %v2966, 60
      %v3047 = vpop.permute.xlu0 %3046
      %3048 = vrot.lane.b32.xlu0 %v2967, 60
      %v3049 = vpop.permute.xlu0 %3048
      %3050 = vrot.lane.b32.xlu0 %v2968, 60
      %v3051 = vpop.permute.xlu0 %3050
      %3052 = vrot.lane.b32.xlu0 %v2969, 60
      %v3053 = vpop.permute.xlu0 %3052
      %3054 = vrot.lane.b32.xlu0 %v2970, 60
      %v3055 = vpop.permute.xlu0 %3054
      %3056 = vrot.lane.b32.xlu0 %v2971, 60
      %v3057 = vpop.permute.xlu0 %3056
      %3058 = vrot.lane.b32.xlu0 %v2972, 60
      %v3059 = vpop.permute.xlu0 %3058
      %3060 = vrot.lane.b32.xlu0 %v2973, 60
      %v3061 = vpop.permute.xlu0 %3060
      %3062 = vrot.lane.b32.xlu0 %v2974, 60
      %v3063 = vpop.permute.xlu0 %3062
      %3064 = vrot.lane.b32.xlu0 %v2975, 60
      %v3065 = vpop.permute.xlu0 %3064
      %3066 = vrot.lane.b32.xlu0 %v2976, 60
      %v3067 = vpop.permute.xlu0 %3066
      %3068 = vrot.lane.b32.xlu0 %v2977, 60
      %v3069 = vpop.permute.xlu0 %3068
      %3070 = vrot.lane.b32.xlu0 %v2978, 60
      %v3071 = vpop.permute.xlu0 %3070
      %3072 = vrot.lane.b32.xlu0 %v2979, 60
      %v3073 = vpop.permute.xlu0 %3072
      %3074 = vrot.lane.b32.xlu0 %v2980, 60
      %v3075 = vpop.permute.xlu0 %3074
      %3076 = vrot.lane.b32.xlu0 %v2981, 60
      %v3077 = vpop.permute.xlu0 %3076
      %vm3110 = vcmask 523744
      %3111 = vst.msk [vmem:[#allocation2] sm:$0xff] %vm3110, %v3015
      %3112 = vst.msk [vmem:[#allocation2 + $0x8] sm:$0xff] %vm3110, %v3017
      %3113 = vst.msk [vmem:[#allocation2 + $0x10] sm:$0xff] %vm3110, %v3019
      %3114 = vst.msk [vmem:[#allocation2 + $0x18] sm:$0xff] %vm3110, %v3021
      %3115 = vst.msk [vmem:[#allocation2 + $0x20] sm:$0xff] %vm3110, %v3023
      %3116 = vst.msk [vmem:[#allocation2 + $0x28] sm:$0xff] %vm3110, %v3025
      %3117 = vst.msk [vmem:[#allocation2 + $0x30] sm:$0xff] %vm3110, %v3027
      %3118 = vst.msk [vmem:[#allocation2 + $0x38] sm:$0xff] %vm3110, %v3029
      %3119 = vst.msk [vmem:[#allocation2 + $0x40] sm:$0xff] %vm3110, %v3031
      %3120 = vst.msk [vmem:[#allocation2 + $0x48] sm:$0xff] %vm3110, %v3033
      %3121 = vst.msk [vmem:[#allocation2 + $0x50] sm:$0xff] %vm3110, %v3035
      %3122 = vst.msk [vmem:[#allocation2 + $0x58] sm:$0xff] %vm3110, %v3037
      %3123 = vst.msk [vmem:[#allocation2 + $0x60] sm:$0xff] %vm3110, %v3039
      %3124 = vst.msk [vmem:[#allocation2 + $0x68] sm:$0xff] %vm3110, %v3041
      %3125 = vst.msk [vmem:[#allocation2 + $0x70] sm:$0xff] %vm3110, %v3043
      %3126 = vst.msk [vmem:[#allocation2 + $0x78] sm:$0xff] %vm3110, %v3045
      %3127 = vst.msk [vmem:[#allocation2 + $0x80] sm:$0xff] %vm3110, %v3047
      %3128 = vst.msk [vmem:[#allocation2 + $0x88] sm:$0xff] %vm3110, %v3049
      %3129 = vst.msk [vmem:[#allocation2 + $0x90] sm:$0xff] %vm3110, %v3051
      %3130 = vst.msk [vmem:[#allocation2 + $0x98] sm:$0xff] %vm3110, %v3053
      %3131 = vst.msk [vmem:[#allocation2 + $0xa0] sm:$0xff] %vm3110, %v3055
      %3132 = vst.msk [vmem:[#allocation2 + $0xa8] sm:$0xff] %vm3110, %v3057
      %3133 = vst.msk [vmem:[#allocation2 + $0xb0] sm:$0xff] %vm3110, %v3059
      %3134 = vst.msk [vmem:[#allocation2 + $0xb8] sm:$0xff] %vm3110, %v3061
      %3135 = vst.msk [vmem:[#allocation2 + $0xc0] sm:$0xff] %vm3110, %v3063
      %3136 = vst.msk [vmem:[#allocation2 + $0xc8] sm:$0xff] %vm3110, %v3065
      %3137 = vst.msk [vmem:[#allocation2 + $0xd0] sm:$0xff] %vm3110, %v3067
      %3138 = vst.msk [vmem:[#allocation2 + $0xd8] sm:$0xff] %vm3110, %v3069
      %3139 = vst.msk [vmem:[#allocation2 + $0xe0] sm:$0xff] %vm3110, %v3071
      %3140 = vst.msk [vmem:[#allocation2 + $0xe8] sm:$0xff] %vm3110, %v3073
      %3141 = vst.msk [vmem:[#allocation2 + $0xf0] sm:$0xff] %vm3110, %v3075
      %3142 = vst.msk [vmem:[#allocation2 + $0xf8] sm:$0xff] %vm3110, %v3077
      %v3143 = vld [vmem:[%s2949 + $0x1] sm:$0xff]
      %v3144 = vld [vmem:[%s2949 + $0x11] sm:$0xff]
      %v3145 = vld [vmem:[%s2949 + $0x21] sm:$0xff]
      %v3146 = vld [vmem:[%s2949 + $0x31] sm:$0xff]
      %v3147 = vld [vmem:[%s2949 + $0x41] sm:$0xff]
      %v3148 = vld [vmem:[%s2949 + $0x51] sm:$0xff]
      %v3149 = vld [vmem:[%s2949 + $0x61] sm:$0xff]
      %v3150 = vld [vmem:[%s2949 + $0x71] sm:$0xff]
      %v3151 = vld [vmem:[%s2949 + $0xa1] sm:$0xff]
      %v3152 = vld [vmem:[%s2949 + $0xb1] sm:$0xff]
      %v3153 = vld [vmem:[%s2949 + $0xc1] sm:$0xff]
      %v3154 = vld [vmem:[%s2949 + $0xd1] sm:$0xff]
      %v3155 = vld [vmem:[%s2949 + $0xe1] sm:$0xff]
      %v3156 = vld [vmem:[%s2949 + $0xf1] sm:$0xff]
      %v3157 = vld [vmem:[%s2949 + $0x101] sm:$0xff]
      %v3158 = vld [vmem:[%s2949 + $0x111] sm:$0xff]
      %v3159 = vld [vmem:[%s2949 + $0x141] sm:$0xff]
      %v3160 = vld [vmem:[%s2949 + $0x151] sm:$0xff]
      %v3161 = vld [vmem:[%s2949 + $0x161] sm:$0xff]
      %v3162 = vld [vmem:[%s2949 + $0x171] sm:$0xff]
      %v3163 = vld [vmem:[%s2949 + $0x181] sm:$0xff]
      %v3164 = vld [vmem:[%s2949 + $0x191] sm:$0xff]
      %v3165 = vld [vmem:[%s2949 + $0x1a1] sm:$0xff]
      %v3166 = vld [vmem:[%s2949 + $0x1b1] sm:$0xff]
      %v3167 = vld [vmem:[%s2949 + $0x1e1] sm:$0xff]
      %v3168 = vld [vmem:[%s2949 + $0x1f1] sm:$0xff]
      %v3169 = vld [vmem:[%s2949 + $0x201] sm:$0xff]
      %v3170 = vld [vmem:[%s2949 + $0x211] sm:$0xff]
      %v3171 = vld [vmem:[%s2949 + $0x221] sm:$0xff]
      %v3172 = vld [vmem:[%s2949 + $0x231] sm:$0xff]
      %v3173 = vld [vmem:[%s2949 + $0x241] sm:$0xff]
      %v3174 = vld [vmem:[%s2949 + $0x251] sm:$0xff]
      %3207 = vrot.lane.b32.xlu0 %v3143, 64
      %v3208 = vpop.permute.xlu0 %3207
      %3209 = vrot.lane.b32.xlu0 %v3144, 64
      %v3210 = vpop.permute.xlu0 %3209
      %3211 = vrot.lane.b32.xlu0 %v3145, 64
      %v3212 = vpop.permute.xlu0 %3211
      %3213 = vrot.lane.b32.xlu0 %v3146, 64
      %v3214 = vpop.permute.xlu0 %3213
      %3215 = vrot.lane.b32.xlu0 %v3147, 64
      %v3216 = vpop.permute.xlu0 %3215
      %3217 = vrot.lane.b32.xlu0 %v3148, 64
      %v3218 = vpop.permute.xlu0 %3217
      %3219 = vrot.lane.b32.xlu0 %v3149, 64
      %v3220 = vpop.permute.xlu0 %3219
      %3221 = vrot.lane.b32.xlu0 %v3150, 64
      %v3222 = vpop.permute.xlu0 %3221
      %3223 = vrot.lane.b32.xlu0 %v3151, 64
      %v3224 = vpop.permute.xlu0 %3223
      %3225 = vrot.lane.b32.xlu0 %v3152, 64
      %v3226 = vpop.permute.xlu0 %3225
      %3227 = vrot.lane.b32.xlu0 %v3153, 64
      %v3228 = vpop.permute.xlu0 %3227
      %3229 = vrot.lane.b32.xlu0 %v3154, 64
      %v3230 = vpop.permute.xlu0 %3229
      %3231 = vrot.lane.b32.xlu0 %v3155, 64
      %v3232 = vpop.permute.xlu0 %3231
      %3233 = vrot.lane.b32.xlu0 %v3156, 64
      %v3234 = vpop.permute.xlu0 %3233
      %3235 = vrot.lane.b32.xlu0 %v3157, 64
      %v3236 = vpop.permute.xlu0 %3235
      %3237 = vrot.lane.b32.xlu0 %v3158, 64
      %v3238 = vpop.permute.xlu0 %3237
      %3239 = vrot.lane.b32.xlu0 %v3159, 64
      %v3240 = vpop.permute.xlu0 %3239
      %3241 = vrot.lane.b32.xlu0 %v3160, 64
      %v3242 = vpop.permute.xlu0 %3241
      %3243 = vrot.lane.b32.xlu0 %v3161, 64
      %v3244 = vpop.permute.xlu0 %3243
      %3245 = vrot.lane.b32.xlu0 %v3162, 64
      %v3246 = vpop.permute.xlu0 %3245
      %3247 = vrot.lane.b32.xlu0 %v3163, 64
      %v3248 = vpop.permute.xlu0 %3247
      %3249 = vrot.lane.b32.xlu0 %v3164, 64
      %v3250 = vpop.permute.xlu0 %3249
      %3251 = vrot.lane.b32.xlu0 %v3165, 64
      %v3252 = vpop.permute.xlu0 %3251
      %3253 = vrot.lane.b32.xlu0 %v3166, 64
      %v3254 = vpop.permute.xlu0 %3253
      %3255 = vrot.lane.b32.xlu0 %v3167, 64
      %v3256 = vpop.permute.xlu0 %3255
      %3257 = vrot.lane.b32.xlu0 %v3168, 64
      %v3258 = vpop.permute.xlu0 %3257
      %3259 = vrot.lane.b32.xlu0 %v3169, 64
      %v3260 = vpop.permute.xlu0 %3259
      %3261 = vrot.lane.b32.xlu0 %v3170, 64
      %v3262 = vpop.permute.xlu0 %3261
      %3263 = vrot.lane.b32.xlu0 %v3171, 64
      %v3264 = vpop.permute.xlu0 %3263
      %3265 = vrot.lane.b32.xlu0 %v3172, 64
      %v3266 = vpop.permute.xlu0 %3265
      %3267 = vrot.lane.b32.xlu0 %v3173, 64
      %v3268 = vpop.permute.xlu0 %3267
      %3269 = vrot.lane.b32.xlu0 %v3174, 64
      %v3270 = vpop.permute.xlu0 %3269
      %vm3303 = vcmask 556544
      %3304 = vst.msk [vmem:[#allocation2] sm:$0xff] %vm3303, %v3208
      %3305 = vst.msk [vmem:[#allocation2 + $0x8] sm:$0xff] %vm3303, %v3210
      %3306 = vst.msk [vmem:[#allocation2 + $0x10] sm:$0xff] %vm3303, %v3212
      %3307 = vst.msk [vmem:[#allocation2 + $0x18] sm:$0xff] %vm3303, %v3214
      %3308 = vst.msk [vmem:[#allocation2 + $0x20] sm:$0xff] %vm3303, %v3216
      %3309 = vst.msk [vmem:[#allocation2 + $0x28] sm:$0xff] %vm3303, %v3218
      %3310 = vst.msk [vmem:[#allocation2 + $0x30] sm:$0xff] %vm3303, %v3220
      %3311 = vst.msk [vmem:[#allocation2 + $0x38] sm:$0xff] %vm3303, %v3222
      %3312 = vst.msk [vmem:[#allocation2 + $0x40] sm:$0xff] %vm3303, %v3224
      %3313 = vst.msk [vmem:[#allocation2 + $0x48] sm:$0xff] %vm3303, %v3226
      %3314 = vst.msk [vmem:[#allocation2 + $0x50] sm:$0xff] %vm3303, %v3228
      %3315 = vst.msk [vmem:[#allocation2 + $0x58] sm:$0xff] %vm3303, %v3230
      %3316 = vst.msk [vmem:[#allocation2 + $0x60] sm:$0xff] %vm3303, %v3232
      %3317 = vst.msk [vmem:[#allocation2 + $0x68] sm:$0xff] %vm3303, %v3234
      %3318 = vst.msk [vmem:[#allocation2 + $0x70] sm:$0xff] %vm3303, %v3236
      %3319 = vst.msk [vmem:[#allocation2 + $0x78] sm:$0xff] %vm3303, %v3238
      %3320 = vst.msk [vmem:[#allocation2 + $0x80] sm:$0xff] %vm3303, %v3240
      %3321 = vst.msk [vmem:[#allocation2 + $0x88] sm:$0xff] %vm3303, %v3242
      %3322 = vst.msk [vmem:[#allocation2 + $0x90] sm:$0xff] %vm3303, %v3244
      %3323 = vst.msk [vmem:[#allocation2 + $0x98] sm:$0xff] %vm3303, %v3246
      %3324 = vst.msk [vmem:[#allocation2 + $0xa0] sm:$0xff] %vm3303, %v3248
      %3325 = vst.msk [vmem:[#allocation2 + $0xa8] sm:$0xff] %vm3303, %v3250
      %3326 = vst.msk [vmem:[#allocation2 + $0xb0] sm:$0xff] %vm3303, %v3252
      %3327 = vst.msk [vmem:[#allocation2 + $0xb8] sm:$0xff] %vm3303, %v3254
      %3328 = vst.msk [vmem:[#allocation2 + $0xc0] sm:$0xff] %vm3303, %v3256
      %3329 = vst.msk [vmem:[#allocation2 + $0xc8] sm:$0xff] %vm3303, %v3258
      %3330 = vst.msk [vmem:[#allocation2 + $0xd0] sm:$0xff] %vm3303, %v3260
      %3331 = vst.msk [vmem:[#allocation2 + $0xd8] sm:$0xff] %vm3303, %v3262
      %3332 = vst.msk [vmem:[#allocation2 + $0xe0] sm:$0xff] %vm3303, %v3264
      %3333 = vst.msk [vmem:[#allocation2 + $0xe8] sm:$0xff] %vm3303, %v3266
      %3334 = vst.msk [vmem:[#allocation2 + $0xf0] sm:$0xff] %vm3303, %v3268
      %3335 = vst.msk [vmem:[#allocation2 + $0xf8] sm:$0xff] %vm3303, %v3270
      %v3336 = vld [vmem:[%s2949 + $0x2] sm:$0xff]
      %v3337 = vld [vmem:[%s2949 + $0x12] sm:$0xff]
      %v3338 = vld [vmem:[%s2949 + $0x22] sm:$0xff]
      %v3339 = vld [vmem:[%s2949 + $0x32] sm:$0xff]
      %v3340 = vld [vmem:[%s2949 + $0x42] sm:$0xff]
      %v3341 = vld [vmem:[%s2949 + $0x52] sm:$0xff]
      %v3342 = vld [vmem:[%s2949 + $0x62] sm:$0xff]
      %v3343 = vld [vmem:[%s2949 + $0x72] sm:$0xff]
      %v3344 = vld [vmem:[%s2949 + $0xa2] sm:$0xff]
      %v3345 = vld [vmem:[%s2949 + $0xb2] sm:$0xff]
      %v3346 = vld [vmem:[%s2949 + $0xc2] sm:$0xff]
      %v3347 = vld [vmem:[%s2949 + $0xd2] sm:$0xff]
      %v3348 = vld [vmem:[%s2949 + $0xe2] sm:$0xff]
      %v3349 = vld [vmem:[%s2949 + $0xf2] sm:$0xff]
      %v3350 = vld [vmem:[%s2949 + $0x102] sm:$0xff]
      %v3351 = vld [vmem:[%s2949 + $0x112] sm:$0xff]
      %v3352 = vld [vmem:[%s2949 + $0x142] sm:$0xff]
      %v3353 = vld [vmem:[%s2949 + $0x152] sm:$0xff]
      %v3354 = vld [vmem:[%s2949 + $0x162] sm:$0xff]
      %v3355 = vld [vmem:[%s2949 + $0x172] sm:$0xff]
      %v3356 = vld [vmem:[%s2949 + $0x182] sm:$0xff]
      %v3357 = vld [vmem:[%s2949 + $0x192] sm:$0xff]
      %v3358 = vld [vmem:[%s2949 + $0x1a2] sm:$0xff]
      %v3359 = vld [vmem:[%s2949 + $0x1b2] sm:$0xff]
      %v3360 = vld [vmem:[%s2949 + $0x1e2] sm:$0xff]
      %v3361 = vld [vmem:[%s2949 + $0x1f2] sm:$0xff]
      %v3362 = vld [vmem:[%s2949 + $0x202] sm:$0xff]
      %v3363 = vld [vmem:[%s2949 + $0x212] sm:$0xff]
      %v3364 = vld [vmem:[%s2949 + $0x222] sm:$0xff]
      %v3365 = vld [vmem:[%s2949 + $0x232] sm:$0xff]
      %v3366 = vld [vmem:[%s2949 + $0x242] sm:$0xff]
      %v3367 = vld [vmem:[%s2949 + $0x252] sm:$0xff]
      %3400 = vrot.lane.b32.xlu0 %v3336, 68
      %v3401 = vpop.permute.xlu0 %3400
      %3402 = vrot.lane.b32.xlu0 %v3337, 68
      %v3403 = vpop.permute.xlu0 %3402
      %3404 = vrot.lane.b32.xlu0 %v3338, 68
      %v3405 = vpop.permute.xlu0 %3404
      %3406 = vrot.lane.b32.xlu0 %v3339, 68
      %v3407 = vpop.permute.xlu0 %3406
      %3408 = vrot.lane.b32.xlu0 %v3340, 68
      %v3409 = vpop.permute.xlu0 %3408
      %3410 = vrot.lane.b32.xlu0 %v3341, 68
      %v3411 = vpop.permute.xlu0 %3410
      %3412 = vrot.lane.b32.xlu0 %v3342, 68
      %v3413 = vpop.permute.xlu0 %3412
      %3414 = vrot.lane.b32.xlu0 %v3343, 68
      %v3415 = vpop.permute.xlu0 %3414
      %3416 = vrot.lane.b32.xlu0 %v3344, 68
      %v3417 = vpop.permute.xlu0 %3416
      %3418 = vrot.lane.b32.xlu0 %v3345, 68
      %v3419 = vpop.permute.xlu0 %3418
      %3420 = vrot.lane.b32.xlu0 %v3346, 68
      %v3421 = vpop.permute.xlu0 %3420
      %3422 = vrot.lane.b32.xlu0 %v3347, 68
      %v3423 = vpop.permute.xlu0 %3422
      %3424 = vrot.lane.b32.xlu0 %v3348, 68
      %v3425 = vpop.permute.xlu0 %3424
      %3426 = vrot.lane.b32.xlu0 %v3349, 68
      %v3427 = vpop.permute.xlu0 %3426
      %3428 = vrot.lane.b32.xlu0 %v3350, 68
      %v3429 = vpop.permute.xlu0 %3428
      %3430 = vrot.lane.b32.xlu0 %v3351, 68
      %v3431 = vpop.permute.xlu0 %3430
      %3432 = vrot.lane.b32.xlu0 %v3352, 68
      %v3433 = vpop.permute.xlu0 %3432
      %3434 = vrot.lane.b32.xlu0 %v3353, 68
      %v3435 = vpop.permute.xlu0 %3434
      %3436 = vrot.lane.b32.xlu0 %v3354, 68
      %v3437 = vpop.permute.xlu0 %3436
      %3438 = vrot.lane.b32.xlu0 %v3355, 68
      %v3439 = vpop.permute.xlu0 %3438
      %3440 = vrot.lane.b32.xlu0 %v3356, 68
      %v3441 = vpop.permute.xlu0 %3440
      %3442 = vrot.lane.b32.xlu0 %v3357, 68
      %v3443 = vpop.permute.xlu0 %3442
      %3444 = vrot.lane.b32.xlu0 %v3358, 68
      %v3445 = vpop.permute.xlu0 %3444
      %3446 = vrot.lane.b32.xlu0 %v3359, 68
      %v3447 = vpop.permute.xlu0 %3446
      %3448 = vrot.lane.b32.xlu0 %v3360, 68
      %v3449 = vpop.permute.xlu0 %3448
      %3450 = vrot.lane.b32.xlu0 %v3361, 68
      %v3451 = vpop.permute.xlu0 %3450
      %3452 = vrot.lane.b32.xlu0 %v3362, 68
      %v3453 = vpop.permute.xlu0 %3452
      %3454 = vrot.lane.b32.xlu0 %v3363, 68
      %v3455 = vpop.permute.xlu0 %3454
      %3456 = vrot.lane.b32.xlu0 %v3364, 68
      %v3457 = vpop.permute.xlu0 %3456
      %3458 = vrot.lane.b32.xlu0 %v3365, 68
      %v3459 = vpop.permute.xlu0 %3458
      %3460 = vrot.lane.b32.xlu0 %v3366, 68
      %v3461 = vpop.permute.xlu0 %3460
      %3462 = vrot.lane.b32.xlu0 %v3367, 68
      %v3463 = vpop.permute.xlu0 %3462
      %vm3496 = vcmask 589344
      %3497 = vst.msk [vmem:[#allocation2] sm:$0xff] %vm3496, %v3401
      %3498 = vst.msk [vmem:[#allocation2 + $0x8] sm:$0xff] %vm3496, %v3403
      %3499 = vst.msk [vmem:[#allocation2 + $0x10] sm:$0xff] %vm3496, %v3405
      %3500 = vst.msk [vmem:[#allocation2 + $0x18] sm:$0xff] %vm3496, %v3407
      %3501 = vst.msk [vmem:[#allocation2 + $0x20] sm:$0xff] %vm3496, %v3409
      %3502 = vst.msk [vmem:[#allocation2 + $0x28] sm:$0xff] %vm3496, %v3411
      %3503 = vst.msk [vmem:[#allocation2 + $0x30] sm:$0xff] %vm3496, %v3413
      %3504 = vst.msk [vmem:[#allocation2 + $0x38] sm:$0xff] %vm3496, %v3415
      %3505 = vst.msk [vmem:[#allocation2 + $0x40] sm:$0xff] %vm3496, %v3417
      %3506 = vst.msk [vmem:[#allocation2 + $0x48] sm:$0xff] %vm3496, %v3419
      %3507 = vst.msk [vmem:[#allocation2 + $0x50] sm:$0xff] %vm3496, %v3421
      %3508 = vst.msk [vmem:[#allocation2 + $0x58] sm:$0xff] %vm3496, %v3423
      %3509 = vst.msk [vmem:[#allocation2 + $0x60] sm:$0xff] %vm3496, %v3425
      %3510 = vst.msk [vmem:[#allocation2 + $0x68] sm:$0xff] %vm3496, %v3427
      %3511 = vst.msk [vmem:[#allocation2 + $0x70] sm:$0xff] %vm3496, %v3429
      %3512 = vst.msk [vmem:[#allocation2 + $0x78] sm:$0xff] %vm3496, %v3431
      %3513 = vst.msk [vmem:[#allocation2 + $0x80] sm:$0xff] %vm3496, %v3433
      %3514 = vst.msk [vmem:[#allocation2 + $0x88] sm:$0xff] %vm3496, %v3435
      %3515 = vst.msk [vmem:[#allocation2 + $0x90] sm:$0xff] %vm3496, %v3437
      %3516 = vst.msk [vmem:[#allocation2 + $0x98] sm:$0xff] %vm3496, %v3439
      %3517 = vst.msk [vmem:[#allocation2 + $0xa0] sm:$0xff] %vm3496, %v3441
      %3518 = vst.msk [vmem:[#allocation2 + $0xa8] sm:$0xff] %vm3496, %v3443
      %3519 = vst.msk [vmem:[#allocation2 + $0xb0] sm:$0xff] %vm3496, %v3445
      %3520 = vst.msk [vmem:[#allocation2 + $0xb8] sm:$0xff] %vm3496, %v3447
      %3521 = vst.msk [vmem:[#allocation2 + $0xc0] sm:$0xff] %vm3496, %v3449
      %3522 = vst.msk [vmem:[#allocation2 + $0xc8] sm:$0xff] %vm3496, %v3451
      %3523 = vst.msk [vmem:[#allocation2 + $0xd0] sm:$0xff] %vm3496, %v3453
      %3524 = vst.msk [vmem:[#allocation2 + $0xd8] sm:$0xff] %vm3496, %v3455
      %3525 = vst.msk [vmem:[#allocation2 + $0xe0] sm:$0xff] %vm3496, %v3457
      %3526 = vst.msk [vmem:[#allocation2 + $0xe8] sm:$0xff] %vm3496, %v3459
      %3527 = vst.msk [vmem:[#allocation2 + $0xf0] sm:$0xff] %vm3496, %v3461
      %3528 = vst.msk [vmem:[#allocation2 + $0xf8] sm:$0xff] %vm3496, %v3463
      %s3529 = scalar_lea.vmem %s138, 320
      %v3530 = vld [vmem:[%s3529] sm:$0xff]
      %v3531 = vld [vmem:[%s3529 + $0x10] sm:$0xff]
      %v3532 = vld [vmem:[%s3529 + $0x20] sm:$0xff]
      %v3533 = vld [vmem:[%s3529 + $0x30] sm:$0xff]
      %v3534 = vld [vmem:[%s3529 + $0x40] sm:$0xff]
      %v3535 = vld [vmem:[%s3529 + $0x50] sm:$0xff]
      %v3536 = vld [vmem:[%s3529 + $0x60] sm:$0xff]
      %v3537 = vld [vmem:[%s3529 + $0x70] sm:$0xff]
      %v3538 = vld [vmem:[%s3529 + $0xa0] sm:$0xff]
      %v3539 = vld [vmem:[%s3529 + $0xb0] sm:$0xff]
      %v3540 = vld [vmem:[%s3529 + $0xc0] sm:$0xff]
      %v3541 = vld [vmem:[%s3529 + $0xd0] sm:$0xff]
      %v3542 = vld [vmem:[%s3529 + $0xe0] sm:$0xff]
      %v3543 = vld [vmem:[%s3529 + $0xf0] sm:$0xff]
      %v3544 = vld [vmem:[%s3529 + $0x100] sm:$0xff]
      %v3545 = vld [vmem:[%s3529 + $0x110] sm:$0xff]
      %v3546 = vld [vmem:[%s3529 + $0x140] sm:$0xff]
      %v3547 = vld [vmem:[%s3529 + $0x150] sm:$0xff]
      %v3548 = vld [vmem:[%s3529 + $0x160] sm:$0xff]
      %v3549 = vld [vmem:[%s3529 + $0x170] sm:$0xff]
      %v3550 = vld [vmem:[%s3529 + $0x180] sm:$0xff]
      %v3551 = vld [vmem:[%s3529 + $0x190] sm:$0xff]
      %v3552 = vld [vmem:[%s3529 + $0x1a0] sm:$0xff]
      %v3553 = vld [vmem:[%s3529 + $0x1b0] sm:$0xff]
      %v3554 = vld [vmem:[%s3529 + $0x1e0] sm:$0xff]
      %v3555 = vld [vmem:[%s3529 + $0x1f0] sm:$0xff]
      %v3556 = vld [vmem:[%s3529 + $0x200] sm:$0xff]
      %v3557 = vld [vmem:[%s3529 + $0x210] sm:$0xff]
      %v3558 = vld [vmem:[%s3529 + $0x220] sm:$0xff]
      %v3559 = vld [vmem:[%s3529 + $0x230] sm:$0xff]
      %v3560 = vld [vmem:[%s3529 + $0x240] sm:$0xff]
      %v3561 = vld [vmem:[%s3529 + $0x250] sm:$0xff]
      %3594 = vrot.lane.b32.xlu0 %v3530, 72
      %v3595 = vpop.permute.xlu0 %3594
      %3596 = vrot.lane.b32.xlu0 %v3531, 72
      %v3597 = vpop.permute.xlu0 %3596
      %3598 = vrot.lane.b32.xlu0 %v3532, 72
      %v3599 = vpop.permute.xlu0 %3598
      %3600 = vrot.lane.b32.xlu0 %v3533, 72
      %v3601 = vpop.permute.xlu0 %3600
      %3602 = vrot.lane.b32.xlu0 %v3534, 72
      %v3603 = vpop.permute.xlu0 %3602
      %3604 = vrot.lane.b32.xlu0 %v3535, 72
      %v3605 = vpop.permute.xlu0 %3604
      %3606 = vrot.lane.b32.xlu0 %v3536, 72
      %v3607 = vpop.permute.xlu0 %3606
      %3608 = vrot.lane.b32.xlu0 %v3537, 72
      %v3609 = vpop.permute.xlu0 %3608
      %3610 = vrot.lane.b32.xlu0 %v3538, 72
      %v3611 = vpop.permute.xlu0 %3610
      %3612 = vrot.lane.b32.xlu0 %v3539, 72
      %v3613 = vpop.permute.xlu0 %3612
      %3614 = vrot.lane.b32.xlu0 %v3540, 72
      %v3615 = vpop.permute.xlu0 %3614
      %3616 = vrot.lane.b32.xlu0 %v3541, 72
      %v3617 = vpop.permute.xlu0 %3616
      %3618 = vrot.lane.b32.xlu0 %v3542, 72
      %v3619 = vpop.permute.xlu0 %3618
      %3620 = vrot.lane.b32.xlu0 %v3543, 72
      %v3621 = vpop.permute.xlu0 %3620
      %3622 = vrot.lane.b32.xlu0 %v3544, 72
      %v3623 = vpop.permute.xlu0 %3622
      %3624 = vrot.lane.b32.xlu0 %v3545, 72
      %v3625 = vpop.permute.xlu0 %3624
      %3626 = vrot.lane.b32.xlu0 %v3546, 72
      %v3627 = vpop.permute.xlu0 %3626
      %3628 = vrot.lane.b32.xlu0 %v3547, 72
      %v3629 = vpop.permute.xlu0 %3628
      %3630 = vrot.lane.b32.xlu0 %v3548, 72
      %v3631 = vpop.permute.xlu0 %3630
      %3632 = vrot.lane.b32.xlu0 %v3549, 72
      %v3633 = vpop.permute.xlu0 %3632
      %3634 = vrot.lane.b32.xlu0 %v3550, 72
      %v3635 = vpop.permute.xlu0 %3634
      %3636 = vrot.lane.b32.xlu0 %v3551, 72
      %v3637 = vpop.permute.xlu0 %3636
      %3638 = vrot.lane.b32.xlu0 %v3552, 72
      %v3639 = vpop.permute.xlu0 %3638
      %3640 = vrot.lane.b32.xlu0 %v3553, 72
      %v3641 = vpop.permute.xlu0 %3640
      %3642 = vrot.lane.b32.xlu0 %v3554, 72
      %v3643 = vpop.permute.xlu0 %3642
      %3644 = vrot.lane.b32.xlu0 %v3555, 72
      %v3645 = vpop.permute.xlu0 %3644
      %3646 = vrot.lane.b32.xlu0 %v3556, 72
      %v3647 = vpop.permute.xlu0 %3646
      %3648 = vrot.lane.b32.xlu0 %v3557, 72
      %v3649 = vpop.permute.xlu0 %3648
      %3650 = vrot.lane.b32.xlu0 %v3558, 72
      %v3651 = vpop.permute.xlu0 %3650
      %3652 = vrot.lane.b32.xlu0 %v3559, 72
      %v3653 = vpop.permute.xlu0 %3652
      %3654 = vrot.lane.b32.xlu0 %v3560, 72
      %v3655 = vpop.permute.xlu0 %3654
      %3656 = vrot.lane.b32.xlu0 %v3561, 72
      %v3657 = vpop.permute.xlu0 %3656
      %vm3690 = vcmask 622144
      %3691 = vst.msk [vmem:[#allocation2] sm:$0xff] %vm3690, %v3595
      %3692 = vst.msk [vmem:[#allocation2 + $0x8] sm:$0xff] %vm3690, %v3597
      %3693 = vst.msk [vmem:[#allocation2 + $0x10] sm:$0xff] %vm3690, %v3599
      %3694 = vst.msk [vmem:[#allocation2 + $0x18] sm:$0xff] %vm3690, %v3601
      %3695 = vst.msk [vmem:[#allocation2 + $0x20] sm:$0xff] %vm3690, %v3603
      %3696 = vst.msk [vmem:[#allocation2 + $0x28] sm:$0xff] %vm3690, %v3605
      %3697 = vst.msk [vmem:[#allocation2 + $0x30] sm:$0xff] %vm3690, %v3607
      %3698 = vst.msk [vmem:[#allocation2 + $0x38] sm:$0xff] %vm3690, %v3609
      %3699 = vst.msk [vmem:[#allocation2 + $0x40] sm:$0xff] %vm3690, %v3611
      %3700 = vst.msk [vmem:[#allocation2 + $0x48] sm:$0xff] %vm3690, %v3613
      %3701 = vst.msk [vmem:[#allocation2 + $0x50] sm:$0xff] %vm3690, %v3615
      %3702 = vst.msk [vmem:[#allocation2 + $0x58] sm:$0xff] %vm3690, %v3617
      %3703 = vst.msk [vmem:[#allocation2 + $0x60] sm:$0xff] %vm3690, %v3619
      %3704 = vst.msk [vmem:[#allocation2 + $0x68] sm:$0xff] %vm3690, %v3621
      %3705 = vst.msk [vmem:[#allocation2 + $0x70] sm:$0xff] %vm3690, %v3623
      %3706 = vst.msk [vmem:[#allocation2 + $0x78] sm:$0xff] %vm3690, %v3625
      %3707 = vst.msk [vmem:[#allocation2 + $0x80] sm:$0xff] %vm3690, %v3627
      %3708 = vst.msk [vmem:[#allocation2 + $0x88] sm:$0xff] %vm3690, %v3629
      %3709 = vst.msk [vmem:[#allocation2 + $0x90] sm:$0xff] %vm3690, %v3631
      %3710 = vst.msk [vmem:[#allocation2 + $0x98] sm:$0xff] %vm3690, %v3633
      %3711 = vst.msk [vmem:[#allocation2 + $0xa0] sm:$0xff] %vm3690, %v3635
      %3712 = vst.msk [vmem:[#allocation2 + $0xa8] sm:$0xff] %vm3690, %v3637
      %3713 = vst.msk [vmem:[#allocation2 + $0xb0] sm:$0xff] %vm3690, %v3639
      %3714 = vst.msk [vmem:[#allocation2 + $0xb8] sm:$0xff] %vm3690, %v3641
      %3715 = vst.msk [vmem:[#allocation2 + $0xc0] sm:$0xff] %vm3690, %v3643
      %3716 = vst.msk [vmem:[#allocation2 + $0xc8] sm:$0xff] %vm3690, %v3645
      %3717 = vst.msk [vmem:[#allocation2 + $0xd0] sm:$0xff] %vm3690, %v3647
      %3718 = vst.msk [vmem:[#allocation2 + $0xd8] sm:$0xff] %vm3690, %v3649
      %3719 = vst.msk [vmem:[#allocation2 + $0xe0] sm:$0xff] %vm3690, %v3651
      %3720 = vst.msk [vmem:[#allocation2 + $0xe8] sm:$0xff] %vm3690, %v3653
      %3721 = vst.msk [vmem:[#allocation2 + $0xf0] sm:$0xff] %vm3690, %v3655
      %3722 = vst.msk [vmem:[#allocation2 + $0xf8] sm:$0xff] %vm3690, %v3657
      %v3723 = vld [vmem:[%s3529 + $0x1] sm:$0xff]
      %v3724 = vld [vmem:[%s3529 + $0x11] sm:$0xff]
      %v3725 = vld [vmem:[%s3529 + $0x21] sm:$0xff]
      %v3726 = vld [vmem:[%s3529 + $0x31] sm:$0xff]
      %v3727 = vld [vmem:[%s3529 + $0x41] sm:$0xff]
      %v3728 = vld [vmem:[%s3529 + $0x51] sm:$0xff]
      %v3729 = vld [vmem:[%s3529 + $0x61] sm:$0xff]
      %v3730 = vld [vmem:[%s3529 + $0x71] sm:$0xff]
      %v3731 = vld [vmem:[%s3529 + $0xa1] sm:$0xff]
      %v3732 = vld [vmem:[%s3529 + $0xb1] sm:$0xff]
      %v3733 = vld [vmem:[%s3529 + $0xc1] sm:$0xff]
      %v3734 = vld [vmem:[%s3529 + $0xd1] sm:$0xff]
      %v3735 = vld [vmem:[%s3529 + $0xe1] sm:$0xff]
      %v3736 = vld [vmem:[%s3529 + $0xf1] sm:$0xff]
      %v3737 = vld [vmem:[%s3529 + $0x101] sm:$0xff]
      %v3738 = vld [vmem:[%s3529 + $0x111] sm:$0xff]
      %v3739 = vld [vmem:[%s3529 + $0x141] sm:$0xff]
      %v3740 = vld [vmem:[%s3529 + $0x151] sm:$0xff]
      %v3741 = vld [vmem:[%s3529 + $0x161] sm:$0xff]
      %v3742 = vld [vmem:[%s3529 + $0x171] sm:$0xff]
      %v3743 = vld [vmem:[%s3529 + $0x181] sm:$0xff]
      %v3744 = vld [vmem:[%s3529 + $0x191] sm:$0xff]
      %v3745 = vld [vmem:[%s3529 + $0x1a1] sm:$0xff]
      %v3746 = vld [vmem:[%s3529 + $0x1b1] sm:$0xff]
      %v3747 = vld [vmem:[%s3529 + $0x1e1] sm:$0xff]
      %v3748 = vld [vmem:[%s3529 + $0x1f1] sm:$0xff]
      %v3749 = vld [vmem:[%s3529 + $0x201] sm:$0xff]
      %v3750 = vld [vmem:[%s3529 + $0x211] sm:$0xff]
      %v3751 = vld [vmem:[%s3529 + $0x221] sm:$0xff]
      %v3752 = vld [vmem:[%s3529 + $0x231] sm:$0xff]
      %v3753 = vld [vmem:[%s3529 + $0x241] sm:$0xff]
      %v3754 = vld [vmem:[%s3529 + $0x251] sm:$0xff]
      %3787 = vrot.lane.b32.xlu0 %v3723, 76
      %v3788 = vpop.permute.xlu0 %3787
      %3789 = vrot.lane.b32.xlu0 %v3724, 76
      %v3790 = vpop.permute.xlu0 %3789
      %3791 = vrot.lane.b32.xlu0 %v3725, 76
      %v3792 = vpop.permute.xlu0 %3791
      %3793 = vrot.lane.b32.xlu0 %v3726, 76
      %v3794 = vpop.permute.xlu0 %3793
      %3795 = vrot.lane.b32.xlu0 %v3727, 76
      %v3796 = vpop.permute.xlu0 %3795
      %3797 = vrot.lane.b32.xlu0 %v3728, 76
      %v3798 = vpop.permute.xlu0 %3797
      %3799 = vrot.lane.b32.xlu0 %v3729, 76
      %v3800 = vpop.permute.xlu0 %3799
      %3801 = vrot.lane.b32.xlu0 %v3730, 76
      %v3802 = vpop.permute.xlu0 %3801
      %3803 = vrot.lane.b32.xlu0 %v3731, 76
      %v3804 = vpop.permute.xlu0 %3803
      %3805 = vrot.lane.b32.xlu0 %v3732, 76
      %v3806 = vpop.permute.xlu0 %3805
      %3807 = vrot.lane.b32.xlu0 %v3733, 76
      %v3808 = vpop.permute.xlu0 %3807
      %3809 = vrot.lane.b32.xlu0 %v3734, 76
      %v3810 = vpop.permute.xlu0 %3809
      %3811 = vrot.lane.b32.xlu0 %v3735, 76
      %v3812 = vpop.permute.xlu0 %3811
      %3813 = vrot.lane.b32.xlu0 %v3736, 76
      %v3814 = vpop.permute.xlu0 %3813
      %3815 = vrot.lane.b32.xlu0 %v3737, 76
      %v3816 = vpop.permute.xlu0 %3815
      %3817 = vrot.lane.b32.xlu0 %v3738, 76
      %v3818 = vpop.permute.xlu0 %3817
      %3819 = vrot.lane.b32.xlu0 %v3739, 76
      %v3820 = vpop.permute.xlu0 %3819
      %3821 = vrot.lane.b32.xlu0 %v3740, 76
      %v3822 = vpop.permute.xlu0 %3821
      %3823 = vrot.lane.b32.xlu0 %v3741, 76
      %v3824 = vpop.permute.xlu0 %3823
      %3825 = vrot.lane.b32.xlu0 %v3742, 76
      %v3826 = vpop.permute.xlu0 %3825
      %3827 = vrot.lane.b32.xlu0 %v3743, 76
      %v3828 = vpop.permute.xlu0 %3827
      %3829 = vrot.lane.b32.xlu0 %v3744, 76
      %v3830 = vpop.permute.xlu0 %3829
      %3831 = vrot.lane.b32.xlu0 %v3745, 76
      %v3832 = vpop.permute.xlu0 %3831
      %3833 = vrot.lane.b32.xlu0 %v3746, 76
      %v3834 = vpop.permute.xlu0 %3833
      %3835 = vrot.lane.b32.xlu0 %v3747, 76
      %v3836 = vpop.permute.xlu0 %3835
      %3837 = vrot.lane.b32.xlu0 %v3748, 76
      %v3838 = vpop.permute.xlu0 %3837
      %3839 = vrot.lane.b32.xlu0 %v3749, 76
      %v3840 = vpop.permute.xlu0 %3839
      %3841 = vrot.lane.b32.xlu0 %v3750, 76
      %v3842 = vpop.permute.xlu0 %3841
      %3843 = vrot.lane.b32.xlu0 %v3751, 76
      %v3844 = vpop.permute.xlu0 %3843
      %3845 = vrot.lane.b32.xlu0 %v3752, 76
      %v3846 = vpop.permute.xlu0 %3845
      %3847 = vrot.lane.b32.xlu0 %v3753, 76
      %v3848 = vpop.permute.xlu0 %3847
      %3849 = vrot.lane.b32.xlu0 %v3754, 76
      %v3850 = vpop.permute.xlu0 %3849
      %vm3883 = vcmask 654944
      %3884 = vst.msk [vmem:[#allocation2] sm:$0xff] %vm3883, %v3788
      %3885 = vst.msk [vmem:[#allocation2 + $0x8] sm:$0xff] %vm3883, %v3790
      %3886 = vst.msk [vmem:[#allocation2 + $0x10] sm:$0xff] %vm3883, %v3792
      %3887 = vst.msk [vmem:[#allocation2 + $0x18] sm:$0xff] %vm3883, %v3794
      %3888 = vst.msk [vmem:[#allocation2 + $0x20] sm:$0xff] %vm3883, %v3796
      %3889 = vst.msk [vmem:[#allocation2 + $0x28] sm:$0xff] %vm3883, %v3798
      %3890 = vst.msk [vmem:[#allocation2 + $0x30] sm:$0xff] %vm3883, %v3800
      %3891 = vst.msk [vmem:[#allocation2 + $0x38] sm:$0xff] %vm3883, %v3802
      %3892 = vst.msk [vmem:[#allocation2 + $0x40] sm:$0xff] %vm3883, %v3804
      %3893 = vst.msk [vmem:[#allocation2 + $0x48] sm:$0xff] %vm3883, %v3806
      %3894 = vst.msk [vmem:[#allocation2 + $0x50] sm:$0xff] %vm3883, %v3808
      %3895 = vst.msk [vmem:[#allocation2 + $0x58] sm:$0xff] %vm3883, %v3810
      %3896 = vst.msk [vmem:[#allocation2 + $0x60] sm:$0xff] %vm3883, %v3812
      %3897 = vst.msk [vmem:[#allocation2 + $0x68] sm:$0xff] %vm3883, %v3814
      %3898 = vst.msk [vmem:[#allocation2 + $0x70] sm:$0xff] %vm3883, %v3816
      %3899 = vst.msk [vmem:[#allocation2 + $0x78] sm:$0xff] %vm3883, %v3818
      %3900 = vst.msk [vmem:[#allocation2 + $0x80] sm:$0xff] %vm3883, %v3820
      %3901 = vst.msk [vmem:[#allocation2 + $0x88] sm:$0xff] %vm3883, %v3822
      %3902 = vst.msk [vmem:[#allocation2 + $0x90] sm:$0xff] %vm3883, %v3824
      %3903 = vst.msk [vmem:[#allocation2 + $0x98] sm:$0xff] %vm3883, %v3826
      %3904 = vst.msk [vmem:[#allocation2 + $0xa0] sm:$0xff] %vm3883, %v3828
      %3905 = vst.msk [vmem:[#allocation2 + $0xa8] sm:$0xff] %vm3883, %v3830
      %3906 = vst.msk [vmem:[#allocation2 + $0xb0] sm:$0xff] %vm3883, %v3832
      %3907 = vst.msk [vmem:[#allocation2 + $0xb8] sm:$0xff] %vm3883, %v3834
      %3908 = vst.msk [vmem:[#allocation2 + $0xc0] sm:$0xff] %vm3883, %v3836
      %3909 = vst.msk [vmem:[#allocation2 + $0xc8] sm:$0xff] %vm3883, %v3838
      %3910 = vst.msk [vmem:[#allocation2 + $0xd0] sm:$0xff] %vm3883, %v3840
      %3911 = vst.msk [vmem:[#allocation2 + $0xd8] sm:$0xff] %vm3883, %v3842
      %3912 = vst.msk [vmem:[#allocation2 + $0xe0] sm:$0xff] %vm3883, %v3844
      %3913 = vst.msk [vmem:[#allocation2 + $0xe8] sm:$0xff] %vm3883, %v3846
      %3914 = vst.msk [vmem:[#allocation2 + $0xf0] sm:$0xff] %vm3883, %v3848
      %3915 = vst.msk [vmem:[#allocation2 + $0xf8] sm:$0xff] %vm3883, %v3850
      %v3916 = vld [vmem:[%s3529 + $0x2] sm:$0xff]
      %v3917 = vld [vmem:[%s3529 + $0x12] sm:$0xff]
      %v3918 = vld [vmem:[%s3529 + $0x22] sm:$0xff]
      %v3919 = vld [vmem:[%s3529 + $0x32] sm:$0xff]
      %v3920 = vld [vmem:[%s3529 + $0x42] sm:$0xff]
      %v3921 = vld [vmem:[%s3529 + $0x52] sm:$0xff]
      %v3922 = vld [vmem:[%s3529 + $0x62] sm:$0xff]
      %v3923 = vld [vmem:[%s3529 + $0x72] sm:$0xff]
      %v3924 = vld [vmem:[%s3529 + $0xa2] sm:$0xff]
      %v3925 = vld [vmem:[%s3529 + $0xb2] sm:$0xff]
      %v3926 = vld [vmem:[%s3529 + $0xc2] sm:$0xff]
      %v3927 = vld [vmem:[%s3529 + $0xd2] sm:$0xff]
      %v3928 = vld [vmem:[%s3529 + $0xe2] sm:$0xff]
      %v3929 = vld [vmem:[%s3529 + $0xf2] sm:$0xff]
      %v3930 = vld [vmem:[%s3529 + $0x102] sm:$0xff]
      %v3931 = vld [vmem:[%s3529 + $0x112] sm:$0xff]
      %v3932 = vld [vmem:[%s3529 + $0x142] sm:$0xff]
      %v3933 = vld [vmem:[%s3529 + $0x152] sm:$0xff]
      %v3934 = vld [vmem:[%s3529 + $0x162] sm:$0xff]
      %v3935 = vld [vmem:[%s3529 + $0x172] sm:$0xff]
      %v3936 = vld [vmem:[%s3529 + $0x182] sm:$0xff]
      %v3937 = vld [vmem:[%s3529 + $0x192] sm:$0xff]
      %v3938 = vld [vmem:[%s3529 + $0x1a2] sm:$0xff]
      %v3939 = vld [vmem:[%s3529 + $0x1b2] sm:$0xff]
      %v3940 = vld [vmem:[%s3529 + $0x1e2] sm:$0xff]
      %v3941 = vld [vmem:[%s3529 + $0x1f2] sm:$0xff]
      %v3942 = vld [vmem:[%s3529 + $0x202] sm:$0xff]
      %v3943 = vld [vmem:[%s3529 + $0x212] sm:$0xff]
      %v3944 = vld [vmem:[%s3529 + $0x222] sm:$0xff]
      %v3945 = vld [vmem:[%s3529 + $0x232] sm:$0xff]
      %v3946 = vld [vmem:[%s3529 + $0x242] sm:$0xff]
      %v3947 = vld [vmem:[%s3529 + $0x252] sm:$0xff]
      %3980 = vrot.lane.b32.xlu0 %v3916, 80
      %v3981 = vpop.permute.xlu0 %3980
      %3982 = vrot.lane.b32.xlu0 %v3917, 80
      %v3983 = vpop.permute.xlu0 %3982
      %3984 = vrot.lane.b32.xlu0 %v3918, 80
      %v3985 = vpop.permute.xlu0 %3984
      %3986 = vrot.lane.b32.xlu0 %v3919, 80
      %v3987 = vpop.permute.xlu0 %3986
      %3988 = vrot.lane.b32.xlu0 %v3920, 80
      %v3989 = vpop.permute.xlu0 %3988
      %3990 = vrot.lane.b32.xlu0 %v3921, 80
      %v3991 = vpop.permute.xlu0 %3990
      %3992 = vrot.lane.b32.xlu0 %v3922, 80
      %v3993 = vpop.permute.xlu0 %3992
      %3994 = vrot.lane.b32.xlu0 %v3923, 80
      %v3995 = vpop.permute.xlu0 %3994
      %3996 = vrot.lane.b32.xlu0 %v3924, 80
      %v3997 = vpop.permute.xlu0 %3996
      %3998 = vrot.lane.b32.xlu0 %v3925, 80
      %v3999 = vpop.permute.xlu0 %3998
      %4000 = vrot.lane.b32.xlu0 %v3926, 80
      %v4001 = vpop.permute.xlu0 %4000
      %4002 = vrot.lane.b32.xlu0 %v3927, 80
      %v4003 = vpop.permute.xlu0 %4002
      %4004 = vrot.lane.b32.xlu0 %v3928, 80
      %v4005 = vpop.permute.xlu0 %4004
      %4006 = vrot.lane.b32.xlu0 %v3929, 80
      %v4007 = vpop.permute.xlu0 %4006
      %4008 = vrot.lane.b32.xlu0 %v3930, 80
      %v4009 = vpop.permute.xlu0 %4008
      %4010 = vrot.lane.b32.xlu0 %v3931, 80
      %v4011 = vpop.permute.xlu0 %4010
      %4012 = vrot.lane.b32.xlu0 %v3932, 80
      %v4013 = vpop.permute.xlu0 %4012
      %4014 = vrot.lane.b32.xlu0 %v3933, 80
      %v4015 = vpop.permute.xlu0 %4014
      %4016 = vrot.lane.b32.xlu0 %v3934, 80
      %v4017 = vpop.permute.xlu0 %4016
      %4018 = vrot.lane.b32.xlu0 %v3935, 80
      %v4019 = vpop.permute.xlu0 %4018
      %4020 = vrot.lane.b32.xlu0 %v3936, 80
      %v4021 = vpop.permute.xlu0 %4020
      %4022 = vrot.lane.b32.xlu0 %v3937, 80
      %v4023 = vpop.permute.xlu0 %4022
      %4024 = vrot.lane.b32.xlu0 %v3938, 80
      %v4025 = vpop.permute.xlu0 %4024
      %4026 = vrot.lane.b32.xlu0 %v3939, 80
      %v4027 = vpop.permute.xlu0 %4026
      %4028 = vrot.lane.b32.xlu0 %v3940, 80
      %v4029 = vpop.permute.xlu0 %4028
      %4030 = vrot.lane.b32.xlu0 %v3941, 80
      %v4031 = vpop.permute.xlu0 %4030
      %4032 = vrot.lane.b32.xlu0 %v3942, 80
      %v4033 = vpop.permute.xlu0 %4032
      %4034 = vrot.lane.b32.xlu0 %v3943, 80
      %v4035 = vpop.permute.xlu0 %4034
      %4036 = vrot.lane.b32.xlu0 %v3944, 80
      %v4037 = vpop.permute.xlu0 %4036
      %4038 = vrot.lane.b32.xlu0 %v3945, 80
      %v4039 = vpop.permute.xlu0 %4038
      %4040 = vrot.lane.b32.xlu0 %v3946, 80
      %v4041 = vpop.permute.xlu0 %4040
      %4042 = vrot.lane.b32.xlu0 %v3947, 80
      %v4043 = vpop.permute.xlu0 %4042
      %vm4076 = vcmask 687744
      %4077 = vst.msk [vmem:[#allocation2] sm:$0xff] %vm4076, %v3981
      %4078 = vst.msk [vmem:[#allocation2 + $0x8] sm:$0xff] %vm4076, %v3983
      %4079 = vst.msk [vmem:[#allocation2 + $0x10] sm:$0xff] %vm4076, %v3985
      %4080 = vst.msk [vmem:[#allocation2 + $0x18] sm:$0xff] %vm4076, %v3987
      %4081 = vst.msk [vmem:[#allocation2 + $0x20] sm:$0xff] %vm4076, %v3989
      %4082 = vst.msk [vmem:[#allocation2 + $0x28] sm:$0xff] %vm4076, %v3991
      %4083 = vst.msk [vmem:[#allocation2 + $0x30] sm:$0xff] %vm4076, %v3993
      %4084 = vst.msk [vmem:[#allocation2 + $0x38] sm:$0xff] %vm4076, %v3995
      %4085 = vst.msk [vmem:[#allocation2 + $0x40] sm:$0xff] %vm4076, %v3997
      %4086 = vst.msk [vmem:[#allocation2 + $0x48] sm:$0xff] %vm4076, %v3999
      %4087 = vst.msk [vmem:[#allocation2 + $0x50] sm:$0xff] %vm4076, %v4001
      %4088 = vst.msk [vmem:[#allocation2 + $0x58] sm:$0xff] %vm4076, %v4003
      %4089 = vst.msk [vmem:[#allocation2 + $0x60] sm:$0xff] %vm4076, %v4005
      %4090 = vst.msk [vmem:[#allocation2 + $0x68] sm:$0xff] %vm4076, %v4007
      %4091 = vst.msk [vmem:[#allocation2 + $0x70] sm:$0xff] %vm4076, %v4009
      %4092 = vst.msk [vmem:[#allocation2 + $0x78] sm:$0xff] %vm4076, %v4011
      %4093 = vst.msk [vmem:[#allocation2 + $0x80] sm:$0xff] %vm4076, %v4013
      %4094 = vst.msk [vmem:[#allocation2 + $0x88] sm:$0xff] %vm4076, %v4015
      %4095 = vst.msk [vmem:[#allocation2 + $0x90] sm:$0xff] %vm4076, %v4017
      %4096 = vst.msk [vmem:[#allocation2 + $0x98] sm:$0xff] %vm4076, %v4019
      %4097 = vst.msk [vmem:[#allocation2 + $0xa0] sm:$0xff] %vm4076, %v4021
      %4098 = vst.msk [vmem:[#allocation2 + $0xa8] sm:$0xff] %vm4076, %v4023
      %4099 = vst.msk [vmem:[#allocation2 + $0xb0] sm:$0xff] %vm4076, %v4025
      %4100 = vst.msk [vmem:[#allocation2 + $0xb8] sm:$0xff] %vm4076, %v4027
      %4101 = vst.msk [vmem:[#allocation2 + $0xc0] sm:$0xff] %vm4076, %v4029
      %4102 = vst.msk [vmem:[#allocation2 + $0xc8] sm:$0xff] %vm4076, %v4031
      %4103 = vst.msk [vmem:[#allocation2 + $0xd0] sm:$0xff] %vm4076, %v4033
      %4104 = vst.msk [vmem:[#allocation2 + $0xd8] sm:$0xff] %vm4076, %v4035
      %4105 = vst.msk [vmem:[#allocation2 + $0xe0] sm:$0xff] %vm4076, %v4037
      %4106 = vst.msk [vmem:[#allocation2 + $0xe8] sm:$0xff] %vm4076, %v4039
      %4107 = vst.msk [vmem:[#allocation2 + $0xf0] sm:$0xff] %vm4076, %v4041
      %4108 = vst.msk [vmem:[#allocation2 + $0xf8] sm:$0xff] %vm4076, %v4043
      %s4109 = scalar_lea.vmem %s138, 336
      %v4110 = vld [vmem:[%s4109] sm:$0xff]
      %v4111 = vld [vmem:[%s4109 + $0x10] sm:$0xff]
      %v4112 = vld [vmem:[%s4109 + $0x20] sm:$0xff]
      %v4113 = vld [vmem:[%s4109 + $0x30] sm:$0xff]
      %v4114 = vld [vmem:[%s4109 + $0x40] sm:$0xff]
      %v4115 = vld [vmem:[%s4109 + $0x50] sm:$0xff]
      %v4116 = vld [vmem:[%s4109 + $0x60] sm:$0xff]
      %v4117 = vld [vmem:[%s4109 + $0x70] sm:$0xff]
      %v4118 = vld [vmem:[%s4109 + $0xa0] sm:$0xff]
      %v4119 = vld [vmem:[%s4109 + $0xb0] sm:$0xff]
      %v4120 = vld [vmem:[%s4109 + $0xc0] sm:$0xff]
      %v4121 = vld [vmem:[%s4109 + $0xd0] sm:$0xff]
      %v4122 = vld [vmem:[%s4109 + $0xe0] sm:$0xff]
      %v4123 = vld [vmem:[%s4109 + $0xf0] sm:$0xff]
      %v4124 = vld [vmem:[%s4109 + $0x100] sm:$0xff]
      %v4125 = vld [vmem:[%s4109 + $0x110] sm:$0xff]
      %v4126 = vld [vmem:[%s4109 + $0x140] sm:$0xff]
      %v4127 = vld [vmem:[%s4109 + $0x150] sm:$0xff]
      %v4128 = vld [vmem:[%s4109 + $0x160] sm:$0xff]
      %v4129 = vld [vmem:[%s4109 + $0x170] sm:$0xff]
      %v4130 = vld [vmem:[%s4109 + $0x180] sm:$0xff]
      %v4131 = vld [vmem:[%s4109 + $0x190] sm:$0xff]
      %v4132 = vld [vmem:[%s4109 + $0x1a0] sm:$0xff]
      %v4133 = vld [vmem:[%s4109 + $0x1b0] sm:$0xff]
      %v4134 = vld [vmem:[%s4109 + $0x1e0] sm:$0xff]
      %v4135 = vld [vmem:[%s4109 + $0x1f0] sm:$0xff]
      %v4136 = vld [vmem:[%s4109 + $0x200] sm:$0xff]
      %v4137 = vld [vmem:[%s4109 + $0x210] sm:$0xff]
      %v4138 = vld [vmem:[%s4109 + $0x220] sm:$0xff]
      %v4139 = vld [vmem:[%s4109 + $0x230] sm:$0xff]
      %v4140 = vld [vmem:[%s4109 + $0x240] sm:$0xff]
      %v4141 = vld [vmem:[%s4109 + $0x250] sm:$0xff]
      %4174 = vrot.lane.b32.xlu0 %v4110, 84
      %v4175 = vpop.permute.xlu0 %4174
      %4176 = vrot.lane.b32.xlu0 %v4111, 84
      %v4177 = vpop.permute.xlu0 %4176
      %4178 = vrot.lane.b32.xlu0 %v4112, 84
      %v4179 = vpop.permute.xlu0 %4178
      %4180 = vrot.lane.b32.xlu0 %v4113, 84
      %v4181 = vpop.permute.xlu0 %4180
      %4182 = vrot.lane.b32.xlu0 %v4114, 84
      %v4183 = vpop.permute.xlu0 %4182
      %4184 = vrot.lane.b32.xlu0 %v4115, 84
      %v4185 = vpop.permute.xlu0 %4184
      %4186 = vrot.lane.b32.xlu0 %v4116, 84
      %v4187 = vpop.permute.xlu0 %4186
      %4188 = vrot.lane.b32.xlu0 %v4117, 84
      %v4189 = vpop.permute.xlu0 %4188
      %4190 = vrot.lane.b32.xlu0 %v4118, 84
      %v4191 = vpop.permute.xlu0 %4190
      %4192 = vrot.lane.b32.xlu0 %v4119, 84
      %v4193 = vpop.permute.xlu0 %4192
      %4194 = vrot.lane.b32.xlu0 %v4120, 84
      %v4195 = vpop.permute.xlu0 %4194
      %4196 = vrot.lane.b32.xlu0 %v4121, 84
      %v4197 = vpop.permute.xlu0 %4196
      %4198 = vrot.lane.b32.xlu0 %v4122, 84
      %v4199 = vpop.permute.xlu0 %4198
      %4200 = vrot.lane.b32.xlu0 %v4123, 84
      %v4201 = vpop.permute.xlu0 %4200
      %4202 = vrot.lane.b32.xlu0 %v4124, 84
      %v4203 = vpop.permute.xlu0 %4202
      %4204 = vrot.lane.b32.xlu0 %v4125, 84
      %v4205 = vpop.permute.xlu0 %4204
      %4206 = vrot.lane.b32.xlu0 %v4126, 84
      %v4207 = vpop.permute.xlu0 %4206
      %4208 = vrot.lane.b32.xlu0 %v4127, 84
      %v4209 = vpop.permute.xlu0 %4208
      %4210 = vrot.lane.b32.xlu0 %v4128, 84
      %v4211 = vpop.permute.xlu0 %4210
      %4212 = vrot.lane.b32.xlu0 %v4129, 84
      %v4213 = vpop.permute.xlu0 %4212
      %4214 = vrot.lane.b32.xlu0 %v4130, 84
      %v4215 = vpop.permute.xlu0 %4214
      %4216 = vrot.lane.b32.xlu0 %v4131, 84
      %v4217 = vpop.permute.xlu0 %4216
      %4218 = vrot.lane.b32.xlu0 %v4132, 84
      %v4219 = vpop.permute.xlu0 %4218
      %4220 = vrot.lane.b32.xlu0 %v4133, 84
      %v4221 = vpop.permute.xlu0 %4220
      %4222 = vrot.lane.b32.xlu0 %v4134, 84
      %v4223 = vpop.permute.xlu0 %4222
      %4224 = vrot.lane.b32.xlu0 %v4135, 84
      %v4225 = vpop.permute.xlu0 %4224
      %4226 = vrot.lane.b32.xlu0 %v4136, 84
      %v4227 = vpop.permute.xlu0 %4226
      %4228 = vrot.lane.b32.xlu0 %v4137, 84
      %v4229 = vpop.permute.xlu0 %4228
      %4230 = vrot.lane.b32.xlu0 %v4138, 84
      %v4231 = vpop.permute.xlu0 %4230
      %4232 = vrot.lane.b32.xlu0 %v4139, 84
      %v4233 = vpop.permute.xlu0 %4232
      %4234 = vrot.lane.b32.xlu0 %v4140, 84
      %v4235 = vpop.permute.xlu0 %4234
      %4236 = vrot.lane.b32.xlu0 %v4141, 84
      %v4237 = vpop.permute.xlu0 %4236
      %vm4270 = vcmask 720544
      %4271 = vst.msk [vmem:[#allocation2] sm:$0xff] %vm4270, %v4175
      %4272 = vst.msk [vmem:[#allocation2 + $0x8] sm:$0xff] %vm4270, %v4177
      %4273 = vst.msk [vmem:[#allocation2 + $0x10] sm:$0xff] %vm4270, %v4179
      %4274 = vst.msk [vmem:[#allocation2 + $0x18] sm:$0xff] %vm4270, %v4181
      %4275 = vst.msk [vmem:[#allocation2 + $0x20] sm:$0xff] %vm4270, %v4183
      %4276 = vst.msk [vmem:[#allocation2 + $0x28] sm:$0xff] %vm4270, %v4185
      %4277 = vst.msk [vmem:[#allocation2 + $0x30] sm:$0xff] %vm4270, %v4187
      %4278 = vst.msk [vmem:[#allocation2 + $0x38] sm:$0xff] %vm4270, %v4189
      %4279 = vst.msk [vmem:[#allocation2 + $0x40] sm:$0xff] %vm4270, %v4191
      %4280 = vst.msk [vmem:[#allocation2 + $0x48] sm:$0xff] %vm4270, %v4193
      %4281 = vst.msk [vmem:[#allocation2 + $0x50] sm:$0xff] %vm4270, %v4195
      %4282 = vst.msk [vmem:[#allocation2 + $0x58] sm:$0xff] %vm4270, %v4197
      %4283 = vst.msk [vmem:[#allocation2 + $0x60] sm:$0xff] %vm4270, %v4199
      %4284 = vst.msk [vmem:[#allocation2 + $0x68] sm:$0xff] %vm4270, %v4201
      %4285 = vst.msk [vmem:[#allocation2 + $0x70] sm:$0xff] %vm4270, %v4203
      %4286 = vst.msk [vmem:[#allocation2 + $0x78] sm:$0xff] %vm4270, %v4205
      %4287 = vst.msk [vmem:[#allocation2 + $0x80] sm:$0xff] %vm4270, %v4207
      %4288 = vst.msk [vmem:[#allocation2 + $0x88] sm:$0xff] %vm4270, %v4209
      %4289 = vst.msk [vmem:[#allocation2 + $0x90] sm:$0xff] %vm4270, %v4211
      %4290 = vst.msk [vmem:[#allocation2 + $0x98] sm:$0xff] %vm4270, %v4213
      %4291 = vst.msk [vmem:[#allocation2 + $0xa0] sm:$0xff] %vm4270, %v4215
      %4292 = vst.msk [vmem:[#allocation2 + $0xa8] sm:$0xff] %vm4270, %v4217
      %4293 = vst.msk [vmem:[#allocation2 + $0xb0] sm:$0xff] %vm4270, %v4219
      %4294 = vst.msk [vmem:[#allocation2 + $0xb8] sm:$0xff] %vm4270, %v4221
      %4295 = vst.msk [vmem:[#allocation2 + $0xc0] sm:$0xff] %vm4270, %v4223
      %4296 = vst.msk [vmem:[#allocation2 + $0xc8] sm:$0xff] %vm4270, %v4225
      %4297 = vst.msk [vmem:[#allocation2 + $0xd0] sm:$0xff] %vm4270, %v4227
      %4298 = vst.msk [vmem:[#allocation2 + $0xd8] sm:$0xff] %vm4270, %v4229
      %4299 = vst.msk [vmem:[#allocation2 + $0xe0] sm:$0xff] %vm4270, %v4231
      %4300 = vst.msk [vmem:[#allocation2 + $0xe8] sm:$0xff] %vm4270, %v4233
      %4301 = vst.msk [vmem:[#allocation2 + $0xf0] sm:$0xff] %vm4270, %v4235
      %4302 = vst.msk [vmem:[#allocation2 + $0xf8] sm:$0xff] %vm4270, %v4237
      %v4303 = vld [vmem:[%s4109 + $0x1] sm:$0xff]
      %v4304 = vld [vmem:[%s4109 + $0x11] sm:$0xff]
      %v4305 = vld [vmem:[%s4109 + $0x21] sm:$0xff]
      %v4306 = vld [vmem:[%s4109 + $0x31] sm:$0xff]
      %v4307 = vld [vmem:[%s4109 + $0x41] sm:$0xff]
      %v4308 = vld [vmem:[%s4109 + $0x51] sm:$0xff]
      %v4309 = vld [vmem:[%s4109 + $0x61] sm:$0xff]
      %v4310 = vld [vmem:[%s4109 + $0x71] sm:$0xff]
      %v4311 = vld [vmem:[%s4109 + $0xa1] sm:$0xff]
      %v4312 = vld [vmem:[%s4109 + $0xb1] sm:$0xff]
      %v4313 = vld [vmem:[%s4109 + $0xc1] sm:$0xff]
      %v4314 = vld [vmem:[%s4109 + $0xd1] sm:$0xff]
      %v4315 = vld [vmem:[%s4109 + $0xe1] sm:$0xff]
      %v4316 = vld [vmem:[%s4109 + $0xf1] sm:$0xff]
      %v4317 = vld [vmem:[%s4109 + $0x101] sm:$0xff]
      %v4318 = vld [vmem:[%s4109 + $0x111] sm:$0xff]
      %v4319 = vld [vmem:[%s4109 + $0x141] sm:$0xff]
      %v4320 = vld [vmem:[%s4109 + $0x151] sm:$0xff]
      %v4321 = vld [vmem:[%s4109 + $0x161] sm:$0xff]
      %v4322 = vld [vmem:[%s4109 + $0x171] sm:$0xff]
      %v4323 = vld [vmem:[%s4109 + $0x181] sm:$0xff]
      %v4324 = vld [vmem:[%s4109 + $0x191] sm:$0xff]
      %v4325 = vld [vmem:[%s4109 + $0x1a1] sm:$0xff]
      %v4326 = vld [vmem:[%s4109 + $0x1b1] sm:$0xff]
      %v4327 = vld [vmem:[%s4109 + $0x1e1] sm:$0xff]
      %v4328 = vld [vmem:[%s4109 + $0x1f1] sm:$0xff]
      %v4329 = vld [vmem:[%s4109 + $0x201] sm:$0xff]
      %v4330 = vld [vmem:[%s4109 + $0x211] sm:$0xff]
      %v4331 = vld [vmem:[%s4109 + $0x221] sm:$0xff]
      %v4332 = vld [vmem:[%s4109 + $0x231] sm:$0xff]
      %v4333 = vld [vmem:[%s4109 + $0x241] sm:$0xff]
      %v4334 = vld [vmem:[%s4109 + $0x251] sm:$0xff]
      %4367 = vrot.lane.b32.xlu0 %v4303, 88
      %v4368 = vpop.permute.xlu0 %4367
      %4369 = vrot.lane.b32.xlu0 %v4304, 88
      %v4370 = vpop.permute.xlu0 %4369
      %4371 = vrot.lane.b32.xlu0 %v4305, 88
      %v4372 = vpop.permute.xlu0 %4371
      %4373 = vrot.lane.b32.xlu0 %v4306, 88
      %v4374 = vpop.permute.xlu0 %4373
      %4375 = vrot.lane.b32.xlu0 %v4307, 88
      %v4376 = vpop.permute.xlu0 %4375
      %4377 = vrot.lane.b32.xlu0 %v4308, 88
      %v4378 = vpop.permute.xlu0 %4377
      %4379 = vrot.lane.b32.xlu0 %v4309, 88
      %v4380 = vpop.permute.xlu0 %4379
      %4381 = vrot.lane.b32.xlu0 %v4310, 88
      %v4382 = vpop.permute.xlu0 %4381
      %4383 = vrot.lane.b32.xlu0 %v4311, 88
      %v4384 = vpop.permute.xlu0 %4383
      %4385 = vrot.lane.b32.xlu0 %v4312, 88
      %v4386 = vpop.permute.xlu0 %4385
      %4387 = vrot.lane.b32.xlu0 %v4313, 88
      %v4388 = vpop.permute.xlu0 %4387
      %4389 = vrot.lane.b32.xlu0 %v4314, 88
      %v4390 = vpop.permute.xlu0 %4389
      %4391 = vrot.lane.b32.xlu0 %v4315, 88
      %v4392 = vpop.permute.xlu0 %4391
      %4393 = vrot.lane.b32.xlu0 %v4316, 88
      %v4394 = vpop.permute.xlu0 %4393
      %4395 = vrot.lane.b32.xlu0 %v4317, 88
      %v4396 = vpop.permute.xlu0 %4395
      %4397 = vrot.lane.b32.xlu0 %v4318, 88
      %v4398 = vpop.permute.xlu0 %4397
      %4399 = vrot.lane.b32.xlu0 %v4319, 88
      %v4400 = vpop.permute.xlu0 %4399
      %4401 = vrot.lane.b32.xlu0 %v4320, 88
      %v4402 = vpop.permute.xlu0 %4401
      %4403 = vrot.lane.b32.xlu0 %v4321, 88
      %v4404 = vpop.permute.xlu0 %4403
      %4405 = vrot.lane.b32.xlu0 %v4322, 88
      %v4406 = vpop.permute.xlu0 %4405
      %4407 = vrot.lane.b32.xlu0 %v4323, 88
      %v4408 = vpop.permute.xlu0 %4407
      %4409 = vrot.lane.b32.xlu0 %v4324, 88
      %v4410 = vpop.permute.xlu0 %4409
      %4411 = vrot.lane.b32.xlu0 %v4325, 88
      %v4412 = vpop.permute.xlu0 %4411
      %4413 = vrot.lane.b32.xlu0 %v4326, 88
      %v4414 = vpop.permute.xlu0 %4413
      %4415 = vrot.lane.b32.xlu0 %v4327, 88
      %v4416 = vpop.permute.xlu0 %4415
      %4417 = vrot.lane.b32.xlu0 %v4328, 88
      %v4418 = vpop.permute.xlu0 %4417
      %4419 = vrot.lane.b32.xlu0 %v4329, 88
      %v4420 = vpop.permute.xlu0 %4419
      %4421 = vrot.lane.b32.xlu0 %v4330, 88
      %v4422 = vpop.permute.xlu0 %4421
      %4423 = vrot.lane.b32.xlu0 %v4331, 88
      %v4424 = vpop.permute.xlu0 %4423
      %4425 = vrot.lane.b32.xlu0 %v4332, 88
      %v4426 = vpop.permute.xlu0 %4425
      %4427 = vrot.lane.b32.xlu0 %v4333, 88
      %v4428 = vpop.permute.xlu0 %4427
      %4429 = vrot.lane.b32.xlu0 %v4334, 88
      %v4430 = vpop.permute.xlu0 %4429
      %vm4463 = vcmask 753344
      %4464 = vst.msk [vmem:[#allocation2] sm:$0xff] %vm4463, %v4368
      %4465 = vst.msk [vmem:[#allocation2 + $0x8] sm:$0xff] %vm4463, %v4370
      %4466 = vst.msk [vmem:[#allocation2 + $0x10] sm:$0xff] %vm4463, %v4372
      %4467 = vst.msk [vmem:[#allocation2 + $0x18] sm:$0xff] %vm4463, %v4374
      %4468 = vst.msk [vmem:[#allocation2 + $0x20] sm:$0xff] %vm4463, %v4376
      %4469 = vst.msk [vmem:[#allocation2 + $0x28] sm:$0xff] %vm4463, %v4378
      %4470 = vst.msk [vmem:[#allocation2 + $0x30] sm:$0xff] %vm4463, %v4380
      %4471 = vst.msk [vmem:[#allocation2 + $0x38] sm:$0xff] %vm4463, %v4382
      %4472 = vst.msk [vmem:[#allocation2 + $0x40] sm:$0xff] %vm4463, %v4384
      %4473 = vst.msk [vmem:[#allocation2 + $0x48] sm:$0xff] %vm4463, %v4386
      %4474 = vst.msk [vmem:[#allocation2 + $0x50] sm:$0xff] %vm4463, %v4388
      %4475 = vst.msk [vmem:[#allocation2 + $0x58] sm:$0xff] %vm4463, %v4390
      %4476 = vst.msk [vmem:[#allocation2 + $0x60] sm:$0xff] %vm4463, %v4392
      %4477 = vst.msk [vmem:[#allocation2 + $0x68] sm:$0xff] %vm4463, %v4394
      %4478 = vst.msk [vmem:[#allocation2 + $0x70] sm:$0xff] %vm4463, %v4396
      %4479 = vst.msk [vmem:[#allocation2 + $0x78] sm:$0xff] %vm4463, %v4398
      %4480 = vst.msk [vmem:[#allocation2 + $0x80] sm:$0xff] %vm4463, %v4400
      %4481 = vst.msk [vmem:[#allocation2 + $0x88] sm:$0xff] %vm4463, %v4402
      %4482 = vst.msk [vmem:[#allocation2 + $0x90] sm:$0xff] %vm4463, %v4404
      %4483 = vst.msk [vmem:[#allocation2 + $0x98] sm:$0xff] %vm4463, %v4406
      %4484 = vst.msk [vmem:[#allocation2 + $0xa0] sm:$0xff] %vm4463, %v4408
      %4485 = vst.msk [vmem:[#allocation2 + $0xa8] sm:$0xff] %vm4463, %v4410
      %4486 = vst.msk [vmem:[#allocation2 + $0xb0] sm:$0xff] %vm4463, %v4412
      %4487 = vst.msk [vmem:[#allocation2 + $0xb8] sm:$0xff] %vm4463, %v4414
      %4488 = vst.msk [vmem:[#allocation2 + $0xc0] sm:$0xff] %vm4463, %v4416
      %4489 = vst.msk [vmem:[#allocation2 + $0xc8] sm:$0xff] %vm4463, %v4418
      %4490 = vst.msk [vmem:[#allocation2 + $0xd0] sm:$0xff] %vm4463, %v4420
      %4491 = vst.msk [vmem:[#allocation2 + $0xd8] sm:$0xff] %vm4463, %v4422
      %4492 = vst.msk [vmem:[#allocation2 + $0xe0] sm:$0xff] %vm4463, %v4424
      %4493 = vst.msk [vmem:[#allocation2 + $0xe8] sm:$0xff] %vm4463, %v4426
      %4494 = vst.msk [vmem:[#allocation2 + $0xf0] sm:$0xff] %vm4463, %v4428
      %4495 = vst.msk [vmem:[#allocation2 + $0xf8] sm:$0xff] %vm4463, %v4430
      %v4496 = vld [vmem:[%s4109 + $0x2] sm:$0xff]
      %v4497 = vld [vmem:[%s4109 + $0x12] sm:$0xff]
      %v4498 = vld [vmem:[%s4109 + $0x22] sm:$0xff]
      %v4499 = vld [vmem:[%s4109 + $0x32] sm:$0xff]
      %v4500 = vld [vmem:[%s4109 + $0x42] sm:$0xff]
      %v4501 = vld [vmem:[%s4109 + $0x52] sm:$0xff]
      %v4502 = vld [vmem:[%s4109 + $0x62] sm:$0xff]
      %v4503 = vld [vmem:[%s4109 + $0x72] sm:$0xff]
      %v4504 = vld [vmem:[%s4109 + $0xa2] sm:$0xff]
      %v4505 = vld [vmem:[%s4109 + $0xb2] sm:$0xff]
      %v4506 = vld [vmem:[%s4109 + $0xc2] sm:$0xff]
      %v4507 = vld [vmem:[%s4109 + $0xd2] sm:$0xff]
      %v4508 = vld [vmem:[%s4109 + $0xe2] sm:$0xff]
      %v4509 = vld [vmem:[%s4109 + $0xf2] sm:$0xff]
      %v4510 = vld [vmem:[%s4109 + $0x102] sm:$0xff]
      %v4511 = vld [vmem:[%s4109 + $0x112] sm:$0xff]
      %v4512 = vld [vmem:[%s4109 + $0x142] sm:$0xff]
      %v4513 = vld [vmem:[%s4109 + $0x152] sm:$0xff]
      %v4514 = vld [vmem:[%s4109 + $0x162] sm:$0xff]
      %v4515 = vld [vmem:[%s4109 + $0x172] sm:$0xff]
      %v4516 = vld [vmem:[%s4109 + $0x182] sm:$0xff]
      %v4517 = vld [vmem:[%s4109 + $0x192] sm:$0xff]
      %v4518 = vld [vmem:[%s4109 + $0x1a2] sm:$0xff]
      %v4519 = vld [vmem:[%s4109 + $0x1b2] sm:$0xff]
      %v4520 = vld [vmem:[%s4109 + $0x1e2] sm:$0xff]
      %v4521 = vld [vmem:[%s4109 + $0x1f2] sm:$0xff]
      %v4522 = vld [vmem:[%s4109 + $0x202] sm:$0xff]
      %v4523 = vld [vmem:[%s4109 + $0x212] sm:$0xff]
      %v4524 = vld [vmem:[%s4109 + $0x222] sm:$0xff]
      %v4525 = vld [vmem:[%s4109 + $0x232] sm:$0xff]
      %v4526 = vld [vmem:[%s4109 + $0x242] sm:$0xff]
      %v4527 = vld [vmem:[%s4109 + $0x252] sm:$0xff]
      %4560 = vrot.lane.b32.xlu0 %v4496, 92
      %v4561 = vpop.permute.xlu0 %4560
      %4562 = vrot.lane.b32.xlu0 %v4497, 92
      %v4563 = vpop.permute.xlu0 %4562
      %4564 = vrot.lane.b32.xlu0 %v4498, 92
      %v4565 = vpop.permute.xlu0 %4564
      %4566 = vrot.lane.b32.xlu0 %v4499, 92
      %v4567 = vpop.permute.xlu0 %4566
      %4568 = vrot.lane.b32.xlu0 %v4500, 92
      %v4569 = vpop.permute.xlu0 %4568
      %4570 = vrot.lane.b32.xlu0 %v4501, 92
      %v4571 = vpop.permute.xlu0 %4570
      %4572 = vrot.lane.b32.xlu0 %v4502, 92
      %v4573 = vpop.permute.xlu0 %4572
      %4574 = vrot.lane.b32.xlu0 %v4503, 92
      %v4575 = vpop.permute.xlu0 %4574
      %4576 = vrot.lane.b32.xlu0 %v4504, 92
      %v4577 = vpop.permute.xlu0 %4576
      %4578 = vrot.lane.b32.xlu0 %v4505, 92
      %v4579 = vpop.permute.xlu0 %4578
      %4580 = vrot.lane.b32.xlu0 %v4506, 92
      %v4581 = vpop.permute.xlu0 %4580
      %4582 = vrot.lane.b32.xlu0 %v4507, 92
      %v4583 = vpop.permute.xlu0 %4582
      %4584 = vrot.lane.b32.xlu0 %v4508, 92
      %v4585 = vpop.permute.xlu0 %4584
      %4586 = vrot.lane.b32.xlu0 %v4509, 92
      %v4587 = vpop.permute.xlu0 %4586
      %4588 = vrot.lane.b32.xlu0 %v4510, 92
      %v4589 = vpop.permute.xlu0 %4588
      %4590 = vrot.lane.b32.xlu0 %v4511, 92
      %v4591 = vpop.permute.xlu0 %4590
      %4592 = vrot.lane.b32.xlu0 %v4512, 92
      %v4593 = vpop.permute.xlu0 %4592
      %4594 = vrot.lane.b32.xlu0 %v4513, 92
      %v4595 = vpop.permute.xlu0 %4594
      %4596 = vrot.lane.b32.xlu0 %v4514, 92
      %v4597 = vpop.permute.xlu0 %4596
      %4598 = vrot.lane.b32.xlu0 %v4515, 92
      %v4599 = vpop.permute.xlu0 %4598
      %4600 = vrot.lane.b32.xlu0 %v4516, 92
      %v4601 = vpop.permute.xlu0 %4600
      %4602 = vrot.lane.b32.xlu0 %v4517, 92
      %v4603 = vpop.permute.xlu0 %4602
      %4604 = vrot.lane.b32.xlu0 %v4518, 92
      %v4605 = vpop.permute.xlu0 %4604
      %4606 = vrot.lane.b32.xlu0 %v4519, 92
      %v4607 = vpop.permute.xlu0 %4606
      %4608 = vrot.lane.b32.xlu0 %v4520, 92
      %v4609 = vpop.permute.xlu0 %4608
      %4610 = vrot.lane.b32.xlu0 %v4521, 92
      %v4611 = vpop.permute.xlu0 %4610
      %4612 = vrot.lane.b32.xlu0 %v4522, 92
      %v4613 = vpop.permute.xlu0 %4612
      %4614 = vrot.lane.b32.xlu0 %v4523, 92
      %v4615 = vpop.permute.xlu0 %4614
      %4616 = vrot.lane.b32.xlu0 %v4524, 92
      %v4617 = vpop.permute.xlu0 %4616
      %4618 = vrot.lane.b32.xlu0 %v4525, 92
      %v4619 = vpop.permute.xlu0 %4618
      %4620 = vrot.lane.b32.xlu0 %v4526, 92
      %v4621 = vpop.permute.xlu0 %4620
      %4622 = vrot.lane.b32.xlu0 %v4527, 92
      %v4623 = vpop.permute.xlu0 %4622
      %vm4656 = vcmask 786144
      %4657 = vst.msk [vmem:[#allocation2] sm:$0xff] %vm4656, %v4561
      %4658 = vst.msk [vmem:[#allocation2 + $0x8] sm:$0xff] %vm4656, %v4563
      %4659 = vst.msk [vmem:[#allocation2 + $0x10] sm:$0xff] %vm4656, %v4565
      %4660 = vst.msk [vmem:[#allocation2 + $0x18] sm:$0xff] %vm4656, %v4567
      %4661 = vst.msk [vmem:[#allocation2 + $0x20] sm:$0xff] %vm4656, %v4569
      %4662 = vst.msk [vmem:[#allocation2 + $0x28] sm:$0xff] %vm4656, %v4571
      %4663 = vst.msk [vmem:[#allocation2 + $0x30] sm:$0xff] %vm4656, %v4573
      %4664 = vst.msk [vmem:[#allocation2 + $0x38] sm:$0xff] %vm4656, %v4575
      %4665 = vst.msk [vmem:[#allocation2 + $0x40] sm:$0xff] %vm4656, %v4577
      %4666 = vst.msk [vmem:[#allocation2 + $0x48] sm:$0xff] %vm4656, %v4579
      %4667 = vst.msk [vmem:[#allocation2 + $0x50] sm:$0xff] %vm4656, %v4581
      %4668 = vst.msk [vmem:[#allocation2 + $0x58] sm:$0xff] %vm4656, %v4583
      %4669 = vst.msk [vmem:[#allocation2 + $0x60] sm:$0xff] %vm4656, %v4585
      %4670 = vst.msk [vmem:[#allocation2 + $0x68] sm:$0xff] %vm4656, %v4587
      %4671 = vst.msk [vmem:[#allocation2 + $0x70] sm:$0xff] %vm4656, %v4589
      %4672 = vst.msk [vmem:[#allocation2 + $0x78] sm:$0xff] %vm4656, %v4591
      %4673 = vst.msk [vmem:[#allocation2 + $0x80] sm:$0xff] %vm4656, %v4593
      %4674 = vst.msk [vmem:[#allocation2 + $0x88] sm:$0xff] %vm4656, %v4595
      %4675 = vst.msk [vmem:[#allocation2 + $0x90] sm:$0xff] %vm4656, %v4597
      %4676 = vst.msk [vmem:[#allocation2 + $0x98] sm:$0xff] %vm4656, %v4599
      %4677 = vst.msk [vmem:[#allocation2 + $0xa0] sm:$0xff] %vm4656, %v4601
      %4678 = vst.msk [vmem:[#allocation2 + $0xa8] sm:$0xff] %vm4656, %v4603
      %4679 = vst.msk [vmem:[#allocation2 + $0xb0] sm:$0xff] %vm4656, %v4605
      %4680 = vst.msk [vmem:[#allocation2 + $0xb8] sm:$0xff] %vm4656, %v4607
      %4681 = vst.msk [vmem:[#allocation2 + $0xc0] sm:$0xff] %vm4656, %v4609
      %4682 = vst.msk [vmem:[#allocation2 + $0xc8] sm:$0xff] %vm4656, %v4611
      %4683 = vst.msk [vmem:[#allocation2 + $0xd0] sm:$0xff] %vm4656, %v4613
      %4684 = vst.msk [vmem:[#allocation2 + $0xd8] sm:$0xff] %vm4656, %v4615
      %4685 = vst.msk [vmem:[#allocation2 + $0xe0] sm:$0xff] %vm4656, %v4617
      %4686 = vst.msk [vmem:[#allocation2 + $0xe8] sm:$0xff] %vm4656, %v4619
      %4687 = vst.msk [vmem:[#allocation2 + $0xf0] sm:$0xff] %vm4656, %v4621
      %4688 = vst.msk [vmem:[#allocation2 + $0xf8] sm:$0xff] %vm4656, %v4623
      %s4689 = scalar_lea.vmem %s138, 352
      %v4690 = vld [vmem:[%s4689] sm:$0xff]
      %v4691 = vld [vmem:[%s4689 + $0x10] sm:$0xff]
      %v4692 = vld [vmem:[%s4689 + $0x20] sm:$0xff]
      %v4693 = vld [vmem:[%s4689 + $0x30] sm:$0xff]
      %v4694 = vld [vmem:[%s4689 + $0x40] sm:$0xff]
      %v4695 = vld [vmem:[%s4689 + $0x50] sm:$0xff]
      %v4696 = vld [vmem:[%s4689 + $0x60] sm:$0xff]
      %v4697 = vld [vmem:[%s4689 + $0x70] sm:$0xff]
      %v4698 = vld [vmem:[%s4689 + $0xa0] sm:$0xff]
      %v4699 = vld [vmem:[%s4689 + $0xb0] sm:$0xff]
      %v4700 = vld [vmem:[%s4689 + $0xc0] sm:$0xff]
      %v4701 = vld [vmem:[%s4689 + $0xd0] sm:$0xff]
      %v4702 = vld [vmem:[%s4689 + $0xe0] sm:$0xff]
      %v4703 = vld [vmem:[%s4689 + $0xf0] sm:$0xff]
      %v4704 = vld [vmem:[%s4689 + $0x100] sm:$0xff]
      %v4705 = vld [vmem:[%s4689 + $0x110] sm:$0xff]
      %v4706 = vld [vmem:[%s4689 + $0x140] sm:$0xff]
      %v4707 = vld [vmem:[%s4689 + $0x150] sm:$0xff]
      %v4708 = vld [vmem:[%s4689 + $0x160] sm:$0xff]
      %v4709 = vld [vmem:[%s4689 + $0x170] sm:$0xff]
      %v4710 = vld [vmem:[%s4689 + $0x180] sm:$0xff]
      %v4711 = vld [vmem:[%s4689 + $0x190] sm:$0xff]
      %v4712 = vld [vmem:[%s4689 + $0x1a0] sm:$0xff]
      %v4713 = vld [vmem:[%s4689 + $0x1b0] sm:$0xff]
      %v4714 = vld [vmem:[%s4689 + $0x1e0] sm:$0xff]
      %v4715 = vld [vmem:[%s4689 + $0x1f0] sm:$0xff]
      %v4716 = vld [vmem:[%s4689 + $0x200] sm:$0xff]
      %v4717 = vld [vmem:[%s4689 + $0x210] sm:$0xff]
      %v4718 = vld [vmem:[%s4689 + $0x220] sm:$0xff]
      %v4719 = vld [vmem:[%s4689 + $0x230] sm:$0xff]
      %v4720 = vld [vmem:[%s4689 + $0x240] sm:$0xff]
      %v4721 = vld [vmem:[%s4689 + $0x250] sm:$0xff]
      %4754 = vrot.lane.b32.xlu0 %v4690, 96
      %v4755 = vpop.permute.xlu0 %4754
      %4756 = vrot.lane.b32.xlu0 %v4691, 96
      %v4757 = vpop.permute.xlu0 %4756
      %4758 = vrot.lane.b32.xlu0 %v4692, 96
      %v4759 = vpop.permute.xlu0 %4758
      %4760 = vrot.lane.b32.xlu0 %v4693, 96
      %v4761 = vpop.permute.xlu0 %4760
      %4762 = vrot.lane.b32.xlu0 %v4694, 96
      %v4763 = vpop.permute.xlu0 %4762
      %4764 = vrot.lane.b32.xlu0 %v4695, 96
      %v4765 = vpop.permute.xlu0 %4764
      %4766 = vrot.lane.b32.xlu0 %v4696, 96
      %v4767 = vpop.permute.xlu0 %4766
      %4768 = vrot.lane.b32.xlu0 %v4697, 96
      %v4769 = vpop.permute.xlu0 %4768
      %4770 = vrot.lane.b32.xlu0 %v4698, 96
      %v4771 = vpop.permute.xlu0 %4770
      %4772 = vrot.lane.b32.xlu0 %v4699, 96
      %v4773 = vpop.permute.xlu0 %4772
      %4774 = vrot.lane.b32.xlu0 %v4700, 96
      %v4775 = vpop.permute.xlu0 %4774
      %4776 = vrot.lane.b32.xlu0 %v4701, 96
      %v4777 = vpop.permute.xlu0 %4776
      %4778 = vrot.lane.b32.xlu0 %v4702, 96
      %v4779 = vpop.permute.xlu0 %4778
      %4780 = vrot.lane.b32.xlu0 %v4703, 96
      %v4781 = vpop.permute.xlu0 %4780
      %4782 = vrot.lane.b32.xlu0 %v4704, 96
      %v4783 = vpop.permute.xlu0 %4782
      %4784 = vrot.lane.b32.xlu0 %v4705, 96
      %v4785 = vpop.permute.xlu0 %4784
      %4786 = vrot.lane.b32.xlu0 %v4706, 96
      %v4787 = vpop.permute.xlu0 %4786
      %4788 = vrot.lane.b32.xlu0 %v4707, 96
      %v4789 = vpop.permute.xlu0 %4788
      %4790 = vrot.lane.b32.xlu0 %v4708, 96
      %v4791 = vpop.permute.xlu0 %4790
      %4792 = vrot.lane.b32.xlu0 %v4709, 96
      %v4793 = vpop.permute.xlu0 %4792
      %4794 = vrot.lane.b32.xlu0 %v4710, 96
      %v4795 = vpop.permute.xlu0 %4794
      %4796 = vrot.lane.b32.xlu0 %v4711, 96
      %v4797 = vpop.permute.xlu0 %4796
      %4798 = vrot.lane.b32.xlu0 %v4712, 96
      %v4799 = vpop.permute.xlu0 %4798
      %4800 = vrot.lane.b32.xlu0 %v4713, 96
      %v4801 = vpop.permute.xlu0 %4800
      %4802 = vrot.lane.b32.xlu0 %v4714, 96
      %v4803 = vpop.permute.xlu0 %4802
      %4804 = vrot.lane.b32.xlu0 %v4715, 96
      %v4805 = vpop.permute.xlu0 %4804
      %4806 = vrot.lane.b32.xlu0 %v4716, 96
      %v4807 = vpop.permute.xlu0 %4806
      %4808 = vrot.lane.b32.xlu0 %v4717, 96
      %v4809 = vpop.permute.xlu0 %4808
      %4810 = vrot.lane.b32.xlu0 %v4718, 96
      %v4811 = vpop.permute.xlu0 %4810
      %4812 = vrot.lane.b32.xlu0 %v4719, 96
      %v4813 = vpop.permute.xlu0 %4812
      %4814 = vrot.lane.b32.xlu0 %v4720, 96
      %v4815 = vpop.permute.xlu0 %4814
      %4816 = vrot.lane.b32.xlu0 %v4721, 96
      %v4817 = vpop.permute.xlu0 %4816
      %vm4850 = vcmask 818944
      %4851 = vst.msk [vmem:[#allocation2] sm:$0xff] %vm4850, %v4755
      %4852 = vst.msk [vmem:[#allocation2 + $0x8] sm:$0xff] %vm4850, %v4757
      %4853 = vst.msk [vmem:[#allocation2 + $0x10] sm:$0xff] %vm4850, %v4759
      %4854 = vst.msk [vmem:[#allocation2 + $0x18] sm:$0xff] %vm4850, %v4761
      %4855 = vst.msk [vmem:[#allocation2 + $0x20] sm:$0xff] %vm4850, %v4763
      %4856 = vst.msk [vmem:[#allocation2 + $0x28] sm:$0xff] %vm4850, %v4765
      %4857 = vst.msk [vmem:[#allocation2 + $0x30] sm:$0xff] %vm4850, %v4767
      %4858 = vst.msk [vmem:[#allocation2 + $0x38] sm:$0xff] %vm4850, %v4769
      %4859 = vst.msk [vmem:[#allocation2 + $0x40] sm:$0xff] %vm4850, %v4771
      %4860 = vst.msk [vmem:[#allocation2 + $0x48] sm:$0xff] %vm4850, %v4773
      %4861 = vst.msk [vmem:[#allocation2 + $0x50] sm:$0xff] %vm4850, %v4775
      %4862 = vst.msk [vmem:[#allocation2 + $0x58] sm:$0xff] %vm4850, %v4777
      %4863 = vst.msk [vmem:[#allocation2 + $0x60] sm:$0xff] %vm4850, %v4779
      %4864 = vst.msk [vmem:[#allocation2 + $0x68] sm:$0xff] %vm4850, %v4781
      %4865 = vst.msk [vmem:[#allocation2 + $0x70] sm:$0xff] %vm4850, %v4783
      %4866 = vst.msk [vmem:[#allocation2 + $0x78] sm:$0xff] %vm4850, %v4785
      %4867 = vst.msk [vmem:[#allocation2 + $0x80] sm:$0xff] %vm4850, %v4787
      %4868 = vst.msk [vmem:[#allocation2 + $0x88] sm:$0xff] %vm4850, %v4789
      %4869 = vst.msk [vmem:[#allocation2 + $0x90] sm:$0xff] %vm4850, %v4791
      %4870 = vst.msk [vmem:[#allocation2 + $0x98] sm:$0xff] %vm4850, %v4793
      %4871 = vst.msk [vmem:[#allocation2 + $0xa0] sm:$0xff] %vm4850, %v4795
      %4872 = vst.msk [vmem:[#allocation2 + $0xa8] sm:$0xff] %vm4850, %v4797
      %4873 = vst.msk [vmem:[#allocation2 + $0xb0] sm:$0xff] %vm4850, %v4799
      %4874 = vst.msk [vmem:[#allocation2 + $0xb8] sm:$0xff] %vm4850, %v4801
      %4875 = vst.msk [vmem:[#allocation2 + $0xc0] sm:$0xff] %vm4850, %v4803
      %4876 = vst.msk [vmem:[#allocation2 + $0xc8] sm:$0xff] %vm4850, %v4805
      %4877 = vst.msk [vmem:[#allocation2 + $0xd0] sm:$0xff] %vm4850, %v4807
      %4878 = vst.msk [vmem:[#allocation2 + $0xd8] sm:$0xff] %vm4850, %v4809
      %4879 = vst.msk [vmem:[#allocation2 + $0xe0] sm:$0xff] %vm4850, %v4811
      %4880 = vst.msk [vmem:[#allocation2 + $0xe8] sm:$0xff] %vm4850, %v4813
      %4881 = vst.msk [vmem:[#allocation2 + $0xf0] sm:$0xff] %vm4850, %v4815
      %4882 = vst.msk [vmem:[#allocation2 + $0xf8] sm:$0xff] %vm4850, %v4817
      %v4883 = vld [vmem:[%s4689 + $0x1] sm:$0xff]
      %v4884 = vld [vmem:[%s4689 + $0x11] sm:$0xff]
      %v4885 = vld [vmem:[%s4689 + $0x21] sm:$0xff]
      %v4886 = vld [vmem:[%s4689 + $0x31] sm:$0xff]
      %v4887 = vld [vmem:[%s4689 + $0x41] sm:$0xff]
      %v4888 = vld [vmem:[%s4689 + $0x51] sm:$0xff]
      %v4889 = vld [vmem:[%s4689 + $0x61] sm:$0xff]
      %v4890 = vld [vmem:[%s4689 + $0x71] sm:$0xff]
      %v4891 = vld [vmem:[%s4689 + $0xa1] sm:$0xff]
      %v4892 = vld [vmem:[%s4689 + $0xb1] sm:$0xff]
      %v4893 = vld [vmem:[%s4689 + $0xc1] sm:$0xff]
      %v4894 = vld [vmem:[%s4689 + $0xd1] sm:$0xff]
      %v4895 = vld [vmem:[%s4689 + $0xe1] sm:$0xff]
      %v4896 = vld [vmem:[%s4689 + $0xf1] sm:$0xff]
      %v4897 = vld [vmem:[%s4689 + $0x101] sm:$0xff]
      %v4898 = vld [vmem:[%s4689 + $0x111] sm:$0xff]
      %v4899 = vld [vmem:[%s4689 + $0x141] sm:$0xff]
      %v4900 = vld [vmem:[%s4689 + $0x151] sm:$0xff]
      %v4901 = vld [vmem:[%s4689 + $0x161] sm:$0xff]
      %v4902 = vld [vmem:[%s4689 + $0x171] sm:$0xff]
      %v4903 = vld [vmem:[%s4689 + $0x181] sm:$0xff]
      %v4904 = vld [vmem:[%s4689 + $0x191] sm:$0xff]
      %v4905 = vld [vmem:[%s4689 + $0x1a1] sm:$0xff]
      %v4906 = vld [vmem:[%s4689 + $0x1b1] sm:$0xff]
      %v4907 = vld [vmem:[%s4689 + $0x1e1] sm:$0xff]
      %v4908 = vld [vmem:[%s4689 + $0x1f1] sm:$0xff]
      %v4909 = vld [vmem:[%s4689 + $0x201] sm:$0xff]
      %v4910 = vld [vmem:[%s4689 + $0x211] sm:$0xff]
      %v4911 = vld [vmem:[%s4689 + $0x221] sm:$0xff]
      %v4912 = vld [vmem:[%s4689 + $0x231] sm:$0xff]
      %v4913 = vld [vmem:[%s4689 + $0x241] sm:$0xff]
      %v4914 = vld [vmem:[%s4689 + $0x251] sm:$0xff]
      %4947 = vrot.lane.b32.xlu0 %v4883, 100
      %v4948 = vpop.permute.xlu0 %4947
      %4949 = vrot.lane.b32.xlu0 %v4884, 100
      %v4950 = vpop.permute.xlu0 %4949
      %4951 = vrot.lane.b32.xlu0 %v4885, 100
      %v4952 = vpop.permute.xlu0 %4951
      %4953 = vrot.lane.b32.xlu0 %v4886, 100
      %v4954 = vpop.permute.xlu0 %4953
      %4955 = vrot.lane.b32.xlu0 %v4887, 100
      %v4956 = vpop.permute.xlu0 %4955
      %4957 = vrot.lane.b32.xlu0 %v4888, 100
      %v4958 = vpop.permute.xlu0 %4957
      %4959 = vrot.lane.b32.xlu0 %v4889, 100
      %v4960 = vpop.permute.xlu0 %4959
      %4961 = vrot.lane.b32.xlu0 %v4890, 100
      %v4962 = vpop.permute.xlu0 %4961
      %4963 = vrot.lane.b32.xlu0 %v4891, 100
      %v4964 = vpop.permute.xlu0 %4963
      %4965 = vrot.lane.b32.xlu0 %v4892, 100
      %v4966 = vpop.permute.xlu0 %4965
      %4967 = vrot.lane.b32.xlu0 %v4893, 100
      %v4968 = vpop.permute.xlu0 %4967
      %4969 = vrot.lane.b32.xlu0 %v4894, 100
      %v4970 = vpop.permute.xlu0 %4969
      %4971 = vrot.lane.b32.xlu0 %v4895, 100
      %v4972 = vpop.permute.xlu0 %4971
      %4973 = vrot.lane.b32.xlu0 %v4896, 100
      %v4974 = vpop.permute.xlu0 %4973
      %4975 = vrot.lane.b32.xlu0 %v4897, 100
      %v4976 = vpop.permute.xlu0 %4975
      %4977 = vrot.lane.b32.xlu0 %v4898, 100
      %v4978 = vpop.permute.xlu0 %4977
      %4979 = vrot.lane.b32.xlu0 %v4899, 100
      %v4980 = vpop.permute.xlu0 %4979
      %4981 = vrot.lane.b32.xlu0 %v4900, 100
      %v4982 = vpop.permute.xlu0 %4981
      %4983 = vrot.lane.b32.xlu0 %v4901, 100
      %v4984 = vpop.permute.xlu0 %4983
      %4985 = vrot.lane.b32.xlu0 %v4902, 100
      %v4986 = vpop.permute.xlu0 %4985
      %4987 = vrot.lane.b32.xlu0 %v4903, 100
      %v4988 = vpop.permute.xlu0 %4987
      %4989 = vrot.lane.b32.xlu0 %v4904, 100
      %v4990 = vpop.permute.xlu0 %4989
      %4991 = vrot.lane.b32.xlu0 %v4905, 100
      %v4992 = vpop.permute.xlu0 %4991
      %4993 = vrot.lane.b32.xlu0 %v4906, 100
      %v4994 = vpop.permute.xlu0 %4993
      %4995 = vrot.lane.b32.xlu0 %v4907, 100
      %v4996 = vpop.permute.xlu0 %4995
      %4997 = vrot.lane.b32.xlu0 %v4908, 100
      %v4998 = vpop.permute.xlu0 %4997
      %4999 = vrot.lane.b32.xlu0 %v4909, 100
      %v5000 = vpop.permute.xlu0 %4999
      %5001 = vrot.lane.b32.xlu0 %v4910, 100
      %v5002 = vpop.permute.xlu0 %5001
      %5003 = vrot.lane.b32.xlu0 %v4911, 100
      %v5004 = vpop.permute.xlu0 %5003
      %5005 = vrot.lane.b32.xlu0 %v4912, 100
      %v5006 = vpop.permute.xlu0 %5005
      %5007 = vrot.lane.b32.xlu0 %v4913, 100
      %v5008 = vpop.permute.xlu0 %5007
      %5009 = vrot.lane.b32.xlu0 %v4914, 100
      %v5010 = vpop.permute.xlu0 %5009
      %vm5043 = vcmask 851744
      %5044 = vst.msk [vmem:[#allocation2] sm:$0xff] %vm5043, %v4948
      %5045 = vst.msk [vmem:[#allocation2 + $0x8] sm:$0xff] %vm5043, %v4950
      %5046 = vst.msk [vmem:[#allocation2 + $0x10] sm:$0xff] %vm5043, %v4952
      %5047 = vst.msk [vmem:[#allocation2 + $0x18] sm:$0xff] %vm5043, %v4954
      %5048 = vst.msk [vmem:[#allocation2 + $0x20] sm:$0xff] %vm5043, %v4956
      %5049 = vst.msk [vmem:[#allocation2 + $0x28] sm:$0xff] %vm5043, %v4958
      %5050 = vst.msk [vmem:[#allocation2 + $0x30] sm:$0xff] %vm5043, %v4960
      %5051 = vst.msk [vmem:[#allocation2 + $0x38] sm:$0xff] %vm5043, %v4962
      %5052 = vst.msk [vmem:[#allocation2 + $0x40] sm:$0xff] %vm5043, %v4964
      %5053 = vst.msk [vmem:[#allocation2 + $0x48] sm:$0xff] %vm5043, %v4966
      %5054 = vst.msk [vmem:[#allocation2 + $0x50] sm:$0xff] %vm5043, %v4968
      %5055 = vst.msk [vmem:[#allocation2 + $0x58] sm:$0xff] %vm5043, %v4970
      %5056 = vst.msk [vmem:[#allocation2 + $0x60] sm:$0xff] %vm5043, %v4972
      %5057 = vst.msk [vmem:[#allocation2 + $0x68] sm:$0xff] %vm5043, %v4974
      %5058 = vst.msk [vmem:[#allocation2 + $0x70] sm:$0xff] %vm5043, %v4976
      %5059 = vst.msk [vmem:[#allocation2 + $0x78] sm:$0xff] %vm5043, %v4978
      %5060 = vst.msk [vmem:[#allocation2 + $0x80] sm:$0xff] %vm5043, %v4980
      %5061 = vst.msk [vmem:[#allocation2 + $0x88] sm:$0xff] %vm5043, %v4982
      %5062 = vst.msk [vmem:[#allocation2 + $0x90] sm:$0xff] %vm5043, %v4984
      %5063 = vst.msk [vmem:[#allocation2 + $0x98] sm:$0xff] %vm5043, %v4986
      %5064 = vst.msk [vmem:[#allocation2 + $0xa0] sm:$0xff] %vm5043, %v4988
      %5065 = vst.msk [vmem:[#allocation2 + $0xa8] sm:$0xff] %vm5043, %v4990
      %5066 = vst.msk [vmem:[#allocation2 + $0xb0] sm:$0xff] %vm5043, %v4992
      %5067 = vst.msk [vmem:[#allocation2 + $0xb8] sm:$0xff] %vm5043, %v4994
      %5068 = vst.msk [vmem:[#allocation2 + $0xc0] sm:$0xff] %vm5043, %v4996
      %5069 = vst.msk [vmem:[#allocation2 + $0xc8] sm:$0xff] %vm5043, %v4998
      %5070 = vst.msk [vmem:[#allocation2 + $0xd0] sm:$0xff] %vm5043, %v5000
      %5071 = vst.msk [vmem:[#allocation2 + $0xd8] sm:$0xff] %vm5043, %v5002
      %5072 = vst.msk [vmem:[#allocation2 + $0xe0] sm:$0xff] %vm5043, %v5004
      %5073 = vst.msk [vmem:[#allocation2 + $0xe8] sm:$0xff] %vm5043, %v5006
      %5074 = vst.msk [vmem:[#allocation2 + $0xf0] sm:$0xff] %vm5043, %v5008
      %5075 = vst.msk [vmem:[#allocation2 + $0xf8] sm:$0xff] %vm5043, %v5010
      %v5076 = vld [vmem:[%s4689 + $0x2] sm:$0xff]
      %v5077 = vld [vmem:[%s4689 + $0x12] sm:$0xff]
      %v5078 = vld [vmem:[%s4689 + $0x22] sm:$0xff]
      %v5079 = vld [vmem:[%s4689 + $0x32] sm:$0xff]
      %v5080 = vld [vmem:[%s4689 + $0x42] sm:$0xff]
      %v5081 = vld [vmem:[%s4689 + $0x52] sm:$0xff]
      %v5082 = vld [vmem:[%s4689 + $0x62] sm:$0xff]
      %v5083 = vld [vmem:[%s4689 + $0x72] sm:$0xff]
      %v5084 = vld [vmem:[%s4689 + $0xa2] sm:$0xff]
      %v5085 = vld [vmem:[%s4689 + $0xb2] sm:$0xff]
      %v5086 = vld [vmem:[%s4689 + $0xc2] sm:$0xff]
      %v5087 = vld [vmem:[%s4689 + $0xd2] sm:$0xff]
      %v5088 = vld [vmem:[%s4689 + $0xe2] sm:$0xff]
      %v5089 = vld [vmem:[%s4689 + $0xf2] sm:$0xff]
      %v5090 = vld [vmem:[%s4689 + $0x102] sm:$0xff]
      %v5091 = vld [vmem:[%s4689 + $0x112] sm:$0xff]
      %v5092 = vld [vmem:[%s4689 + $0x142] sm:$0xff]
      %v5093 = vld [vmem:[%s4689 + $0x152] sm:$0xff]
      %v5094 = vld [vmem:[%s4689 + $0x162] sm:$0xff]
      %v5095 = vld [vmem:[%s4689 + $0x172] sm:$0xff]
      %v5096 = vld [vmem:[%s4689 + $0x182] sm:$0xff]
      %v5097 = vld [vmem:[%s4689 + $0x192] sm:$0xff]
      %v5098 = vld [vmem:[%s4689 + $0x1a2] sm:$0xff]
      %v5099 = vld [vmem:[%s4689 + $0x1b2] sm:$0xff]
      %v5100 = vld [vmem:[%s4689 + $0x1e2] sm:$0xff]
      %v5101 = vld [vmem:[%s4689 + $0x1f2] sm:$0xff]
      %v5102 = vld [vmem:[%s4689 + $0x202] sm:$0xff]
      %v5103 = vld [vmem:[%s4689 + $0x212] sm:$0xff]
      %v5104 = vld [vmem:[%s4689 + $0x222] sm:$0xff]
      %v5105 = vld [vmem:[%s4689 + $0x232] sm:$0xff]
      %v5106 = vld [vmem:[%s4689 + $0x242] sm:$0xff]
      %v5107 = vld [vmem:[%s4689 + $0x252] sm:$0xff]
      %5140 = vrot.lane.b32.xlu0 %v5076, 104
      %v5141 = vpop.permute.xlu0 %5140
      %5142 = vrot.lane.b32.xlu0 %v5077, 104
      %v5143 = vpop.permute.xlu0 %5142
      %5144 = vrot.lane.b32.xlu0 %v5078, 104
      %v5145 = vpop.permute.xlu0 %5144
      %5146 = vrot.lane.b32.xlu0 %v5079, 104
      %v5147 = vpop.permute.xlu0 %5146
      %5148 = vrot.lane.b32.xlu0 %v5080, 104
      %v5149 = vpop.permute.xlu0 %5148
      %5150 = vrot.lane.b32.xlu0 %v5081, 104
      %v5151 = vpop.permute.xlu0 %5150
      %5152 = vrot.lane.b32.xlu0 %v5082, 104
      %v5153 = vpop.permute.xlu0 %5152
      %5154 = vrot.lane.b32.xlu0 %v5083, 104
      %v5155 = vpop.permute.xlu0 %5154
      %5156 = vrot.lane.b32.xlu0 %v5084, 104
      %v5157 = vpop.permute.xlu0 %5156
      %5158 = vrot.lane.b32.xlu0 %v5085, 104
      %v5159 = vpop.permute.xlu0 %5158
      %5160 = vrot.lane.b32.xlu0 %v5086, 104
      %v5161 = vpop.permute.xlu0 %5160
      %5162 = vrot.lane.b32.xlu0 %v5087, 104
      %v5163 = vpop.permute.xlu0 %5162
      %5164 = vrot.lane.b32.xlu0 %v5088, 104
      %v5165 = vpop.permute.xlu0 %5164
      %5166 = vrot.lane.b32.xlu0 %v5089, 104
      %v5167 = vpop.permute.xlu0 %5166
      %5168 = vrot.lane.b32.xlu0 %v5090, 104
      %v5169 = vpop.permute.xlu0 %5168
      %5170 = vrot.lane.b32.xlu0 %v5091, 104
      %v5171 = vpop.permute.xlu0 %5170
      %5172 = vrot.lane.b32.xlu0 %v5092, 104
      %v5173 = vpop.permute.xlu0 %5172
      %5174 = vrot.lane.b32.xlu0 %v5093, 104
      %v5175 = vpop.permute.xlu0 %5174
      %5176 = vrot.lane.b32.xlu0 %v5094, 104
      %v5177 = vpop.permute.xlu0 %5176
      %5178 = vrot.lane.b32.xlu0 %v5095, 104
      %v5179 = vpop.permute.xlu0 %5178
      %5180 = vrot.lane.b32.xlu0 %v5096, 104
      %v5181 = vpop.permute.xlu0 %5180
      %5182 = vrot.lane.b32.xlu0 %v5097, 104
      %v5183 = vpop.permute.xlu0 %5182
      %5184 = vrot.lane.b32.xlu0 %v5098, 104
      %v5185 = vpop.permute.xlu0 %5184
      %5186 = vrot.lane.b32.xlu0 %v5099, 104
      %v5187 = vpop.permute.xlu0 %5186
      %5188 = vrot.lane.b32.xlu0 %v5100, 104
      %v5189 = vpop.permute.xlu0 %5188
      %5190 = vrot.lane.b32.xlu0 %v5101, 104
      %v5191 = vpop.permute.xlu0 %5190
      %5192 = vrot.lane.b32.xlu0 %v5102, 104
      %v5193 = vpop.permute.xlu0 %5192
      %5194 = vrot.lane.b32.xlu0 %v5103, 104
      %v5195 = vpop.permute.xlu0 %5194
      %5196 = vrot.lane.b32.xlu0 %v5104, 104
      %v5197 = vpop.permute.xlu0 %5196
      %5198 = vrot.lane.b32.xlu0 %v5105, 104
      %v5199 = vpop.permute.xlu0 %5198
      %5200 = vrot.lane.b32.xlu0 %v5106, 104
      %v5201 = vpop.permute.xlu0 %5200
      %5202 = vrot.lane.b32.xlu0 %v5107, 104
      %v5203 = vpop.permute.xlu0 %5202
      %vm5236 = vcmask 884544
      %5237 = vst.msk [vmem:[#allocation2] sm:$0xff] %vm5236, %v5141
      %5238 = vst.msk [vmem:[#allocation2 + $0x8] sm:$0xff] %vm5236, %v5143
      %5239 = vst.msk [vmem:[#allocation2 + $0x10] sm:$0xff] %vm5236, %v5145
      %5240 = vst.msk [vmem:[#allocation2 + $0x18] sm:$0xff] %vm5236, %v5147
      %5241 = vst.msk [vmem:[#allocation2 + $0x20] sm:$0xff] %vm5236, %v5149
      %5242 = vst.msk [vmem:[#allocation2 + $0x28] sm:$0xff] %vm5236, %v5151
      %5243 = vst.msk [vmem:[#allocation2 + $0x30] sm:$0xff] %vm5236, %v5153
      %5244 = vst.msk [vmem:[#allocation2 + $0x38] sm:$0xff] %vm5236, %v5155
      %5245 = vst.msk [vmem:[#allocation2 + $0x40] sm:$0xff] %vm5236, %v5157
      %5246 = vst.msk [vmem:[#allocation2 + $0x48] sm:$0xff] %vm5236, %v5159
      %5247 = vst.msk [vmem:[#allocation2 + $0x50] sm:$0xff] %vm5236, %v5161
      %5248 = vst.msk [vmem:[#allocation2 + $0x58] sm:$0xff] %vm5236, %v5163
      %5249 = vst.msk [vmem:[#allocation2 + $0x60] sm:$0xff] %vm5236, %v5165
      %5250 = vst.msk [vmem:[#allocation2 + $0x68] sm:$0xff] %vm5236, %v5167
      %5251 = vst.msk [vmem:[#allocation2 + $0x70] sm:$0xff] %vm5236, %v5169
      %5252 = vst.msk [vmem:[#allocation2 + $0x78] sm:$0xff] %vm5236, %v5171
      %5253 = vst.msk [vmem:[#allocation2 + $0x80] sm:$0xff] %vm5236, %v5173
      %5254 = vst.msk [vmem:[#allocation2 + $0x88] sm:$0xff] %vm5236, %v5175
      %5255 = vst.msk [vmem:[#allocation2 + $0x90] sm:$0xff] %vm5236, %v5177
      %5256 = vst.msk [vmem:[#allocation2 + $0x98] sm:$0xff] %vm5236, %v5179
      %5257 = vst.msk [vmem:[#allocation2 + $0xa0] sm:$0xff] %vm5236, %v5181
      %5258 = vst.msk [vmem:[#allocation2 + $0xa8] sm:$0xff] %vm5236, %v5183
      %5259 = vst.msk [vmem:[#allocation2 + $0xb0] sm:$0xff] %vm5236, %v5185
      %5260 = vst.msk [vmem:[#allocation2 + $0xb8] sm:$0xff] %vm5236, %v5187
      %5261 = vst.msk [vmem:[#allocation2 + $0xc0] sm:$0xff] %vm5236, %v5189
      %5262 = vst.msk [vmem:[#allocation2 + $0xc8] sm:$0xff] %vm5236, %v5191
      %5263 = vst.msk [vmem:[#allocation2 + $0xd0] sm:$0xff] %vm5236, %v5193
      %5264 = vst.msk [vmem:[#allocation2 + $0xd8] sm:$0xff] %vm5236, %v5195
      %5265 = vst.msk [vmem:[#allocation2 + $0xe0] sm:$0xff] %vm5236, %v5197
      %5266 = vst.msk [vmem:[#allocation2 + $0xe8] sm:$0xff] %vm5236, %v5199
      %5267 = vst.msk [vmem:[#allocation2 + $0xf0] sm:$0xff] %vm5236, %v5201
      %5268 = vst.msk [vmem:[#allocation2 + $0xf8] sm:$0xff] %vm5236, %v5203
      %v5269 = vld [vmem:[#allocation2] sm:$0xff]
      %v5270 = vld [vmem:[#allocation2 + $0x8] sm:$0xff]
      %v5271 = vld [vmem:[#allocation2 + $0x10] sm:$0xff]
      %v5272 = vld [vmem:[#allocation2 + $0x18] sm:$0xff]
      %v5273 = vld [vmem:[#allocation2 + $0x20] sm:$0xff]
      %v5274 = vld [vmem:[#allocation2 + $0x28] sm:$0xff]
      %v5275 = vld [vmem:[#allocation2 + $0x30] sm:$0xff]
      %v5276 = vld [vmem:[#allocation2 + $0x38] sm:$0xff]
      %v5277 = vld [vmem:[#allocation2 + $0x40] sm:$0xff]
      %v5278 = vld [vmem:[#allocation2 + $0x48] sm:$0xff]
      %v5279 = vld [vmem:[#allocation2 + $0x50] sm:$0xff]
      %v5280 = vld [vmem:[#allocation2 + $0x58] sm:$0xff]
      %v5281 = vld [vmem:[#allocation2 + $0x60] sm:$0xff]
      %v5282 = vld [vmem:[#allocation2 + $0x68] sm:$0xff]
      %v5283 = vld [vmem:[#allocation2 + $0x70] sm:$0xff]
      %v5284 = vld [vmem:[#allocation2 + $0x78] sm:$0xff]
      %v5285 = vld [vmem:[#allocation2 + $0x80] sm:$0xff]
      %v5286 = vld [vmem:[#allocation2 + $0x88] sm:$0xff]
      %v5287 = vld [vmem:[#allocation2 + $0x90] sm:$0xff]
      %v5288 = vld [vmem:[#allocation2 + $0x98] sm:$0xff]
      %v5289 = vld [vmem:[#allocation2 + $0xa0] sm:$0xff]
      %v5290 = vld [vmem:[#allocation2 + $0xa8] sm:$0xff]
      %v5291 = vld [vmem:[#allocation2 + $0xb0] sm:$0xff]
      %v5292 = vld [vmem:[#allocation2 + $0xb8] sm:$0xff]
      %v5293 = vld [vmem:[#allocation2 + $0xc0] sm:$0xff]
      %v5294 = vld [vmem:[#allocation2 + $0xc8] sm:$0xff]
      %v5295 = vld [vmem:[#allocation2 + $0xd0] sm:$0xff]
      %v5296 = vld [vmem:[#allocation2 + $0xd8] sm:$0xff]
      %v5297 = vld [vmem:[#allocation2 + $0xe0] sm:$0xff]
      %v5298 = vld [vmem:[#allocation2 + $0xe8] sm:$0xff]
      %v5299 = vld [vmem:[#allocation2 + $0xf0] sm:$0xff]
      %v5300 = vld [vmem:[#allocation2 + $0xf8] sm:$0xff]
      %v5301 = vpack.c.bf16 %v5270, %v5269
      %v5302 = vpack.c.bf16 %v5272, %v5271
      %v5303 = vpack.c.bf16 %v5274, %v5273
      %v5304 = vpack.c.bf16 %v5276, %v5275
      %v5305 = vpack.c.bf16 %v5278, %v5277
      %v5306 = vpack.c.bf16 %v5280, %v5279
      %v5307 = vpack.c.bf16 %v5282, %v5281
      %v5308 = vpack.c.bf16 %v5284, %v5283
      %v5309 = vpack.c.bf16 %v5286, %v5285
      %v5310 = vpack.c.bf16 %v5288, %v5287
      %v5311 = vpack.c.bf16 %v5290, %v5289
      %v5312 = vpack.c.bf16 %v5292, %v5291
      %v5313 = vpack.c.bf16 %v5294, %v5293
      %v5314 = vpack.c.bf16 %v5296, %v5295
      %v5315 = vpack.c.bf16 %v5298, %v5297
      %v5316 = vpack.c.bf16 %v5300, %v5299
      %v5317 = vld [vmem:[%s1] sm:$0xf]
      %v5318 = vld [vmem:[%s1 + $0x4] sm:$0xf]
      %v5319 = vld [vmem:[%s1 + $0x8] sm:$0xf]
      %v5320 = vld [vmem:[%s1 + $0xc] sm:$0xf]
      %v5321 = vld [vmem:[%s1 + $0x10] sm:$0xf]
      %v5322 = vld [vmem:[%s1 + $0x14] sm:$0xf]
      %v5323 = vld [vmem:[%s1 + $0x18] sm:$0xf]
      %v5324 = vld [vmem:[%s1 + $0x1c] sm:$0xf]
      %v5325 = vld [vmem:[%s1 + $0x20] sm:$0xf]
      %v5326 = vld [vmem:[%s1 + $0x24] sm:$0xf]
      %v5327 = vld [vmem:[%s1 + $0x28] sm:$0xf]
      %v5328 = vld [vmem:[%s1 + $0x2c] sm:$0xf]
      %v5329 = vld [vmem:[%s1 + $0x30] sm:$0xf]
      %v5330 = vld [vmem:[%s1 + $0x34] sm:$0xf]
      %v5331 = vld [vmem:[%s1 + $0x38] sm:$0xf]
      %v5332 = vld [vmem:[%s1 + $0x3c] sm:$0xf]
      %v5349 = vunpack.c.l.b16 %v5317
      %v5350 = vunpack.c.l.b16 %v5318
      %v5351 = vunpack.c.l.b16 %v5319
      %v5352 = vunpack.c.l.b16 %v5320
      %v5353 = vunpack.c.l.b16 %v5321
      %v5354 = vunpack.c.l.b16 %v5322
      %v5355 = vunpack.c.l.b16 %v5323
      %v5356 = vunpack.c.l.b16 %v5324
      %v5357 = vunpack.c.l.b16 %v5325
      %v5358 = vunpack.c.l.b16 %v5326
      %v5359 = vunpack.c.l.b16 %v5327
      %v5360 = vunpack.c.l.b16 %v5328
      %v5361 = vunpack.c.l.b16 %v5329
      %v5362 = vunpack.c.l.b16 %v5330
      %v5363 = vunpack.c.l.b16 %v5331
      %v5364 = vunpack.c.l.b16 %v5332
      %v5365 = vpack.c.b16 %v5350, %v5349
      %v5366 = vpack.c.b16 %v5352, %v5351
      %v5367 = vpack.c.b16 %v5354, %v5353
      %v5368 = vpack.c.b16 %v5356, %v5355
      %v5369 = vpack.c.b16 %v5358, %v5357
      %v5370 = vpack.c.b16 %v5360, %v5359
      %v5371 = vpack.c.b16 %v5362, %v5361
      %v5372 = vpack.c.b16 %v5364, %v5363
      %5381 = vmatprep.subr.bf16.mxu0 0
      %5382 = vmatpush1.bf16.msra.mxu0 %v5372
      %5383 = vmatprep.subr.bf16.mxu0 0
      %5384 = vmatpush1.bf16.msra.mxu0 %v5371
      %5385 = vmatprep.subr.bf16.mxu0 0
      %5386 = vmatpush1.bf16.msra.mxu0 %v5370
      %5387 = vmatprep.subr.bf16.mxu0 0
      %5388 = vmatpush1.bf16.msra.mxu0 %v5369
      %5389 = vmatprep.subr.bf16.mxu0 0
      %5390 = vmatpush1.bf16.msra.mxu0 %v5368
      %5391 = vmatprep.subr.bf16.mxu0 0
      %5392 = vmatpush1.bf16.msra.mxu0 %v5367
      %5393 = vmatprep.subr.bf16.mxu0 0
      %5394 = vmatpush1.bf16.msra.mxu0 %v5366
      %5395 = vmatprep.subr.bf16.mxu0 0
      %5396 = vmatpush1.bf16.msra.mxu0 %v5365
      %5397 = vmatprep.subr.bf16.mxu0 0
      %5398 = vmatpush2.bf16.msra.mxu0 0
      %5399 = vmatprep.subr.bf16.mxu0 0
      %5400 = vmatpush2.bf16.msra.mxu0 0
      %5401 = vmatprep.subr.bf16.mxu0 0
      %5402 = vmatpush2.bf16.msra.mxu0 0
      %5403 = vmatprep.subr.bf16.mxu0 0
      %5404 = vmatpush2.bf16.msra.mxu0 0
      %5405 = vmatprep.subr.bf16.mxu0 0
      %5406 = vmatpush2.bf16.msra.mxu0 0
      %5407 = vmatprep.subr.bf16.mxu0 0
      %5408 = vmatpush2.bf16.msra.mxu0 0
      %5409 = vmatprep.subr.bf16.mxu0 0
      %5410 = vmatpush2.bf16.msra.mxu0 0
      %5411 = vmatprep.subr.bf16.mxu0 0
      %5412 = vmatpush2.bf16.msra.mxu0 0
      %5413 = vmatprep.mubr.bf16.mxu0 0
      %5414 = vmatmul.mubr.bf16.gmra.mxu0 %v5301
      %v5415 = vpop.f32.mrf.mxu0
      %v5416 = vadd.f32 0.0, %v5415
      %v5417 = vpop.f32.mrf.mxu0
      %v5418 = vpop.f32.mrf.mxu0
      %v5419 = vadd.f32 0.0, %v5418
      %v5420 = vpop.f32.mrf.mxu0
      %5421 = vmatprep.mubr.bf16.mxu0 0
      %5422 = vmatmul.mubr.bf16.gmra.mxu0 %v5302
      %v5423 = vpop.f32.mrf.mxu0
      %v5424 = vadd.f32 0.0, %v5423
      %v5425 = vpop.f32.mrf.mxu0
      %v5426 = vpop.f32.mrf.mxu0
      %v5427 = vadd.f32 0.0, %v5426
      %v5428 = vpop.f32.mrf.mxu0
      %5429 = vmatprep.mubr.bf16.mxu0 0
      %5430 = vmatmul.mubr.bf16.gmra.mxu0 %v5303
      %v5431 = vpop.f32.mrf.mxu0
      %v5432 = vadd.f32 0.0, %v5431
      %v5433 = vpop.f32.mrf.mxu0
      %v5434 = vpop.f32.mrf.mxu0
      %v5435 = vadd.f32 0.0, %v5434
      %v5436 = vpop.f32.mrf.mxu0
      %5437 = vmatprep.mubr.bf16.mxu0 0
      %5438 = vmatmul.mubr.bf16.gmra.mxu0 %v5304
      %v5439 = vpop.f32.mrf.mxu0
      %v5440 = vadd.f32 0.0, %v5439
      %v5441 = vpop.f32.mrf.mxu0
      %v5442 = vpop.f32.mrf.mxu0
      %v5443 = vadd.f32 0.0, %v5442
      %v5444 = vpop.f32.mrf.mxu0
      %5445 = vmatprep.mubr.bf16.mxu0 0
      %5446 = vmatmul.mubr.bf16.gmra.mxu0 %v5305
      %v5447 = vpop.f32.mrf.mxu0
      %v5448 = vadd.f32 0.0, %v5447
      %v5449 = vpop.f32.mrf.mxu0
      %v5450 = vpop.f32.mrf.mxu0
      %v5451 = vadd.f32 0.0, %v5450
      %v5452 = vpop.f32.mrf.mxu0
      %5453 = vmatprep.mubr.bf16.mxu0 0
      %5454 = vmatmul.mubr.bf16.gmra.mxu0 %v5306
      %v5455 = vpop.f32.mrf.mxu0
      %v5456 = vadd.f32 0.0, %v5455
      %v5457 = vpop.f32.mrf.mxu0
      %v5458 = vpop.f32.mrf.mxu0
      %v5459 = vadd.f32 0.0, %v5458
      %v5460 = vpop.f32.mrf.mxu0
      %5461 = vmatprep.mubr.bf16.mxu0 0
      %5462 = vmatmul.mubr.bf16.gmra.mxu0 %v5307
      %v5463 = vpop.f32.mrf.mxu0
      %v5464 = vadd.f32 0.0, %v5463
      %v5465 = vpop.f32.mrf.mxu0
      %v5466 = vpop.f32.mrf.mxu0
      %v5467 = vadd.f32 0.0, %v5466
      %v5468 = vpop.f32.mrf.mxu0
      %5469 = vmatprep.mubr.bf16.mxu0 0
      %5470 = vmatmul.mubr.bf16.gmra.mxu0 %v5308
      %v5471 = vpop.f32.mrf.mxu0
      %v5472 = vadd.f32 0.0, %v5471
      %v5473 = vpop.f32.mrf.mxu0
      %v5474 = vpop.f32.mrf.mxu0
      %v5475 = vadd.f32 0.0, %v5474
      %v5476 = vpop.f32.mrf.mxu0
      %5477 = vmatprep.mubr.bf16.mxu0 0
      %5478 = vmatmul.mubr.bf16.gmra.mxu0 %v5309
      %v5479 = vpop.f32.mrf.mxu0
      %v5480 = vadd.f32 0.0, %v5479
      %v5481 = vpop.f32.mrf.mxu0
      %v5482 = vpop.f32.mrf.mxu0
      %v5483 = vadd.f32 0.0, %v5482
      %v5484 = vpop.f32.mrf.mxu0
      %5485 = vmatprep.mubr.bf16.mxu0 0
      %5486 = vmatmul.mubr.bf16.gmra.mxu0 %v5310
      %v5487 = vpop.f32.mrf.mxu0
      %v5488 = vadd.f32 0.0, %v5487
      %v5489 = vpop.f32.mrf.mxu0
      %v5490 = vpop.f32.mrf.mxu0
      %v5491 = vadd.f32 0.0, %v5490
      %v5492 = vpop.f32.mrf.mxu0
      %5493 = vmatprep.mubr.bf16.mxu0 0
      %5494 = vmatmul.mubr.bf16.gmra.mxu0 %v5311
      %v5495 = vpop.f32.mrf.mxu0
      %v5496 = vadd.f32 0.0, %v5495
      %v5497 = vpop.f32.mrf.mxu0
      %v5498 = vpop.f32.mrf.mxu0
      %v5499 = vadd.f32 0.0, %v5498
      %v5500 = vpop.f32.mrf.mxu0
      %5501 = vmatprep.mubr.bf16.mxu0 0
      %5502 = vmatmul.mubr.bf16.gmra.mxu0 %v5312
      %v5503 = vpop.f32.mrf.mxu0
      %v5504 = vadd.f32 0.0, %v5503
      %v5505 = vpop.f32.mrf.mxu0
      %v5506 = vpop.f32.mrf.mxu0
      %v5507 = vadd.f32 0.0, %v5506
      %v5508 = vpop.f32.mrf.mxu0
      %5509 = vmatprep.mubr.bf16.mxu0 0
      %5510 = vmatmul.mubr.bf16.gmra.mxu0 %v5313
      %v5511 = vpop.f32.mrf.mxu0
      %v5512 = vadd.f32 0.0, %v5511
      %v5513 = vpop.f32.mrf.mxu0
      %v5514 = vpop.f32.mrf.mxu0
      %v5515 = vadd.f32 0.0, %v5514
      %v5516 = vpop.f32.mrf.mxu0
      %5517 = vmatprep.mubr.bf16.mxu0 0
      %5518 = vmatmul.mubr.bf16.gmra.mxu0 %v5314
      %v5519 = vpop.f32.mrf.mxu0
      %v5520 = vadd.f32 0.0, %v5519
      %v5521 = vpop.f32.mrf.mxu0
      %v5522 = vpop.f32.mrf.mxu0
      %v5523 = vadd.f32 0.0, %v5522
      %v5524 = vpop.f32.mrf.mxu0
      %5525 = vmatprep.mubr.bf16.mxu0 0
      %5526 = vmatmul.mubr.bf16.gmra.mxu0 %v5315
      %v5527 = vpop.f32.mrf.mxu0
      %v5528 = vadd.f32 0.0, %v5527
      %v5529 = vpop.f32.mrf.mxu0
      %v5530 = vpop.f32.mrf.mxu0
      %v5531 = vadd.f32 0.0, %v5530
      %v5532 = vpop.f32.mrf.mxu0
      %5533 = vmatprep.mubr.bf16.mxu0 0
      %5534 = vmatmul.mubr.bf16.gmra.mxu0 %v5316
      %v5535 = vpop.f32.mrf.mxu0
      %v5536 = vadd.f32 0.0, %v5535
      %v5537 = vpop.f32.mrf.mxu0
      %v5538 = vpop.f32.mrf.mxu0
      %v5539 = vadd.f32 0.0, %v5538
      %v5540 = vpop.f32.mrf.mxu0
      %5541 = vdwg.mxu0
      %v5542 = vmax.f32 %v5416, 0.0
      %v5543 = vmax.f32 %v5419, 0.0
      %v5544 = vmax.f32 %v5424, 0.0
      %v5545 = vmax.f32 %v5427, 0.0
      %v5546 = vmax.f32 %v5432, 0.0
      %v5547 = vmax.f32 %v5435, 0.0
      %v5548 = vmax.f32 %v5440, 0.0
      %v5549 = vmax.f32 %v5443, 0.0
      %v5550 = vmax.f32 %v5448, 0.0
      %v5551 = vmax.f32 %v5451, 0.0
      %v5552 = vmax.f32 %v5456, 0.0
      %v5553 = vmax.f32 %v5459, 0.0
      %v5554 = vmax.f32 %v5464, 0.0
      %v5555 = vmax.f32 %v5467, 0.0
      %v5556 = vmax.f32 %v5472, 0.0
      %v5557 = vmax.f32 %v5475, 0.0
      %v5558 = vmax.f32 %v5480, 0.0
      %v5559 = vmax.f32 %v5483, 0.0
      %v5560 = vmax.f32 %v5488, 0.0
      %v5561 = vmax.f32 %v5491, 0.0
      %v5562 = vmax.f32 %v5496, 0.0
      %v5563 = vmax.f32 %v5499, 0.0
      %v5564 = vmax.f32 %v5504, 0.0
      %v5565 = vmax.f32 %v5507, 0.0
      %v5566 = vmax.f32 %v5512, 0.0
      %v5567 = vmax.f32 %v5515, 0.0
      %v5568 = vmax.f32 %v5520, 0.0
      %v5569 = vmax.f32 %v5523, 0.0
      %v5570 = vmax.f32 %v5528, 0.0
      %v5571 = vmax.f32 %v5531, 0.0
      %v5572 = vmax.f32 %v5536, 0.0
      %v5573 = vmax.f32 %v5539, 0.0
      %v5574 = vpack.c.bf16 %v5543, %v5542
      %v5575 = vpack.c.bf16 %v5545, %v5544
      %v5576 = vpack.c.bf16 %v5547, %v5546
      %v5577 = vpack.c.bf16 %v5549, %v5548
      %v5578 = vpack.c.bf16 %v5551, %v5550
      %v5579 = vpack.c.bf16 %v5553, %v5552
      %v5580 = vpack.c.bf16 %v5555, %v5554
      %v5581 = vpack.c.bf16 %v5557, %v5556
      %v5582 = vpack.c.bf16 %v5559, %v5558
      %v5583 = vpack.c.bf16 %v5561, %v5560
      %v5584 = vpack.c.bf16 %v5563, %v5562
      %v5585 = vpack.c.bf16 %v5565, %v5564
      %v5586 = vpack.c.bf16 %v5567, %v5566
      %v5587 = vpack.c.bf16 %v5569, %v5568
      %v5588 = vpack.c.bf16 %v5571, %v5570
      %v5589 = vpack.c.bf16 %v5573, %v5572
      %v5606 = vunpack.c.l.b16 %v5574
      %v5607 = vunpack.c.h.b16 %v5574
      %v5608 = vunpack.c.l.b16 %v5575
      %v5609 = vunpack.c.h.b16 %v5575
      %v5610 = vunpack.c.l.b16 %v5576
      %v5611 = vunpack.c.h.b16 %v5576
      %v5612 = vunpack.c.l.b16 %v5577
      %v5613 = vunpack.c.h.b16 %v5577
      %v5614 = vunpack.c.l.b16 %v5578
      %v5615 = vunpack.c.h.b16 %v5578
      %v5616 = vunpack.c.l.b16 %v5579
      %v5617 = vunpack.c.h.b16 %v5579
      %v5618 = vunpack.c.l.b16 %v5580
      %v5619 = vunpack.c.h.b16 %v5580
      %v5620 = vunpack.c.l.b16 %v5581
      %v5621 = vunpack.c.h.b16 %v5581
      %v5622 = vunpack.c.l.b16 %v5582
      %v5623 = vunpack.c.h.b16 %v5582
      %v5624 = vunpack.c.l.b16 %v5583
      %v5625 = vunpack.c.h.b16 %v5583
      %v5626 = vunpack.c.l.b16 %v5584
      %v5627 = vunpack.c.h.b16 %v5584
      %v5628 = vunpack.c.l.b16 %v5585
      %v5629 = vunpack.c.h.b16 %v5585
      %v5630 = vunpack.c.l.b16 %v5586
      %v5631 = vunpack.c.h.b16 %v5586
      %v5632 = vunpack.c.l.b16 %v5587
      %v5633 = vunpack.c.h.b16 %v5587
      %v5634 = vunpack.c.l.b16 %v5588
      %v5635 = vunpack.c.h.b16 %v5588
      %v5636 = vunpack.c.l.b16 %v5589
      %v5637 = vunpack.c.h.b16 %v5589
      %v5638 = vpack.c.b16 %v5606, %v5606
      %v5639 = vpack.c.b16 %v5607, %v5607
      %v5640 = vpack.c.b16 %v5608, %v5608
      %v5641 = vpack.c.b16 %v5609, %v5609
      %v5642 = vpack.c.b16 %v5610, %v5610
      %v5643 = vpack.c.b16 %v5611, %v5611
      %v5644 = vpack.c.b16 %v5612, %v5612
      %v5645 = vpack.c.b16 %v5613, %v5613
      %v5646 = vpack.c.b16 %v5614, %v5614
      %v5647 = vpack.c.b16 %v5615, %v5615
      %v5648 = vpack.c.b16 %v5616, %v5616
      %v5649 = vpack.c.b16 %v5617, %v5617
      %v5650 = vpack.c.b16 %v5618, %v5618
      %v5651 = vpack.c.b16 %v5619, %v5619
      %v5652 = vpack.c.b16 %v5620, %v5620
      %v5653 = vpack.c.b16 %v5621, %v5621
      %v5654 = vpack.c.b16 %v5622, %v5622
      %v5655 = vpack.c.b16 %v5623, %v5623
      %v5656 = vpack.c.b16 %v5624, %v5624
      %v5657 = vpack.c.b16 %v5625, %v5625
      %v5658 = vpack.c.b16 %v5626, %v5626
      %v5659 = vpack.c.b16 %v5627, %v5627
      %v5660 = vpack.c.b16 %v5628, %v5628
      %v5661 = vpack.c.b16 %v5629, %v5629
      %v5662 = vpack.c.b16 %v5630, %v5630
      %v5663 = vpack.c.b16 %v5631, %v5631
      %v5664 = vpack.c.b16 %v5632, %v5632
      %v5665 = vpack.c.b16 %v5633, %v5633
      %v5666 = vpack.c.b16 %v5634, %v5634
      %v5667 = vpack.c.b16 %v5635, %v5635
      %v5668 = vpack.c.b16 %v5636, %v5636
      %v5669 = vpack.c.b16 %v5637, %v5637
      %5702 = vst [vmem:[%s143] sm:$0xf] %v5638
      %5703 = vst [vmem:[%s143 + $0x4] sm:$0xf] %v5639
      %5704 = vst [vmem:[%s143 + $0x8] sm:$0xf] %v5640
      %5705 = vst [vmem:[%s143 + $0xc] sm:$0xf] %v5641
      %5706 = vst [vmem:[%s143 + $0x10] sm:$0xf] %v5642
      %5707 = vst [vmem:[%s143 + $0x14] sm:$0xf] %v5643
      %5708 = vst [vmem:[%s143 + $0x18] sm:$0xf] %v5644
      %5709 = vst [vmem:[%s143 + $0x1c] sm:$0xf] %v5645
      %5710 = vst [vmem:[%s143 + $0x20] sm:$0xf] %v5646
      %5711 = vst [vmem:[%s143 + $0x24] sm:$0xf] %v5647
      %5712 = vst [vmem:[%s143 + $0x28] sm:$0xf] %v5648
      %5713 = vst [vmem:[%s143 + $0x2c] sm:$0xf] %v5649
      %5714 = vst [vmem:[%s143 + $0x30] sm:$0xf] %v5650
      %5715 = vst [vmem:[%s143 + $0x34] sm:$0xf] %v5651
      %5716 = vst [vmem:[%s143 + $0x38] sm:$0xf] %v5652
      %5717 = vst [vmem:[%s143 + $0x3c] sm:$0xf] %v5653
      %5718 = vst [vmem:[%s143 + $0x40] sm:$0xf] %v5654
      %5719 = vst [vmem:[%s143 + $0x44] sm:$0xf] %v5655
      %5720 = vst [vmem:[%s143 + $0x48] sm:$0xf] %v5656
      %5721 = vst [vmem:[%s143 + $0x4c] sm:$0xf] %v5657
      %5722 = vst [vmem:[%s143 + $0x50] sm:$0xf] %v5658
      %5723 = vst [vmem:[%s143 + $0x54] sm:$0xf] %v5659
      %5724 = vst [vmem:[%s143 + $0x58] sm:$0xf] %v5660
      %5725 = vst [vmem:[%s143 + $0x5c] sm:$0xf] %v5661
      %5726 = vst [vmem:[%s143 + $0x60] sm:$0xf] %v5662
      %5727 = vst [vmem:[%s143 + $0x64] sm:$0xf] %v5663
      %5728 = vst [vmem:[%s143 + $0x68] sm:$0xf] %v5664
      %5729 = vst [vmem:[%s143 + $0x6c] sm:$0xf] %v5665
      %5730 = vst [vmem:[%s143 + $0x70] sm:$0xf] %v5666
      %5731 = vst [vmem:[%s143 + $0x74] sm:$0xf] %v5667
      %5732 = vst [vmem:[%s143 + $0x78] sm:$0xf] %v5668
      %5733 = vst [vmem:[%s143 + $0x7c] sm:$0xf] %v5669
      %s5734 = smul.u32 32, %s13
      %p5735 = scmp.lt.s32.totalorder %s5734, 127
      %s5736 = scalar_select %p5735, %s5734, 127
      %s5737 = smul.addr %s5736, 4
      %s5738 = scalar_lea.vmem %s2, %s5737
      // Predicated region
      $region29: #{relaxed_octahedral_lift_conv3d.1} parent=27 // pred_check
        %p5739 = pneg %p78
      $region30: #{relaxed_octahedral_lift_conv3d.1} parent=27 // pred_check_branch
        %5741 = sbr.rel (%p5739) target = $region32
      $region31: #{relaxed_octahedral_lift_conv3d.1} parent=27 // pred_region
        %s5742 = smul.u32 32, %s13
      $region32: #{relaxed_octahedral_lift_conv3d.1} parent=27 // pred_fallthru
        _
    $region28: #{relaxed_octahedral_lift_conv3d.1} parent=5 // pred_fallthru
      _
    %p5743 = scmp.le.s32.totalorder 2, %s8
    // Predicated region
    $region33: #{relaxed_octahedral_lift_conv3d.1} parent=5 // pred_check
      %p5744 = pneg %p5743
    $region34: #{relaxed_octahedral_lift_conv3d.1} parent=5 // pred_check_branch
      %5746 = sbr.rel (%p5744) target = $region36
    $region35: #{relaxed_octahedral_lift_conv3d.1} parent=5 // pred_region
      %s5747 = ssub.s32 %s8, 2
      // Predicated region
      $region37: #{relaxed_octahedral_lift_conv3d.1} parent=35 // pred_check
        %p5748 = pneg %p84
      $region38: #{relaxed_octahedral_lift_conv3d.1} parent=35 // pred_check_branch
        %5750 = sbr.rel (%p5748) target = $region40
      $region39: #{relaxed_octahedral_lift_conv3d.1} parent=35 // pred_region
        %s5751 = smul.u32 32, %s14
        %p5752 = scmp.lt.s32.totalorder %s5751, 127
        %s5753 = scalar_select %p5752, %s5751, 127
        %s5754 = smul.addr %s5753, 4
        %s5755 = scalar_lea.vmem %s2, %s5754
      $region40: #{relaxed_octahedral_lift_conv3d.1} parent=35 // pred_fallthru
        _
    $region36: #{relaxed_octahedral_lift_conv3d.1} parent=5 // pred_fallthru
      _
  $region6: #{relaxed_octahedral_lift_conv3d.1} parent=0 // loop_footer
    %s12 = sadd.s32 1, %s8
  $region7: #{relaxed_octahedral_lift_conv3d.1} parent=0 // loop_footer_branch
    %7 = sbr.rel target = $region3
  $region8: #{relaxed_octahedral_lift_conv3d.1} parent=0 // loop_exit
    _

</llo_original>
